<compile_context>
chip_gen: v7x
topology: tpu7x:2x2x1
jax: 0.10.0
libtpu: 0.0.40
codegen_flags: <defaults>
</compile_context>

<pallas_src>
import jax
import jax.numpy as jnp
from jax import lax
from jax.experimental import pallas as pl
from jax.experimental.pallas import tpu as pltpu

# ----- module hyper-parameters (defaults of Matrix_Decomposition_2D_Base) ----
MD_S = 1
MD_R = 64          # latent dimension R
TRAIN_STEPS = 6
EVAL_STEPS = 7
INV_T = 100.0
EPS = 1e-6         # NMF2D multiplicative-update epsilon


def _make_nmf_kernel(steps):
    """Builds the per-batch-element NMF kernel (static number of MU steps)."""

    def kernel(x_ref, bases_ref, out_ref):
        # x_ref     block: (1, D, N)  f32
        # bases_ref block: (1, R, D)  f32   (bases stored TRANSPOSED: B^T)
        # out_ref   block: (1, D, N)  x.dtype
        x_bf = x_ref[0].astype(jnp.bfloat16)            # (D, N) bf16, cast once
        bt0 = bases_ref[0]                              # (R, D) f32 (already f32)

        def btx(bt):
            # B^T @ X -> (R, N): (R, D) @ (D, N), deep K=D contraction,
            # lane-dense N output, no explicit transpose.
            return jnp.dot(bt.astype(jnp.bfloat16), x_bf,
                           preferred_element_type=jnp.float32)

        # coef is kept transposed: Ct = coef^T with shape (R, N).
        xtb0 = btx(bt0)                                 # (R, N)
        # NOTE: INV_T cannot be folded into bt0 because xtb0 is reused as the
        # (unscaled) MU numerator below; the (R, N) scale is one small VPU pass.
        logits = INV_T * xtb0
        m = jnp.max(logits, axis=0, keepdims=True)
        e = jnp.exp(logits - m)
        # one-shot softmax normalization: exact reciprocal (numerics), cheap.
        ct0 = e * pl.reciprocal(jnp.sum(e, axis=0, keepdims=True), approx=False)

        def mu_step(_, carry):
            ct, bt, xtb = carry
            bt_bf = bt.astype(jnp.bfloat16)             # (R, D)
            ct_bf = ct.astype(jnp.bfloat16)             # (R, N)

            # ---- coef update:  Ct <- Ct * (B^T X) / ((B^T B) Ct + eps) ------
            btb = lax.dot_general(bt_bf, bt_bf, (((1,), (1,)), ((), ())),
                                  preferred_element_type=jnp.float32)    # (R, R), K=D
            den_c = jnp.dot(btb.astype(jnp.bfloat16), ct_bf,
                            preferred_element_type=jnp.float32)          # (R, N), K=R
            ct = ct * xtb * pl.reciprocal(den_c + EPS, approx=True)

            # ---- bases update (transposed):
            #      Bt <- Bt * (Ct X^T) / ((Ct Ct^T) Bt + eps) -----------------
            ct_bf = ct.astype(jnp.bfloat16)
            num_b = lax.dot_general(ct_bf, x_bf, (((1,), (1,)), ((), ())),
                                    preferred_element_type=jnp.float32)  # (R, D), K=N
            ctc = lax.dot_general(ct_bf, ct_bf, (((1,), (1,)), ((), ())),
                                  preferred_element_type=jnp.float32)    # (R, R), K=N
            den_b = jnp.dot(ctc.astype(jnp.bfloat16), bt_bf,
                            preferred_element_type=jnp.float32)          # (R, D), K=R
            bt = bt * num_b * pl.reciprocal(den_b + EPS, approx=True)

            # Recompute B^T X with the updated bases - used by the next coef
            # update and, after the last iteration, by compute_coef.
            xtb = btx(bt)
            return ct, bt, xtb

        ct, bt, xtb = lax.fori_loop(0, steps, mu_step, (ct0, bt0, xtb0),
                                    unroll=True)

        # compute_coef: one final coef MU step with the final bases (xtb reused).
        bt_bf = bt.astype(jnp.bfloat16)
        ct_bf = ct.astype(jnp.bfloat16)
        btb = lax.dot_general(bt_bf, bt_bf, (((1,), (1,)), ((), ())),
                              preferred_element_type=jnp.float32)        # (R, R)
        den_c = jnp.dot(btb.astype(jnp.bfloat16), ct_bf,
                        preferred_element_type=jnp.float32)              # (R, N)
        ct = ct * xtb * pl.reciprocal(den_c + EPS, approx=True)

        # reconstruction: B @ coef^T == Bt^T @ Ct -> (D, N), lane-dense N.
        # TODO(synk): on v7x with very large D*N, chunk this over N (or emit
        # bf16 if downstream HamHead ReLU/conv tolerates it) to trim the f32
        # recon temp / out-block VMEM.
        recon = lax.dot_general(bt_bf, ct.astype(jnp.bfloat16),
                                (((0,), (0,)), ((), ())),
                                preferred_element_type=jnp.float32)      # (D, N)
        out_ref[0] = recon.astype(out_ref.dtype)

    return kernel


def _vmem_limit_bytes():
    """Per-generation scoped-VMEM limit with headroom (v7x has only 64 MiB/TC)."""
    try:
        cap = int(pltpu.get_tpu_info().vmem_capacity_bytes)
    except Exception:
        cap = 128 * 1024 * 1024
    # 5/8 of physical: 40 MiB on v7x (64 MiB), 80 MiB on v5e/v6e (128 MiB).
    return int(min(cap * 5 // 8, 80 * 1024 * 1024))


def matrix_decomposition_2d(x, key, *, S=MD_S, R=MD_R, training=True):
    """Forward pass of Matrix_Decomposition_2D_Base (NMF2D, rand_init=True).

    x: (B, C, H, W) NCHW float array (assumed non-negative, as after ReLU in
    HamHead). Returns (B, C, H, W) in x.dtype.
    """
    B, C, H, W = x.shape
    assert C % S == 0
    D = C // S
    N = H * W
    BS = B * S

    # Pure reshape (metadata only) - cast to bf16 happens inside the kernel.
    x_flat = x.reshape(BS, D, N)

    # _build_bases (NMF2D): uniform random, L2-normalized over the D axis.
    # Stored TRANSPOSED as (BS, R, D) so the bases DMA block and all (R, D)
    # intermediates in the kernel are lane-dense in D.
    # TODO(synk): rand_init=False (running-average self.bases buffer) path not
    # implemented; this always draws fresh random bases like rand_init=True.
    bases_t = jax.random.uniform(key, (BS, R, D), dtype=jnp.float32)
    norm = jnp.sqrt(jnp.sum(bases_t * bases_t, axis=2, keepdims=True))
    bases_t = bases_t / jnp.maximum(norm, 1e-12)

    steps = TRAIN_STEPS if training else EVAL_STEPS
    kernel = _make_nmf_kernel(steps)

    # TODO(synk): pack G>=2 independent slabs per grid step (batched matmul
    # chains) to overlap the K=R=64 den_c/recon contractions on v6e/v7x, and
    # to feed both v7x TensorCores when BS is 1 or odd.
    out = pl.pallas_call(
        kernel,
        out_shape=jax.ShapeDtypeStruct((BS, D, N), x.dtype),
        grid=(BS,),
        in_specs=[
            pl.BlockSpec((1, D, N), lambda b: (b, 0, 0)),   # x (f32)
            pl.BlockSpec((1, R, D), lambda b: (b, 0, 0)),   # bases^T (f32)
        ],
        out_specs=pl.BlockSpec((1, D, N), lambda b: (b, 0, 0)),
        compiler_params=pltpu.CompilerParams(
            dimension_semantics=("parallel",),
            vmem_limit_bytes=_vmem_limit_bytes(),
        ),
    )(x_flat, bases_t)

    return out.reshape(B, C, H, W)


if __name__ == "__main__":
    key = jax.random.PRNGKey(0)
    kx, kb = jax.random.split(key)
    # Small, NMF-friendly (non-negative) input: B=2, C=4, H=W=16 -> D=4, N=256
    x = jax.random.uniform(kx, (2, 4, 16, 16), dtype=jnp.float32)
    # Freshly-constructed nn.Module has training=True -> 6 MU steps.
    y = matrix_decomposition_2d(x, kb, training=True)
    jax.block_until_ready(y)
    assert y.shape == x.shape and y.dtype == x.dtype
    print("KERNEL_OK")
</pallas_src>

<mosaic_0001>
module attributes {stable_mosaic.version = 11 : i64} {
  func.func @kernel(%arg0: i32, %arg1: memref<1x4x256xf32, #tpu.memory_space<vmem>>, %arg2: memref<1x64x4xf32, #tpu.memory_space<vmem>>, %arg3: memref<1x4x256xf32, #tpu.memory_space<vmem>>) attributes {dimension_semantics = [#tpu.dimension_semantics<parallel>], iteration_bounds = array<i64: 2>, scalar_prefetch = 0 : i64, scratch_operands = 0 : i64, tpu.core_type = #tpu.core_type<tc>, window_params = [{transform_indices = @transform_0, window_bounds = array<i64: 1, 4, 256>}, {transform_indices = @transform_1, window_bounds = array<i64: 1, 64, 4>}, {transform_indices = @transform_2, window_bounds = array<i64: 1, 4, 256>}]} {
    %c0 = arith.constant 0 : index
    %c0_0 = arith.constant 0 : index
    %c0_1 = arith.constant 0 : index
    %0 = vector.load %arg1[%c0, %c0_0, %c0_1] : memref<1x4x256xf32, #tpu.memory_space<vmem>>, vector<1x4x256xf32>
    %1 = vector.shape_cast %0 : vector<1x4x256xf32> to vector<4x256xf32>
    %2 = arith.truncf %1 : vector<4x256xf32> to vector<4x256xbf16>
    %c0_2 = arith.constant 0 : index
    %c0_3 = arith.constant 0 : index
    %c0_4 = arith.constant 0 : index
    %3 = vector.load %arg2[%c0_2, %c0_3, %c0_4] : memref<1x64x4xf32, #tpu.memory_space<vmem>>, vector<1x64x4xf32>
    %4 = vector.shape_cast %3 : vector<1x64x4xf32> to vector<64x4xf32>
    %5 = arith.truncf %4 : vector<64x4xf32> to vector<64x4xbf16>
    %cst = arith.constant dense<0.000000e+00> : vector<64x256xf32>
    %6 = tpu.matmul %5, %2, %cst {dimension_numbers = #tpu.dot_dimension_numbers<[1], [0], [0], [1], [0, 0, 1, 1], [], []>} : vector<64x4xbf16>, vector<4x256xbf16>, vector<64x256xf32> -> vector<64x256xf32>
    %cst_5 = arith.constant 1.000000e+02 : f32
    %7 = vector.broadcast %cst_5 : f32 to vector<64x256xf32>
    %8 = arith.mulf %7, %6 : vector<64x256xf32>
    %cst_6 = arith.constant dense<0xFF800000> : vector<256xf32>
    %9 = vector.multi_reduction <maximumf>, %8, %cst_6 [0] : vector<64x256xf32> to vector<256xf32>
    %10 = vector.shape_cast %9 : vector<256xf32> to vector<1x256xf32>
    %11 = vector.broadcast %10 : vector<1x256xf32> to vector<64x256xf32>
    %12 = arith.subf %8, %11 : vector<64x256xf32>
    %13 = math.exp %12 : vector<64x256xf32>
    %cst_7 = arith.constant dense<0.000000e+00> : vector<256xf32>
    %14 = vector.multi_reduction <add>, %13, %cst_7 [0] : vector<64x256xf32> to vector<256xf32>
    %15 = vector.shape_cast %14 : vector<256xf32> to vector<1x256xf32>
    %16 = tpu.reciprocal %15 : vector<1x256xf32> -> vector<1x256xf32>
    %17 = vector.broadcast %16 : vector<1x256xf32> to vector<64x256xf32>
    %18 = arith.mulf %13, %17 : vector<64x256xf32>
    %c0_i32 = arith.constant 0 : i32
    %19 = arith.truncf %4 : vector<64x4xf32> to vector<64x4xbf16>
    %20 = arith.truncf %18 : vector<64x256xf32> to vector<64x256xbf16>
    %cst_8 = arith.constant dense<0.000000e+00> : vector<64x64xf32>
    %21 = tpu.matmul %19, %19, %cst_8 {dimension_numbers = #tpu.dot_dimension_numbers<[1], [1], [0], [0], [0, 0, 1, 0], [], []>} : vector<64x4xbf16>, vector<64x4xbf16>, vector<64x64xf32> -> vector<64x64xf32>
    %22 = arith.truncf %21 : vector<64x64xf32> to vector<64x64xbf16>
    %cst_9 = arith.constant dense<0.000000e+00> : vector<64x256xf32>
    %23 = tpu.matmul %22, %20, %cst_9 {dimension_numbers = #tpu.dot_dimension_numbers<[1], [0], [0], [1], [0, 0, 1, 1], [], []>} : vector<64x64xbf16>, vector<64x256xbf16>, vector<64x256xf32> -> vector<64x256xf32>
    %24 = arith.mulf %18, %6 : vector<64x256xf32>
    %cst_10 = arith.constant 9.99999997E-7 : f32
    %25 = vector.broadcast %cst_10 : f32 to vector<64x256xf32>
    %26 = arith.addf %23, %25 : vector<64x256xf32>
    %27 = tpu.reciprocal %26 {approx = true} : vector<64x256xf32> -> vector<64x256xf32>
    %28 = arith.mulf %24, %27 : vector<64x256xf32>
    %29 = arith.truncf %28 : vector<64x256xf32> to vector<64x256xbf16>
    %cst_11 = arith.constant dense<0.000000e+00> : vector<64x4xf32>
    %30 = tpu.matmul %29, %2, %cst_11 {dimension_numbers = #tpu.dot_dimension_numbers<[1], [1], [0], [0], [0, 0, 1, 0], [], []>} : vector<64x256xbf16>, vector<4x256xbf16>, vector<64x4xf32> -> vector<64x4xf32>
    %cst_12 = arith.constant dense<0.000000e+00> : vector<64x64xf32>
    %31 = tpu.matmul %29, %29, %cst_12 {dimension_numbers = #tpu.dot_dimension_numbers<[1], [1], [0], [0], [0, 0, 1, 0], [], []>} : vector<64x256xbf16>, vector<64x256xbf16>, vector<64x64xf32> -> vector<64x64xf32>
    %32 = arith.truncf %31 : vector<64x64xf32> to vector<64x64xbf16>
    %cst_13 = arith.constant dense<0.000000e+00> : vector<64x4xf32>
    %33 = tpu.matmul %32, %19, %cst_13 {dimension_numbers = #tpu.dot_dimension_numbers<[1], [0], [0], [1], [0, 0, 1, 1], [], []>} : vector<64x64xbf16>, vector<64x4xbf16>, vector<64x4xf32> -> vector<64x4xf32>
    %34 = arith.mulf %4, %30 : vector<64x4xf32>
    %cst_14 = arith.constant 9.99999997E-7 : f32
    %35 = vector.broadcast %cst_14 : f32 to vector<64x4xf32>
    %36 = arith.addf %33, %35 : vector<64x4xf32>
    %37 = tpu.reciprocal %36 {approx = true} : vector<64x4xf32> -> vector<64x4xf32>
    %38 = arith.mulf %34, %37 : vector<64x4xf32>
    %39 = arith.truncf %38 : vector<64x4xf32> to vector<64x4xbf16>
    %cst_15 = arith.constant dense<0.000000e+00> : vector<64x256xf32>
    %40 = tpu.matmul %39, %2, %cst_15 {dimension_numbers = #tpu.dot_dimension_numbers<[1], [0], [0], [1], [0, 0, 1, 1], [], []>} : vector<64x4xbf16>, vector<4x256xbf16>, vector<64x256xf32> -> vector<64x256xf32>
    %c1_i32 = arith.constant 1 : i32
    %41 = arith.truncf %38 : vector<64x4xf32> to vector<64x4xbf16>
    %42 = arith.truncf %28 : vector<64x256xf32> to vector<64x256xbf16>
    %cst_16 = arith.constant dense<0.000000e+00> : vector<64x64xf32>
    %43 = tpu.matmul %41, %41, %cst_16 {dimension_numbers = #tpu.dot_dimension_numbers<[1], [1], [0], [0], [0, 0, 1, 0], [], []>} : vector<64x4xbf16>, vector<64x4xbf16>, vector<64x64xf32> -> vector<64x64xf32>
    %44 = arith.truncf %43 : vector<64x64xf32> to vector<64x64xbf16>
    %cst_17 = arith.constant dense<0.000000e+00> : vector<64x256xf32>
    %45 = tpu.matmul %44, %42, %cst_17 {dimension_numbers = #tpu.dot_dimension_numbers<[1], [0], [0], [1], [0, 0, 1, 1], [], []>} : vector<64x64xbf16>, vector<64x256xbf16>, vector<64x256xf32> -> vector<64x256xf32>
    %46 = arith.mulf %28, %40 : vector<64x256xf32>
    %cst_18 = arith.constant 9.99999997E-7 : f32
    %47 = vector.broadcast %cst_18 : f32 to vector<64x256xf32>
    %48 = arith.addf %45, %47 : vector<64x256xf32>
    %49 = tpu.reciprocal %48 {approx = true} : vector<64x256xf32> -> vector<64x256xf32>
    %50 = arith.mulf %46, %49 : vector<64x256xf32>
    %51 = arith.truncf %50 : vector<64x256xf32> to vector<64x256xbf16>
    %cst_19 = arith.constant dense<0.000000e+00> : vector<64x4xf32>
    %52 = tpu.matmul %51, %2, %cst_19 {dimension_numbers = #tpu.dot_dimension_numbers<[1], [1], [0], [0], [0, 0, 1, 0], [], []>} : vector<64x256xbf16>, vector<4x256xbf16>, vector<64x4xf32> -> vector<64x4xf32>
    %cst_20 = arith.constant dense<0.000000e+00> : vector<64x64xf32>
    %53 = tpu.matmul %51, %51, %cst_20 {dimension_numbers = #tpu.dot_dimension_numbers<[1], [1], [0], [0], [0, 0, 1, 0], [], []>} : vector<64x256xbf16>, vector<64x256xbf16>, vector<64x64xf32> -> vector<64x64xf32>
    %54 = arith.truncf %53 : vector<64x64xf32> to vector<64x64xbf16>
    %cst_21 = arith.constant dense<0.000000e+00> : vector<64x4xf32>
    %55 = tpu.matmul %54, %41, %cst_21 {dimension_numbers = #tpu.dot_dimension_numbers<[1], [0], [0], [1], [0, 0, 1, 1], [], []>} : vector<64x64xbf16>, vector<64x4xbf16>, vector<64x4xf32> -> vector<64x4xf32>
    %56 = arith.mulf %38, %52 : vector<64x4xf32>
    %cst_22 = arith.constant 9.99999997E-7 : f32
    %57 = vector.broadcast %cst_22 : f32 to vector<64x4xf32>
    %58 = arith.addf %55, %57 : vector<64x4xf32>
    %59 = tpu.reciprocal %58 {approx = true} : vector<64x4xf32> -> vector<64x4xf32>
    %60 = arith.mulf %56, %59 : vector<64x4xf32>
    %61 = arith.truncf %60 : vector<64x4xf32> to vector<64x4xbf16>
    %cst_23 = arith.constant dense<0.000000e+00> : vector<64x256xf32>
    %62 = tpu.matmul %61, %2, %cst_23 {dimension_numbers = #tpu.dot_dimension_numbers<[1], [0], [0], [1], [0, 0, 1, 1], [], []>} : vector<64x4xbf16>, vector<4x256xbf16>, vector<64x256xf32> -> vector<64x256xf32>
    %c2_i32 = arith.constant 2 : i32
    %63 = arith.truncf %60 : vector<64x4xf32> to vector<64x4xbf16>
    %64 = arith.truncf %50 : vector<64x256xf32> to vector<64x256xbf16>
    %cst_24 = arith.constant dense<0.000000e+00> : vector<64x64xf32>
    %65 = tpu.matmul %63, %63, %cst_24 {dimension_numbers = #tpu.dot_dimension_numbers<[1], [1], [0], [0], [0, 0, 1, 0], [], []>} : vector<64x4xbf16>, vector<64x4xbf16>, vector<64x64xf32> -> vector<64x64xf32>
    %66 = arith.truncf %65 : vector<64x64xf32> to vector<64x64xbf16>
    %cst_25 = arith.constant dense<0.000000e+00> : vector<64x256xf32>
    %67 = tpu.matmul %66, %64, %cst_25 {dimension_numbers = #tpu.dot_dimension_numbers<[1], [0], [0], [1], [0, 0, 1, 1], [], []>} : vector<64x64xbf16>, vector<64x256xbf16>, vector<64x256xf32> -> vector<64x256xf32>
    %68 = arith.mulf %50, %62 : vector<64x256xf32>
    %cst_26 = arith.constant 9.99999997E-7 : f32
    %69 = vector.broadcast %cst_26 : f32 to vector<64x256xf32>
    %70 = arith.addf %67, %69 : vector<64x256xf32>
    %71 = tpu.reciprocal %70 {approx = true} : vector<64x256xf32> -> vector<64x256xf32>
    %72 = arith.mulf %68, %71 : vector<64x256xf32>
    %73 = arith.truncf %72 : vector<64x256xf32> to vector<64x256xbf16>
    %cst_27 = arith.constant dense<0.000000e+00> : vector<64x4xf32>
    %74 = tpu.matmul %73, %2, %cst_27 {dimension_numbers = #tpu.dot_dimension_numbers<[1], [1], [0], [0], [0, 0, 1, 0], [], []>} : vector<64x256xbf16>, vector<4x256xbf16>, vector<64x4xf32> -> vector<64x4xf32>
    %cst_28 = arith.constant dense<0.000000e+00> : vector<64x64xf32>
    %75 = tpu.matmul %73, %73, %cst_28 {dimension_numbers = #tpu.dot_dimension_numbers<[1], [1], [0], [0], [0, 0, 1, 0], [], []>} : vector<64x256xbf16>, vector<64x256xbf16>, vector<64x64xf32> -> vector<64x64xf32>
    %76 = arith.truncf %75 : vector<64x64xf32> to vector<64x64xbf16>
    %cst_29 = arith.constant dense<0.000000e+00> : vector<64x4xf32>
    %77 = tpu.matmul %76, %63, %cst_29 {dimension_numbers = #tpu.dot_dimension_numbers<[1], [0], [0], [1], [0, 0, 1, 1], [], []>} : vector<64x64xbf16>, vector<64x4xbf16>, vector<64x4xf32> -> vector<64x4xf32>
    %78 = arith.mulf %60, %74 : vector<64x4xf32>
    %cst_30 = arith.constant 9.99999997E-7 : f32
    %79 = vector.broadcast %cst_30 : f32 to vector<64x4xf32>
    %80 = arith.addf %77, %79 : vector<64x4xf32>
    %81 = tpu.reciprocal %80 {approx = true} : vector<64x4xf32> -> vector<64x4xf32>
    %82 = arith.mulf %78, %81 : vector<64x4xf32>
    %83 = arith.truncf %82 : vector<64x4xf32> to vector<64x4xbf16>
    %cst_31 = arith.constant dense<0.000000e+00> : vector<64x256xf32>
    %84 = tpu.matmul %83, %2, %cst_31 {dimension_numbers = #tpu.dot_dimension_numbers<[1], [0], [0], [1], [0, 0, 1, 1], [], []>} : vector<64x4xbf16>, vector<4x256xbf16>, vector<64x256xf32> -> vector<64x256xf32>
    %c3_i32 = arith.constant 3 : i32
    %85 = arith.truncf %82 : vector<64x4xf32> to vector<64x4xbf16>
    %86 = arith.truncf %72 : vector<64x256xf32> to vector<64x256xbf16>
    %cst_32 = arith.constant dense<0.000000e+00> : vector<64x64xf32>
    %87 = tpu.matmul %85, %85, %cst_32 {dimension_numbers = #tpu.dot_dimension_numbers<[1], [1], [0], [0], [0, 0, 1, 0], [], []>} : vector<64x4xbf16>, vector<64x4xbf16>, vector<64x64xf32> -> vector<64x64xf32>
    %88 = arith.truncf %87 : vector<64x64xf32> to vector<64x64xbf16>
    %cst_33 = arith.constant dense<0.000000e+00> : vector<64x256xf32>
    %89 = tpu.matmul %88, %86, %cst_33 {dimension_numbers = #tpu.dot_dimension_numbers<[1], [0], [0], [1], [0, 0, 1, 1], [], []>} : vector<64x64xbf16>, vector<64x256xbf16>, vector<64x256xf32> -> vector<64x256xf32>
    %90 = arith.mulf %72, %84 : vector<64x256xf32>
    %cst_34 = arith.constant 9.99999997E-7 : f32
    %91 = vector.broadcast %cst_34 : f32 to vector<64x256xf32>
    %92 = arith.addf %89, %91 : vector<64x256xf32>
    %93 = tpu.reciprocal %92 {approx = true} : vector<64x256xf32> -> vector<64x256xf32>
    %94 = arith.mulf %90, %93 : vector<64x256xf32>
    %95 = arith.truncf %94 : vector<64x256xf32> to vector<64x256xbf16>
    %cst_35 = arith.constant dense<0.000000e+00> : vector<64x4xf32>
    %96 = tpu.matmul %95, %2, %cst_35 {dimension_numbers = #tpu.dot_dimension_numbers<[1], [1], [0], [0], [0, 0, 1, 0], [], []>} : vector<64x256xbf16>, vector<4x256xbf16>, vector<64x4xf32> -> vector<64x4xf32>
    %cst_36 = arith.constant dense<0.000000e+00> : vector<64x64xf32>
    %97 = tpu.matmul %95, %95, %cst_36 {dimension_numbers = #tpu.dot_dimension_numbers<[1], [1], [0], [0], [0, 0, 1, 0], [], []>} : vector<64x256xbf16>, vector<64x256xbf16>, vector<64x64xf32> -> vector<64x64xf32>
    %98 = arith.truncf %97 : vector<64x64xf32> to vector<64x64xbf16>
    %cst_37 = arith.constant dense<0.000000e+00> : vector<64x4xf32>
    %99 = tpu.matmul %98, %85, %cst_37 {dimension_numbers = #tpu.dot_dimension_numbers<[1], [0], [0], [1], [0, 0, 1, 1], [], []>} : vector<64x64xbf16>, vector<64x4xbf16>, vector<64x4xf32> -> vector<64x4xf32>
    %100 = arith.mulf %82, %96 : vector<64x4xf32>
    %cst_38 = arith.constant 9.99999997E-7 : f32
    %101 = vector.broadcast %cst_38 : f32 to vector<64x4xf32>
    %102 = arith.addf %99, %101 : vector<64x4xf32>
    %103 = tpu.reciprocal %102 {approx = true} : vector<64x4xf32> -> vector<64x4xf32>
    %104 = arith.mulf %100, %103 : vector<64x4xf32>
    %105 = arith.truncf %104 : vector<64x4xf32> to vector<64x4xbf16>
    %cst_39 = arith.constant dense<0.000000e+00> : vector<64x256xf32>
    %106 = tpu.matmul %105, %2, %cst_39 {dimension_numbers = #tpu.dot_dimension_numbers<[1], [0], [0], [1], [0, 0, 1, 1], [], []>} : vector<64x4xbf16>, vector<4x256xbf16>, vector<64x256xf32> -> vector<64x256xf32>
    %c4_i32 = arith.constant 4 : i32
    %107 = arith.truncf %104 : vector<64x4xf32> to vector<64x4xbf16>
    %108 = arith.truncf %94 : vector<64x256xf32> to vector<64x256xbf16>
    %cst_40 = arith.constant dense<0.000000e+00> : vector<64x64xf32>
    %109 = tpu.matmul %107, %107, %cst_40 {dimension_numbers = #tpu.dot_dimension_numbers<[1], [1], [0], [0], [0, 0, 1, 0], [], []>} : vector<64x4xbf16>, vector<64x4xbf16>, vector<64x64xf32> -> vector<64x64xf32>
    %110 = arith.truncf %109 : vector<64x64xf32> to vector<64x64xbf16>
    %cst_41 = arith.constant dense<0.000000e+00> : vector<64x256xf32>
    %111 = tpu.matmul %110, %108, %cst_41 {dimension_numbers = #tpu.dot_dimension_numbers<[1], [0], [0], [1], [0, 0, 1, 1], [], []>} : vector<64x64xbf16>, vector<64x256xbf16>, vector<64x256xf32> -> vector<64x256xf32>
    %112 = arith.mulf %94, %106 : vector<64x256xf32>
    %cst_42 = arith.constant 9.99999997E-7 : f32
    %113 = vector.broadcast %cst_42 : f32 to vector<64x256xf32>
    %114 = arith.addf %111, %113 : vector<64x256xf32>
    %115 = tpu.reciprocal %114 {approx = true} : vector<64x256xf32> -> vector<64x256xf32>
    %116 = arith.mulf %112, %115 : vector<64x256xf32>
    %117 = arith.truncf %116 : vector<64x256xf32> to vector<64x256xbf16>
    %cst_43 = arith.constant dense<0.000000e+00> : vector<64x4xf32>
    %118 = tpu.matmul %117, %2, %cst_43 {dimension_numbers = #tpu.dot_dimension_numbers<[1], [1], [0], [0], [0, 0, 1, 0], [], []>} : vector<64x256xbf16>, vector<4x256xbf16>, vector<64x4xf32> -> vector<64x4xf32>
    %cst_44 = arith.constant dense<0.000000e+00> : vector<64x64xf32>
    %119 = tpu.matmul %117, %117, %cst_44 {dimension_numbers = #tpu.dot_dimension_numbers<[1], [1], [0], [0], [0, 0, 1, 0], [], []>} : vector<64x256xbf16>, vector<64x256xbf16>, vector<64x64xf32> -> vector<64x64xf32>
    %120 = arith.truncf %119 : vector<64x64xf32> to vector<64x64xbf16>
    %cst_45 = arith.constant dense<0.000000e+00> : vector<64x4xf32>
    %121 = tpu.matmul %120, %107, %cst_45 {dimension_numbers = #tpu.dot_dimension_numbers<[1], [0], [0], [1], [0, 0, 1, 1], [], []>} : vector<64x64xbf16>, vector<64x4xbf16>, vector<64x4xf32> -> vector<64x4xf32>
    %122 = arith.mulf %104, %118 : vector<64x4xf32>
    %cst_46 = arith.constant 9.99999997E-7 : f32
    %123 = vector.broadcast %cst_46 : f32 to vector<64x4xf32>
    %124 = arith.addf %121, %123 : vector<64x4xf32>
    %125 = tpu.reciprocal %124 {approx = true} : vector<64x4xf32> -> vector<64x4xf32>
    %126 = arith.mulf %122, %125 : vector<64x4xf32>
    %127 = arith.truncf %126 : vector<64x4xf32> to vector<64x4xbf16>
    %cst_47 = arith.constant dense<0.000000e+00> : vector<64x256xf32>
    %128 = tpu.matmul %127, %2, %cst_47 {dimension_numbers = #tpu.dot_dimension_numbers<[1], [0], [0], [1], [0, 0, 1, 1], [], []>} : vector<64x4xbf16>, vector<4x256xbf16>, vector<64x256xf32> -> vector<64x256xf32>
    %c5_i32 = arith.constant 5 : i32
    %129 = arith.truncf %126 : vector<64x4xf32> to vector<64x4xbf16>
    %130 = arith.truncf %116 : vector<64x256xf32> to vector<64x256xbf16>
    %cst_48 = arith.constant dense<0.000000e+00> : vector<64x64xf32>
    %131 = tpu.matmul %129, %129, %cst_48 {dimension_numbers = #tpu.dot_dimension_numbers<[1], [1], [0], [0], [0, 0, 1, 0], [], []>} : vector<64x4xbf16>, vector<64x4xbf16>, vector<64x64xf32> -> vector<64x64xf32>
    %132 = arith.truncf %131 : vector<64x64xf32> to vector<64x64xbf16>
    %cst_49 = arith.constant dense<0.000000e+00> : vector<64x256xf32>
    %133 = tpu.matmul %132, %130, %cst_49 {dimension_numbers = #tpu.dot_dimension_numbers<[1], [0], [0], [1], [0, 0, 1, 1], [], []>} : vector<64x64xbf16>, vector<64x256xbf16>, vector<64x256xf32> -> vector<64x256xf32>
    %134 = arith.mulf %116, %128 : vector<64x256xf32>
    %cst_50 = arith.constant 9.99999997E-7 : f32
    %135 = vector.broadcast %cst_50 : f32 to vector<64x256xf32>
    %136 = arith.addf %133, %135 : vector<64x256xf32>
    %137 = tpu.reciprocal %136 {approx = true} : vector<64x256xf32> -> vector<64x256xf32>
    %138 = arith.mulf %134, %137 : vector<64x256xf32>
    %139 = arith.truncf %138 : vector<64x256xf32> to vector<64x256xbf16>
    %cst_51 = arith.constant dense<0.000000e+00> : vector<64x4xf32>
    %140 = tpu.matmul %139, %2, %cst_51 {dimension_numbers = #tpu.dot_dimension_numbers<[1], [1], [0], [0], [0, 0, 1, 0], [], []>} : vector<64x256xbf16>, vector<4x256xbf16>, vector<64x4xf32> -> vector<64x4xf32>
    %cst_52 = arith.constant dense<0.000000e+00> : vector<64x64xf32>
    %141 = tpu.matmul %139, %139, %cst_52 {dimension_numbers = #tpu.dot_dimension_numbers<[1], [1], [0], [0], [0, 0, 1, 0], [], []>} : vector<64x256xbf16>, vector<64x256xbf16>, vector<64x64xf32> -> vector<64x64xf32>
    %142 = arith.truncf %141 : vector<64x64xf32> to vector<64x64xbf16>
    %cst_53 = arith.constant dense<0.000000e+00> : vector<64x4xf32>
    %143 = tpu.matmul %142, %129, %cst_53 {dimension_numbers = #tpu.dot_dimension_numbers<[1], [0], [0], [1], [0, 0, 1, 1], [], []>} : vector<64x64xbf16>, vector<64x4xbf16>, vector<64x4xf32> -> vector<64x4xf32>
    %144 = arith.mulf %126, %140 : vector<64x4xf32>
    %cst_54 = arith.constant 9.99999997E-7 : f32
    %145 = vector.broadcast %cst_54 : f32 to vector<64x4xf32>
    %146 = arith.addf %143, %145 : vector<64x4xf32>
    %147 = tpu.reciprocal %146 {approx = true} : vector<64x4xf32> -> vector<64x4xf32>
    %148 = arith.mulf %144, %147 : vector<64x4xf32>
    %149 = arith.truncf %148 : vector<64x4xf32> to vector<64x4xbf16>
    %cst_55 = arith.constant dense<0.000000e+00> : vector<64x256xf32>
    %150 = tpu.matmul %149, %2, %cst_55 {dimension_numbers = #tpu.dot_dimension_numbers<[1], [0], [0], [1], [0, 0, 1, 1], [], []>} : vector<64x4xbf16>, vector<4x256xbf16>, vector<64x256xf32> -> vector<64x256xf32>
    %151 = arith.truncf %148 : vector<64x4xf32> to vector<64x4xbf16>
    %152 = arith.truncf %138 : vector<64x256xf32> to vector<64x256xbf16>
    %cst_56 = arith.constant dense<0.000000e+00> : vector<64x64xf32>
    %153 = tpu.matmul %151, %151, %cst_56 {dimension_numbers = #tpu.dot_dimension_numbers<[1], [1], [0], [0], [0, 0, 1, 0], [], []>} : vector<64x4xbf16>, vector<64x4xbf16>, vector<64x64xf32> -> vector<64x64xf32>
    %154 = arith.truncf %153 : vector<64x64xf32> to vector<64x64xbf16>
    %cst_57 = arith.constant dense<0.000000e+00> : vector<64x256xf32>
    %155 = tpu.matmul %154, %152, %cst_57 {dimension_numbers = #tpu.dot_dimension_numbers<[1], [0], [0], [1], [0, 0, 1, 1], [], []>} : vector<64x64xbf16>, vector<64x256xbf16>, vector<64x256xf32> -> vector<64x256xf32>
    %156 = arith.mulf %138, %150 : vector<64x256xf32>
    %cst_58 = arith.constant 9.99999997E-7 : f32
    %157 = vector.broadcast %cst_58 : f32 to vector<64x256xf32>
    %158 = arith.addf %155, %157 : vector<64x256xf32>
    %159 = tpu.reciprocal %158 {approx = true} : vector<64x256xf32> -> vector<64x256xf32>
    %160 = arith.mulf %156, %159 : vector<64x256xf32>
    %161 = arith.truncf %160 : vector<64x256xf32> to vector<64x256xbf16>
    %cst_59 = arith.constant dense<0.000000e+00> : vector<4x256xf32>
    %162 = tpu.matmul %151, %161, %cst_59 {dimension_numbers = #tpu.dot_dimension_numbers<[0], [0], [1], [1], [0, 1, 1, 1], [], []>} : vector<64x4xbf16>, vector<64x256xbf16>, vector<4x256xf32> -> vector<4x256xf32>
    %c0_60 = arith.constant 0 : index
    %c0_61 = arith.constant 0 : index
    %c0_62 = arith.constant 0 : index
    %163 = vector.load %arg3[%c0_60, %c0_61, %c0_62] : memref<1x4x256xf32, #tpu.memory_space<vmem>>, vector<1x4x256xf32>
    %164 = vector.shape_cast %163 : vector<1x4x256xf32> to vector<4x256xf32>
    %165 = vector.shape_cast %162 : vector<4x256xf32> to vector<1x4x256xf32>
    tpu.vector_store %arg3[%c0_60, %c0_61, %c0_62], %165 {strides = array<i32>} : memref<1x4x256xf32, #tpu.memory_space<vmem>>, vector<1x4x256xf32>,
    return
  }
  func.func @transform_0(%arg0: i32) -> (i32, i32, i32) {
    %c0_i32 = arith.constant 0 : i32
    %c0_i32_0 = arith.constant 0 : i32
    %c0_i32_1 = arith.constant 0 : i32
    return %arg0, %c0_i32, %c0_i32_0 : i32, i32, i32
  }
  func.func @transform_1(%arg0: i32) -> (i32, i32, i32) {
    %c0_i32 = arith.constant 0 : i32
    %c0_i32_0 = arith.constant 0 : i32
    %c0_i32_1 = arith.constant 0 : i32
    return %arg0, %c0_i32, %c0_i32_0 : i32, i32, i32
  }
  func.func @transform_2(%arg0: i32) -> (i32, i32, i32) {
    %c0_i32 = arith.constant 0 : i32
    %c0_i32_0 = arith.constant 0 : i32
    %c0_i32_1 = arith.constant 0 : i32
    return %arg0, %c0_i32, %c0_i32_0 : i32, i32, i32
  }
}

</mosaic_0001>

<llo_original>
// kernel: tpu_custom_call.1
$region0: #{tpu_custom_call.1}
  #allocation0 [shape = 'u32[]', space=smem, size = 0x4, offset = 0x4, fixed_abs, tag = 'smem constant byte address 0x4 - core index']
  #allocation1 [shape = 'u32[144,128]{1,0:T(1,128)}', space=vmem, size = 0x12000, scoped, tag = 'internal scratch']
  %s0 = inlined_call_operand.hbm [shape: f32[2,4,256], index: 0, kind: input, shape index: {}]
  %s1 = inlined_call_operand.hbm [shape: f32[2,64,4], index: 1, kind: input, shape index: {}]
  %s2 = inlined_call_operand.hbm [shape: f32[2,4,256], index: 2, kind: output, shape index: {}]
  %s3 = sld [smem:[#allocation0]]
  $region49: #{tpu_custom_call.1} parent=0
    _
  %s5 = ssub.s32 1, %s3
  %s6 = scalar_select 0, %s5, %s3
  $region1: #{tpu_custom_call.1} parent=0
    #allocation2 [shape = 'u8[8192]{0}', space=vmem, size = 0x2000, scoped, tag = 'input window, operand 0']
    #allocation3 [shape = 's32[2]{0}', space=sflag, size = 0x8, scoped, tag = 'scoped memory for tpu_custom_call.1']
    #allocation4 [shape = 's32[2]{0}', space=sflag, size = 0x8, scoped, tag = 'scoped memory for tpu_custom_call.1']
    #allocation5 [shape = 'u8[65536]{0}', space=vmem, size = 0x10000, scoped, tag = 'input window, operand 1']
    #allocation6 [shape = 's32[2]{0}', space=sflag, size = 0x8, scoped, tag = 'scoped memory for tpu_custom_call.1']
    #allocation7 [shape = 'u8[8192]{0}', space=vmem, size = 0x2000, scoped, tag = 'output window, operand 0']
    %7 = vsyncpa [#allocation3], 0
    %s8 = scalar_lea.sflag [#allocation3], 1
    %9 = vsyncpa %s8, 0
    %10 = vsyncpa [#allocation6], 0
    %s11 = scalar_lea.sflag [#allocation6], 1
    %12 = vsyncpa %s11, 0
    %13 = vsyncpa [#allocation4], 0
    %s14 = scalar_lea.sflag [#allocation4], 1
    %15 = vsyncpa %s14, 0
    loop: start=0, step=1, limit=4
    $region2: #{tpu_custom_call.1} parent=1 // loop_pre_header
      _
    $region3: #{tpu_custom_call.1} parent=1 // loop_header
      %s17 = sphi 0, %s21
      %p18 = scmp.ge.s32.totalorder %s17, 4
      %s27 = sphi 0, %s29
      %s30 = sphi 0, %s27
      %s31 = sphi 0, %s30
      %s47 = sphi 0, %s31
      %s53 = sphi 0, %s55
      %s56 = sphi 0, %s53
      %s57 = sphi 0, %s56
      %s73 = sphi 0, %s57
      %s79 = sphi 0, %s81
      %s82 = sphi 0, %s79
      %s83 = sphi 0, %s82
      %s99 = sphi 0, %s83
    $region4: #{tpu_custom_call.1} parent=1 // loop_header_branch
      %20 = sbr.rel (%p18) target = $region8
    $region5: #{tpu_custom_call.1} parent=1 // loop_body
      %s22 = ssub.s32 %s17, 1
      %s23 = ssub.s32 %s17, 2
      %s24 = sadd.s32 %s17, 1
      %s25 = ssub.s32 %s17, %s24
      %p26 = scmp.eq.s32.totalorder %s25, 0
      %s28 = sadd.s32 %s27, 1
      %s29 = scalar_select %p26, %s27, %s28
      %p32 = pneg %p26
      %p33 = scmp.eq.s32.totalorder %s17, 1
      %p34 = por %p32, %p33
      %p35 = scmp.ne.s32.totalorder %s27, %s30
      %p36 = scmp.eq.s32.totalorder %s17, 0
      %p37 = por %p35, %p36
      %p38 = scmp.ne.s32.totalorder %s27, %s30
      %p39 = scmp.eq.s32.totalorder %s22, 1
      %p40 = por %p38, %p39
      %p41 = scmp.ne.s32.totalorder %s30, %s31
      %p42 = scmp.eq.s32.totalorder %s22, 0
      %p43 = por %p41, %p42
      %p44 = scmp.ne.s32.totalorder %s30, %s31
      %p45 = scmp.eq.s32.totalorder %s23, 1
      %p46 = por %p44, %p45
      %p48 = scmp.ne.s32.totalorder %s31, %s47
      %p49 = scmp.eq.s32.totalorder %s23, 0
      %p50 = por %p48, %p49
      %s51 = ssub.s32 %s17, %s24
      %p52 = scmp.eq.s32.totalorder %s51, 0
      %s54 = sadd.s32 %s53, 1
      %s55 = scalar_select %p52, %s53, %s54
      %p58 = pneg %p52
      %p59 = scmp.eq.s32.totalorder %s17, 1
      %p60 = por %p58, %p59
      %p61 = scmp.ne.s32.totalorder %s53, %s56
      %p62 = scmp.eq.s32.totalorder %s17, 0
      %p63 = por %p61, %p62
      %p64 = scmp.ne.s32.totalorder %s53, %s56
      %p65 = scmp.eq.s32.totalorder %s22, 1
      %p66 = por %p64, %p65
      %p67 = scmp.ne.s32.totalorder %s56, %s57
      %p68 = scmp.eq.s32.totalorder %s22, 0
      %p69 = por %p67, %p68
      %p70 = scmp.ne.s32.totalorder %s56, %s57
      %p71 = scmp.eq.s32.totalorder %s23, 1
      %p72 = por %p70, %p71
      %p74 = scmp.ne.s32.totalorder %s57, %s73
      %p75 = scmp.eq.s32.totalorder %s23, 0
      %p76 = por %p74, %p75
      %s77 = ssub.s32 %s17, %s24
      %p78 = scmp.eq.s32.totalorder %s77, 0
      %s80 = sadd.s32 %s79, 1
      %s81 = scalar_select %p78, %s79, %s80
      %p84 = pneg %p78
      %p85 = scmp.eq.s32.totalorder %s17, 1
      %p86 = por %p84, %p85
      %p87 = scmp.ne.s32.totalorder %s79, %s82
      %p88 = scmp.eq.s32.totalorder %s17, 0
      %p89 = por %p87, %p88
      %p90 = scmp.ne.s32.totalorder %s79, %s82
      %p91 = scmp.eq.s32.totalorder %s22, 1
      %p92 = por %p90, %p91
      %p93 = scmp.ne.s32.totalorder %s82, %s83
      %p94 = scmp.eq.s32.totalorder %s22, 0
      %p95 = por %p93, %p94
      %p96 = scmp.ne.s32.totalorder %s82, %s83
      %p97 = scmp.eq.s32.totalorder %s23, 1
      %p98 = por %p96, %p97
      %p100 = scmp.ne.s32.totalorder %s83, %s99
      %p101 = scmp.eq.s32.totalorder %s23, 0
      %p102 = por %p100, %p101
      %p103 = scmp.le.s32.totalorder 1, %s17
      %p104 = scmp.lt.s32.totalorder %s17, 3
      %p105 = pnand %p103, %p104
      %p106 = pneg %p105
      // Predicated region
      $region9: #{tpu_custom_call.1} parent=5 // pred_check
        _
      $region10: #{tpu_custom_call.1} parent=5 // pred_check_branch
        %108 = sbr.rel (%p105) target = $region12
      $region11: #{tpu_custom_call.1} parent=5 // pred_region
        %s109 = ssub.s32 %s17, 1
      $region12: #{tpu_custom_call.1} parent=5 // pred_fallthru
        _
      %p110 = scmp.lt.s32.totalorder %s17, 2
      // Predicated region
      $region13: #{tpu_custom_call.1} parent=5 // pred_check
        %p111 = pneg %p110
      $region14: #{tpu_custom_call.1} parent=5 // pred_check_branch
        %113 = sbr.rel (%p111) target = $region16
      $region15: #{tpu_custom_call.1} parent=5 // pred_region
        // Predicated region
        $region17: #{tpu_custom_call.1} parent=15 // pred_check
          %p114 = pneg %p37
        $region18: #{tpu_custom_call.1} parent=15 // pred_check_branch
          %116 = sbr.rel (%p114) target = $region20
        $region19: #{tpu_custom_call.1} parent=15 // pred_region
          %s117 = sand.u32 %s27, 1
          %s118 = scalar_lea.sflag [#allocation3], %s117
          %s119 = sand.u32 %s27, 1
          %s120 = smul.addr %s119, 8
          %s121 = scalar_lea.vmem [#allocation2], %s120
          %s123 = ssub.s32 128, 128
          %124 = vsyncadd %s118, %s123
          %s125 = smul.addr %s17, 2
          %s126 = smul.addr %s125, 64
          %s127 = scalar_lea.hbm %s0, %s126
          %s129 = sshll.u32 %s121, 4
          %s130 = int_to_ptr.vmem [resolvable:$true] %s129
          %132 = dma.hbm_to_vmem [thread:$0]  %s127, 128, %s130, %s118
        $region20: #{tpu_custom_call.1} parent=15 // pred_fallthru
          _
        // Predicated region
        $region21: #{tpu_custom_call.1} parent=15 // pred_check
          %p133 = pneg %p63
        $region22: #{tpu_custom_call.1} parent=15 // pred_check_branch
          %135 = sbr.rel (%p133) target = $region24
        $region23: #{tpu_custom_call.1} parent=15 // pred_region
          %s136 = sand.u32 %s53, 1
          %s137 = scalar_lea.sflag [#allocation6], %s136
          %s138 = sand.u32 %s53, 1
          %s139 = smul.addr %s138, 64
          %s140 = scalar_lea.vmem [#allocation5], %s139
          %s142 = ssub.s32 1024, 1024
          %143 = vsyncadd %s137, %s142
          %s144 = smul.addr %s17, 8
          %s145 = smul.addr %s144, 128
          %s146 = scalar_lea.hbm %s1, %s145
          %s147 = sshll.u32 %s140, 4
          %s148 = int_to_ptr.vmem [resolvable:$true] %s147
          %153 = dma.hbm_to_vmem [thread:$0]  %s146, 1024, %s148, %s137, 128, 128, 8
        $region24: #{tpu_custom_call.1} parent=15 // pred_fallthru
          _
      $region16: #{tpu_custom_call.1} parent=5 // pred_fallthru
        _
      %p154 = scmp.le.s32.totalorder 1, %s17
      %p155 = scmp.lt.s32.totalorder %s17, 3
      %p156 = pnand %p154, %p155
      %p157 = pneg %p156
      // Predicated region
      $region25: #{tpu_custom_call.1} parent=5 // pred_check
        _
      $region26: #{tpu_custom_call.1} parent=5 // pred_check_branch
        %159 = sbr.rel (%p156) target = $region28
      $region27: #{tpu_custom_call.1} parent=5 // pred_region
        %s160 = ssub.s32 %s17, 1
        %s161 = sand.u32 %s30, 1
        %s162 = scalar_lea.sflag [#allocation3], %s161
        %s163 = sand.u32 %s30, 1
        %s164 = smul.addr %s163, 8
        %s165 = scalar_lea.vmem [#allocation2], %s164
        // Predicated region
        $region29: #{tpu_custom_call.1} parent=27 // pred_check
          %p166 = pneg %p43
        $region30: #{tpu_custom_call.1} parent=27 // pred_check_branch
          %168 = sbr.rel (%p166) target = $region32
        $region31: #{tpu_custom_call.1} parent=27 // pred_region
          %169 = dma.done %s162, 128
        $region32: #{tpu_custom_call.1} parent=27 // pred_fallthru
          _
        %s170 = sand.u32 %s56, 1
        %s171 = scalar_lea.sflag [#allocation6], %s170
        %s172 = sand.u32 %s56, 1
        %s173 = smul.addr %s172, 64
        %s174 = scalar_lea.vmem [#allocation5], %s173
        // Predicated region
        $region33: #{tpu_custom_call.1} parent=27 // pred_check
          %p175 = pneg %p69
        $region34: #{tpu_custom_call.1} parent=27 // pred_check_branch
          %177 = sbr.rel (%p175) target = $region36
        $region35: #{tpu_custom_call.1} parent=27 // pred_region
          %178 = dma.done %s171, 1024
        $region36: #{tpu_custom_call.1} parent=27 // pred_fallthru
          _
        %s179 = sand.u32 %s30, 1
        %s180 = scalar_lea.sflag [#allocation3], %s179
        %s181 = sand.u32 %s30, 1
        %s182 = smul.addr %s181, 8
        %s183 = scalar_lea.vmem [#allocation2], %s182
        %p184 = pneg %p43
        %p185 = pneg %p40
        %s186 = sand.u32 %s56, 1
        %s187 = scalar_lea.sflag [#allocation6], %s186
        %s188 = sand.u32 %s56, 1
        %s189 = smul.addr %s188, 64
        %s190 = scalar_lea.vmem [#allocation5], %s189
        %p191 = pneg %p69
        %p192 = pneg %p66
        %p193 = pneg %p95
        %p194 = pneg %p92
        %s195 = sand.u32 %s82, 1
        %s196 = scalar_lea.sflag [#allocation4], %s195
        %s197 = sand.u32 %s82, 1
        %s198 = smul.addr %s197, 8
        %s199 = scalar_lea.vmem [#allocation7], %s198
        %v201 = vld [vmem:[%s165] sm:$0xff]
        %v203 = vcombine.high %v201, %v201
        %v205 = vpack.c.bf16 %v201, %v201
        %v206 = vpack.c.bf16 %v203, %v203
        %v207 = vld [vmem:[%s174] sm:$0xff]
        %v208 = vld [vmem:[%s174 + $0x8] sm:$0xff]
        %v209 = vld [vmem:[%s174 + $0x10] sm:$0xff]
        %v210 = vld [vmem:[%s174 + $0x18] sm:$0xff]
        %v211 = vld [vmem:[%s174 + $0x20] sm:$0xff]
        %v212 = vld [vmem:[%s174 + $0x28] sm:$0xff]
        %v213 = vld [vmem:[%s174 + $0x30] sm:$0xff]
        %v214 = vld [vmem:[%s174 + $0x38] sm:$0xff]
        %v215 = vpack.c.bf16 %v208, %v207
        %v216 = vpack.c.bf16 %v210, %v209
        %v217 = vpack.c.bf16 %v212, %v211
        %v218 = vpack.c.bf16 %v214, %v213
        %vm219 = vcmask 31744
        %v221 = vsel %vm219, %v215, 0
        %v224 = vsel %vm219, %v216, 0
        %v227 = vsel %vm219, %v217, 0
        %v230 = vsel %vm219, %v218, 0
        %vm232 = vcmask 1041408
        %v234 = vsel %vm232, %v205, 0
        %v237 = vsel %vm232, %v206, 0
        %239 = vmatprep.subr.bf16.mxu0 %v237
        %240 = vmatpush1.bf16.msra.mxu0 %v234
        %241 = vmatprep.subr.bf16.mxu0 0
        %242 = vmatpush1.bf16.msra.mxu0 0
        %243 = vmatprep.subr.bf16.mxu0 0
        %244 = vmatpush1.bf16.msra.mxu0 0
        %245 = vmatprep.subr.bf16.mxu0 0
        %246 = vmatpush1.bf16.msra.mxu0 0
        %247 = vmatprep.subr.bf16.mxu0 0
        %248 = vmatpush1.bf16.msra.mxu0 0
        %249 = vmatprep.subr.bf16.mxu0 0
        %250 = vmatpush1.bf16.msra.mxu0 0
        %251 = vmatprep.subr.bf16.mxu0 0
        %252 = vmatpush1.bf16.msra.mxu0 0
        %253 = vmatprep.subr.bf16.mxu0 0
        %254 = vmatpush1.bf16.msra.mxu0 0
        %255 = vmatprep.subr.bf16.mxu0 0
        %256 = vmatpush1.bf16.msra.mxu0 0
        %257 = vmatprep.subr.bf16.mxu0 0
        %258 = vmatpush1.bf16.msra.mxu0 0
        %259 = vmatprep.subr.bf16.mxu0 0
        %260 = vmatpush1.bf16.msra.mxu0 0
        %261 = vmatprep.subr.bf16.mxu0 0
        %262 = vmatpush1.bf16.msra.mxu0 0
        %263 = vmatprep.subr.bf16.mxu0 0
        %264 = vmatpush1.bf16.msra.mxu0 0
        %265 = vmatprep.subr.bf16.mxu0 0
        %266 = vmatpush1.bf16.msra.mxu0 0
        %267 = vmatprep.subr.bf16.mxu0 0
        %268 = vmatpush1.bf16.msra.mxu0 0
        %269 = vmatprep.subr.bf16.mxu0 0
        %270 = vmatpush1.bf16.msra.mxu0 0
        %271 = vmatprep.mubr.bf16.mxu0 0
        %272 = vmatmul.mubr.bf16.gmra.mrb[0].mxu0 %v221
        %v273 = vpop.f32.mrb[0].mxu0
        %v274 = vadd.f32 0.0, %v273
        %v275 = vpop.f32.mrb[0].mxu0
        %v276 = vadd.f32 0.0, %v275
        %v277 = vpop.f32.mrb[0].mxu0
        %v278 = vadd.f32 0.0, %v277
        %v279 = vpop.f32.mrb[0].mxu0
        %v280 = vadd.f32 0.0, %v279
        %281 = vmatprep.mubr.bf16.mxu0 0
        %282 = vmatmul.mubr.bf16.gmra.mrb[0].mxu0 %v224
        %v283 = vpop.f32.mrb[0].mxu0
        %v284 = vadd.f32 0.0, %v283
        %v285 = vpop.f32.mrb[0].mxu0
        %v286 = vadd.f32 0.0, %v285
        %v287 = vpop.f32.mrb[0].mxu0
        %v288 = vadd.f32 0.0, %v287
        %v289 = vpop.f32.mrb[0].mxu0
        %v290 = vadd.f32 0.0, %v289
        %291 = vmatprep.mubr.bf16.mxu0 0
        %292 = vmatmul.mubr.bf16.gmra.mrb[0].mxu0 %v227
        %v293 = vpop.f32.mrb[0].mxu0
        %v294 = vadd.f32 0.0, %v293
        %v295 = vpop.f32.mrb[0].mxu0
        %v296 = vadd.f32 0.0, %v295
        %v297 = vpop.f32.mrb[0].mxu0
        %v298 = vadd.f32 0.0, %v297
        %v299 = vpop.f32.mrb[0].mxu0
        %v300 = vadd.f32 0.0, %v299
        %301 = vmatprep.mubr.bf16.mxu0 0
        %302 = vmatmul.mubr.bf16.gmra.mrb[0].mxu0 %v230
        %v303 = vpop.f32.mrb[0].mxu0
        %v304 = vadd.f32 0.0, %v303
        %v305 = vpop.f32.mrb[0].mxu0
        %v306 = vadd.f32 0.0, %v305
        %v307 = vpop.f32.mrb[0].mxu0
        %v308 = vadd.f32 0.0, %v307
        %v309 = vpop.f32.mrb[0].mxu0
        %v310 = vadd.f32 0.0, %v309
        %311 = vdwg.mxu0
        %v312 = vmul.f32 %v274, 100.0
        %v313 = vmul.f32 %v276, 100.0
        %v314 = vmul.f32 %v278, 100.0
        %v315 = vmul.f32 %v280, 100.0
        %v316 = vmul.f32 %v284, 100.0
        %v317 = vmul.f32 %v286, 100.0
        %v318 = vmul.f32 %v288, 100.0
        %v319 = vmul.f32 %v290, 100.0
        %v320 = vmul.f32 %v294, 100.0
        %v321 = vmul.f32 %v296, 100.0
        %v322 = vmul.f32 %v298, 100.0
        %v323 = vmul.f32 %v300, 100.0
        %v324 = vmul.f32 %v304, 100.0
        %v325 = vmul.f32 %v306, 100.0
        %v326 = vmul.f32 %v308, 100.0
        %v327 = vmul.f32 %v310, 100.0
        %v328 = vmax.f32 %v312, %v316
        %v329 = vmax.f32 %v314, %v318
        %v330 = vmax.f32 %v328, %v320
        %v331 = vmax.f32 %v329, %v322
        %v332 = vmax.f32 %v330, %v324
        %v333 = vmax.f32 %v331, %v326
        %v334 = vmax.f32 %v332, %v333
        %v335 = vrot.slane %v334, 4
        %v336 = vmax.f32 %v334, %v335
        %v337 = vrot.slane %v336, 2
        %v338 = vmax.f32 %v336, %v337
        %v339 = vrot.slane %v338, 1
        %v340 = vmax.f32 %v338, %v339
        %v341 = vmax.f32 %v313, %v317
        %v342 = vmax.f32 %v315, %v319
        %v343 = vmax.f32 %v341, %v321
        %v344 = vmax.f32 %v342, %v323
        %v345 = vmax.f32 %v343, %v325
        %v346 = vmax.f32 %v344, %v327
        %v347 = vmax.f32 %v345, %v346
        %v348 = vrot.slane %v347, 4
        %v349 = vmax.f32 %v347, %v348
        %v350 = vrot.slane %v349, 2
        %v351 = vmax.f32 %v349, %v350
        %v352 = vrot.slane %v351, 1
        %v353 = vmax.f32 %v351, %v352
        %v354 = vsub.f32 %v312, %v340
        %v355 = vsub.f32 %v313, %v353
        %v356 = vsub.f32 %v314, %v340
        %v357 = vsub.f32 %v315, %v353
        %v358 = vsub.f32 %v316, %v340
        %v359 = vsub.f32 %v317, %v353
        %v360 = vsub.f32 %v318, %v340
        %v361 = vsub.f32 %v319, %v353
        %v362 = vsub.f32 %v320, %v340
        %v363 = vsub.f32 %v321, %v353
        %v364 = vsub.f32 %v322, %v340
        %v365 = vsub.f32 %v323, %v353
        %v366 = vsub.f32 %v324, %v340
        %v367 = vsub.f32 %v325, %v353
        %v368 = vsub.f32 %v326, %v340
        %v369 = vsub.f32 %v327, %v353
        %v370 = vmul.f32 %v354, 1.442695
        %v371 = vpow.pop %v370
        %v372 = vmul.f32 %v355, 1.442695
        %v373 = vpow.pop %v372
        %v374 = vmul.f32 %v356, 1.442695
        %v375 = vpow.pop %v374
        %v376 = vmul.f32 %v357, 1.442695
        %v377 = vpow.pop %v376
        %v378 = vmul.f32 %v358, 1.442695
        %v379 = vpow.pop %v378
        %v380 = vmul.f32 %v359, 1.442695
        %v381 = vpow.pop %v380
        %v382 = vmul.f32 %v360, 1.442695
        %v383 = vpow.pop %v382
        %v384 = vmul.f32 %v361, 1.442695
        %v385 = vpow.pop %v384
        %v386 = vmul.f32 %v362, 1.442695
        %v387 = vpow.pop %v386
        %v388 = vmul.f32 %v363, 1.442695
        %v389 = vpow.pop %v388
        %v390 = vmul.f32 %v364, 1.442695
        %v391 = vpow.pop %v390
        %v392 = vmul.f32 %v365, 1.442695
        %v393 = vpow.pop %v392
        %v394 = vmul.f32 %v366, 1.442695
        %v395 = vpow.pop %v394
        %v396 = vmul.f32 %v367, 1.442695
        %v397 = vpow.pop %v396
        %v398 = vmul.f32 %v368, 1.442695
        %v399 = vpow.pop %v398
        %v400 = vmul.f32 %v369, 1.442695
        %v401 = vpow.pop %v400
        %v402 = vadd.f32 %v371, %v375
        %v403 = vadd.f32 %v402, %v379
        %v404 = vadd.f32 %v403, %v383
        %v405 = vadd.f32 %v404, %v387
        %v406 = vadd.f32 %v405, %v391
        %v407 = vadd.f32 %v406, %v395
        %v408 = vadd.f32 %v407, %v399
        %v409 = vrot.slane %v408, 4
        %v410 = vadd.f32 %v408, %v409
        %v411 = vrot.slane %v410, 2
        %v412 = vadd.f32 %v410, %v411
        %v413 = vrot.slane %v412, 1
        %v414 = vadd.f32 %v412, %v413
        %v415 = vadd.f32 %v373, %v377
        %v416 = vadd.f32 %v415, %v381
        %v417 = vadd.f32 %v416, %v385
        %v418 = vadd.f32 %v417, %v389
        %v419 = vadd.f32 %v418, %v393
        %v420 = vadd.f32 %v419, %v397
        %v421 = vadd.f32 %v420, %v401
        %v422 = vrot.slane %v421, 4
        %v423 = vadd.f32 %v421, %v422
        %v424 = vrot.slane %v423, 2
        %v425 = vadd.f32 %v423, %v424
        %v426 = vrot.slane %v425, 1
        %v427 = vadd.f32 %v425, %v426
        %v428 = vrcp.pop %v414
        %v429 = vrcp.pop %v427
        %v430 = vmul.f32 %v371, %v428
        %v431 = vmul.f32 %v373, %v429
        %v432 = vmul.f32 %v375, %v428
        %v433 = vmul.f32 %v377, %v429
        %v434 = vmul.f32 %v379, %v428
        %v435 = vmul.f32 %v381, %v429
        %v436 = vmul.f32 %v383, %v428
        %v437 = vmul.f32 %v385, %v429
        %v438 = vmul.f32 %v387, %v428
        %v439 = vmul.f32 %v389, %v429
        %v440 = vmul.f32 %v391, %v428
        %v441 = vmul.f32 %v393, %v429
        %v442 = vmul.f32 %v395, %v428
        %v443 = vmul.f32 %v397, %v429
        %v444 = vmul.f32 %v399, %v428
        %v445 = vmul.f32 %v401, %v429
        %v446 = vpack.c.bf16 %v432, %v430
        %v447 = vpack.c.bf16 %v433, %v431
        %v448 = vpack.c.bf16 %v436, %v434
        %v449 = vpack.c.bf16 %v437, %v435
        %v450 = vpack.c.bf16 %v440, %v438
        %v451 = vpack.c.bf16 %v441, %v439
        %v452 = vpack.c.bf16 %v444, %v442
        %v453 = vpack.c.bf16 %v445, %v443
        %454 = vmatprep.subr.bf16.mxu0 0
        %455 = vmatpush1.bf16.xpose.msra.mxu0 %v221
        %456 = vmatprep.subr.bf16.mxu0 0
        %457 = vmatpush1.bf16.xpose.msra.mxu0 %v224
        %458 = vmatprep.subr.bf16.mxu0 0
        %459 = vmatpush1.bf16.xpose.msra.mxu0 %v227
        %460 = vmatprep.subr.bf16.mxu0 0
        %461 = vmatpush1.bf16.xpose.msra.mxu0 %v230
        %462 = vmatprep.subr.bf16.mxu0 0
        %463 = vmatpush1.bf16.xpose.msra.mxu0 0
        %464 = vmatprep.subr.bf16.mxu0 0
        %465 = vmatpush1.bf16.xpose.msra.mxu0 0
        %466 = vmatprep.subr.bf16.mxu0 0
        %467 = vmatpush1.bf16.xpose.msra.mxu0 0
        %468 = vmatprep.subr.bf16.mxu0 0
        %469 = vmatpush1.bf16.xpose.msra.mxu0 0
        %470 = vmatprep.subr.bf16.mxu0 0
        %471 = vmatpush1.bf16.xpose.msra.mxu0 0
        %472 = vmatprep.subr.bf16.mxu0 0
        %473 = vmatpush1.bf16.xpose.msra.mxu0 0
        %474 = vmatprep.subr.bf16.mxu0 0
        %475 = vmatpush1.bf16.xpose.msra.mxu0 0
        %476 = vmatprep.subr.bf16.mxu0 0
        %477 = vmatpush1.bf16.xpose.msra.mxu0 0
        %478 = vmatprep.subr.bf16.mxu0 0
        %479 = vmatpush1.bf16.xpose.msra.mxu0 0
        %480 = vmatprep.subr.bf16.mxu0 0
        %481 = vmatpush1.bf16.xpose.msra.mxu0 0
        %482 = vmatprep.subr.bf16.mxu0 0
        %483 = vmatpush1.bf16.xpose.msra.mxu0 0
        %484 = vmatprep.subr.bf16.mxu0 0
        %485 = vmatpush1.bf16.xpose.msra.mxu0 0
        %486 = vmatprep.mubr.bf16.mxu0 0
        %487 = vmatmul.mubr.bf16.gmra.mrb[0].mxu0 %v221
        %v488 = vpop.f32.mrb[0].mxu0
        %v489 = vadd.f32 0.0, %v488
        %v490 = vpop.f32.mrb[0].mxu0
        %v491 = vpop.f32.mrb[0].mxu0
        %v492 = vadd.f32 0.0, %v491
        %v493 = vpop.f32.mrb[0].mxu0
        %494 = vmatprep.mubr.bf16.mxu0 0
        %495 = vmatmul.mubr.bf16.gmra.mrb[0].mxu0 %v224
        %v496 = vpop.f32.mrb[0].mxu0
        %v497 = vadd.f32 0.0, %v496
        %v498 = vpop.f32.mrb[0].mxu0
        %v499 = vpop.f32.mrb[0].mxu0
        %v500 = vadd.f32 0.0, %v499
        %v501 = vpop.f32.mrb[0].mxu0
        %502 = vmatprep.mubr.bf16.mxu0 0
        %503 = vmatmul.mubr.bf16.gmra.mrb[0].mxu0 %v227
        %v504 = vpop.f32.mrb[0].mxu0
        %v505 = vadd.f32 0.0, %v504
        %v506 = vpop.f32.mrb[0].mxu0
        %v507 = vpop.f32.mrb[0].mxu0
        %v508 = vadd.f32 0.0, %v507
        %v509 = vpop.f32.mrb[0].mxu0
        %510 = vmatprep.mubr.bf16.mxu0 0
        %511 = vmatmul.mubr.bf16.gmra.mrb[0].mxu0 %v230
        %v512 = vpop.f32.mrb[0].mxu0
        %v513 = vadd.f32 0.0, %v512
        %v514 = vpop.f32.mrb[0].mxu0
        %v515 = vpop.f32.mrb[0].mxu0
        %v516 = vadd.f32 0.0, %v515
        %v517 = vpop.f32.mrb[0].mxu0
        %518 = vdwg.mxu0
        %v519 = vpack.c.bf16 %v492, %v489
        %v520 = vpack.c.bf16 %v500, %v497
        %v521 = vpack.c.bf16 %v508, %v505
        %v522 = vpack.c.bf16 %v516, %v513
        %v523 = vmul.f32 %v430, %v274
        %v524 = vmul.f32 %v431, %v276
        %v525 = vmul.f32 %v432, %v278
        %v526 = vmul.f32 %v433, %v280
        %v527 = vmul.f32 %v434, %v284
        %v528 = vmul.f32 %v435, %v286
        %v529 = vmul.f32 %v436, %v288
        %v530 = vmul.f32 %v437, %v290
        %v531 = vmul.f32 %v438, %v294
        %v532 = vmul.f32 %v439, %v296
        %v533 = vmul.f32 %v440, %v298
        %v534 = vmul.f32 %v441, %v300
        %v535 = vmul.f32 %v442, %v304
        %v536 = vmul.f32 %v443, %v306
        %v537 = vmul.f32 %v444, %v308
        %v538 = vmul.f32 %v445, %v310
        %vm539 = vcmask 523264
        %v541 = vsel %vm539, %v519, 0
        %v544 = vsel %vm539, %v520, 0
        %v547 = vsel %vm539, %v521, 0
        %v550 = vsel %vm539, %v522, 0
        %552 = vmatprep.subr.bf16.mxu0 %v447
        %553 = vmatpush1.bf16.msra.mxu0 %v446
        %554 = vmatprep.subr.bf16.mxu0 %v449
        %555 = vmatpush1.bf16.msra.mxu0 %v448
        %556 = vmatprep.subr.bf16.mxu0 %v451
        %557 = vmatpush1.bf16.msra.mxu0 %v450
        %558 = vmatprep.subr.bf16.mxu0 %v453
        %559 = vmatpush1.bf16.msra.mxu0 %v452
        %560 = vmatprep.subr.bf16.mxu0 0
        %561 = vmatpush1.bf16.msra.mxu0 0
        %562 = vmatprep.subr.bf16.mxu0 0
        %563 = vmatpush1.bf16.msra.mxu0 0
        %564 = vmatprep.subr.bf16.mxu0 0
        %565 = vmatpush1.bf16.msra.mxu0 0
        %566 = vmatprep.subr.bf16.mxu0 0
        %567 = vmatpush1.bf16.msra.mxu0 0
        %568 = vmatprep.subr.bf16.mxu0 0
        %569 = vmatpush1.bf16.msra.mxu0 0
        %570 = vmatprep.subr.bf16.mxu0 0
        %571 = vmatpush1.bf16.msra.mxu0 0
        %572 = vmatprep.subr.bf16.mxu0 0
        %573 = vmatpush1.bf16.msra.mxu0 0
        %574 = vmatprep.subr.bf16.mxu0 0
        %575 = vmatpush1.bf16.msra.mxu0 0
        %576 = vmatprep.subr.bf16.mxu0 0
        %577 = vmatpush1.bf16.msra.mxu0 0
        %578 = vmatprep.subr.bf16.mxu0 0
        %579 = vmatpush1.bf16.msra.mxu0 0
        %580 = vmatprep.subr.bf16.mxu0 0
        %581 = vmatpush1.bf16.msra.mxu0 0
        %582 = vmatprep.subr.bf16.mxu0 0
        %583 = vmatpush1.bf16.msra.mxu0 0
        %584 = vmatprep.mubr.bf16.mxu0 0
        %585 = vmatmul.mubr.bf16.gmra.mrb[0].mxu0 %v541
        %v586 = vpop.f32.mrb[0].mxu0
        %v587 = vadd.f32 1e-06, %v586
        %v588 = vpop.f32.mrb[0].mxu0
        %v589 = vadd.f32 1e-06, %v588
        %v590 = vpop.f32.mrb[0].mxu0
        %v591 = vadd.f32 1e-06, %v590
        %v592 = vpop.f32.mrb[0].mxu0
        %v593 = vadd.f32 1e-06, %v592
        %594 = vmatprep.mubr.bf16.mxu0 0
        %595 = vmatmul.mubr.bf16.gmra.mrb[0].mxu0 %v544
        %v596 = vpop.f32.mrb[0].mxu0
        %v597 = vadd.f32 1e-06, %v596
        %v598 = vpop.f32.mrb[0].mxu0
        %v599 = vadd.f32 1e-06, %v598
        %v600 = vpop.f32.mrb[0].mxu0
        %v601 = vadd.f32 1e-06, %v600
        %v602 = vpop.f32.mrb[0].mxu0
        %v603 = vadd.f32 1e-06, %v602
        %604 = vmatprep.mubr.bf16.mxu0 0
        %605 = vmatmul.mubr.bf16.gmra.mrb[0].mxu0 %v547
        %v606 = vpop.f32.mrb[0].mxu0
        %v607 = vadd.f32 1e-06, %v606
        %v608 = vpop.f32.mrb[0].mxu0
        %v609 = vadd.f32 1e-06, %v608
        %v610 = vpop.f32.mrb[0].mxu0
        %v611 = vadd.f32 1e-06, %v610
        %v612 = vpop.f32.mrb[0].mxu0
        %v613 = vadd.f32 1e-06, %v612
        %614 = vmatprep.mubr.bf16.mxu0 0
        %615 = vmatmul.mubr.bf16.gmra.mrb[0].mxu0 %v550
        %v616 = vpop.f32.mrb[0].mxu0
        %v617 = vadd.f32 1e-06, %v616
        %v618 = vpop.f32.mrb[0].mxu0
        %v619 = vadd.f32 1e-06, %v618
        %v620 = vpop.f32.mrb[0].mxu0
        %v621 = vadd.f32 1e-06, %v620
        %v622 = vpop.f32.mrb[0].mxu0
        %v623 = vadd.f32 1e-06, %v622
        %624 = vdwg.mxu0
        %v625 = vrcp.pop %v587
        %v626 = vrcp.pop %v589
        %v627 = vrcp.pop %v591
        %v628 = vrcp.pop %v593
        %v629 = vrcp.pop %v597
        %v630 = vrcp.pop %v599
        %v631 = vrcp.pop %v601
        %v632 = vrcp.pop %v603
        %v633 = vrcp.pop %v607
        %v634 = vrcp.pop %v609
        %v635 = vrcp.pop %v611
        %v636 = vrcp.pop %v613
        %v637 = vrcp.pop %v617
        %v638 = vrcp.pop %v619
        %v639 = vrcp.pop %v621
        %v640 = vrcp.pop %v623
        %v641 = vmul.f32 %v523, %v625
        %v642 = vmul.f32 %v524, %v626
        %v643 = vmul.f32 %v525, %v627
        %v644 = vmul.f32 %v526, %v628
        %v645 = vmul.f32 %v527, %v629
        %v646 = vmul.f32 %v528, %v630
        %v647 = vmul.f32 %v529, %v631
        %v648 = vmul.f32 %v530, %v632
        %v649 = vmul.f32 %v531, %v633
        %v650 = vmul.f32 %v532, %v634
        %v651 = vmul.f32 %v533, %v635
        %v652 = vmul.f32 %v534, %v636
        %v653 = vmul.f32 %v535, %v637
        %v654 = vmul.f32 %v536, %v638
        %v655 = vmul.f32 %v537, %v639
        %v656 = vmul.f32 %v538, %v640
        %v657 = vpack.c.bf16 %v643, %v641
        %v658 = vpack.c.bf16 %v644, %v642
        %v659 = vpack.c.bf16 %v647, %v645
        %v660 = vpack.c.bf16 %v648, %v646
        %v661 = vpack.c.bf16 %v651, %v649
        %v662 = vpack.c.bf16 %v652, %v650
        %v663 = vpack.c.bf16 %v655, %v653
        %v664 = vpack.c.bf16 %v656, %v654
        %665 = vmatprep.subr.bf16.mxu0 %v206
        %666 = vmatpush1.bf16.xpose.msra.mxu0 %v205
        %667 = vmatprep.subr.bf16.mxu0 0
        %668 = vmatpush1.bf16.xpose.msra.mxu0 0
        %669 = vmatprep.subr.bf16.mxu0 0
        %670 = vmatpush1.bf16.xpose.msra.mxu0 0
        %671 = vmatprep.subr.bf16.mxu0 0
        %672 = vmatpush1.bf16.xpose.msra.mxu0 0
        %673 = vmatprep.subr.bf16.mxu0 0
        %674 = vmatpush1.bf16.xpose.msra.mxu0 0
        %675 = vmatprep.subr.bf16.mxu0 0
        %676 = vmatpush1.bf16.xpose.msra.mxu0 0
        %677 = vmatprep.subr.bf16.mxu0 0
        %678 = vmatpush1.bf16.xpose.msra.mxu0 0
        %679 = vmatprep.subr.bf16.mxu0 0
        %680 = vmatpush1.bf16.xpose.msra.mxu0 0
        %681 = vmatprep.subr.bf16.mxu0 0
        %682 = vmatpush1.bf16.xpose.msra.mxu0 0
        %683 = vmatprep.subr.bf16.mxu0 0
        %684 = vmatpush1.bf16.xpose.msra.mxu0 0
        %685 = vmatprep.subr.bf16.mxu0 0
        %686 = vmatpush1.bf16.xpose.msra.mxu0 0
        %687 = vmatprep.subr.bf16.mxu0 0
        %688 = vmatpush1.bf16.xpose.msra.mxu0 0
        %689 = vmatprep.subr.bf16.mxu0 0
        %690 = vmatpush1.bf16.xpose.msra.mxu0 0
        %691 = vmatprep.subr.bf16.mxu0 0
        %692 = vmatpush1.bf16.xpose.msra.mxu0 0
        %693 = vmatprep.subr.bf16.mxu0 0
        %694 = vmatpush1.bf16.xpose.msra.mxu0 0
        %695 = vmatprep.subr.bf16.mxu0 0
        %696 = vmatpush1.bf16.xpose.msra.mxu0 0
        %697 = vmatprep.mubr.bf16.mxu0 %v658
        %698 = vmatmul.mubr.bf16.gmra.mrb[0].mxu0 %v657
        %v699 = vpop.f32.mrb[0].mxu0
        %v700 = vadd.f32 0.0, %v699
        %v701 = vpop.f32.mrb[0].mxu0
        %v702 = vpop.f32.mrb[0].mxu0
        %v703 = vadd.f32 0.0, %v702
        %v704 = vpop.f32.mrb[0].mxu0
        %705 = vmatprep.mubr.bf16.mxu0 %v660
        %706 = vmatmul.mubr.bf16.gmra.mrb[0].mxu0 %v659
        %v707 = vpop.f32.mrb[0].mxu0
        %v708 = vadd.f32 0.0, %v707
        %v709 = vpop.f32.mrb[0].mxu0
        %v710 = vpop.f32.mrb[0].mxu0
        %v711 = vadd.f32 0.0, %v710
        %v712 = vpop.f32.mrb[0].mxu0
        %713 = vmatprep.mubr.bf16.mxu0 %v662
        %714 = vmatmul.mubr.bf16.gmra.mrb[0].mxu0 %v661
        %v715 = vpop.f32.mrb[0].mxu0
        %v716 = vadd.f32 0.0, %v715
        %v717 = vpop.f32.mrb[0].mxu0
        %v718 = vpop.f32.mrb[0].mxu0
        %v719 = vadd.f32 0.0, %v718
        %v720 = vpop.f32.mrb[0].mxu0
        %721 = vmatprep.mubr.bf16.mxu0 %v664
        %722 = vmatmul.mubr.bf16.gmra.mrb[0].mxu0 %v663
        %v723 = vpop.f32.mrb[0].mxu0
        %v724 = vadd.f32 0.0, %v723
        %v725 = vpop.f32.mrb[0].mxu0
        %v726 = vpop.f32.mrb[0].mxu0
        %v727 = vadd.f32 0.0, %v726
        %v728 = vpop.f32.mrb[0].mxu0
        %729 = vdwg.mxu0
        %730 = vmatprep.subr.bf16.mxu0 %v658
        %731 = vmatpush1.bf16.xpose.msra.mxu0 %v657
        %732 = vmatprep.subr.bf16.mxu0 %v660
        %733 = vmatpush1.bf16.xpose.msra.mxu0 %v659
        %734 = vmatprep.subr.bf16.mxu0 %v662
        %735 = vmatpush1.bf16.xpose.msra.mxu0 %v661
        %736 = vmatprep.subr.bf16.mxu0 %v664
        %737 = vmatpush1.bf16.xpose.msra.mxu0 %v663
        %738 = vmatprep.subr.bf16.mxu0 0
        %739 = vmatpush1.bf16.xpose.msra.mxu0 0
        %740 = vmatprep.subr.bf16.mxu0 0
        %741 = vmatpush1.bf16.xpose.msra.mxu0 0
        %742 = vmatprep.subr.bf16.mxu0 0
        %743 = vmatpush1.bf16.xpose.msra.mxu0 0
        %744 = vmatprep.subr.bf16.mxu0 0
        %745 = vmatpush1.bf16.xpose.msra.mxu0 0
        %746 = vmatprep.subr.bf16.mxu0 0
        %747 = vmatpush1.bf16.xpose.msra.mxu0 0
        %748 = vmatprep.subr.bf16.mxu0 0
        %749 = vmatpush1.bf16.xpose.msra.mxu0 0
        %750 = vmatprep.subr.bf16.mxu0 0
        %751 = vmatpush1.bf16.xpose.msra.mxu0 0
        %752 = vmatprep.subr.bf16.mxu0 0
        %753 = vmatpush1.bf16.xpose.msra.mxu0 0
        %754 = vmatprep.subr.bf16.mxu0 0
        %755 = vmatpush1.bf16.xpose.msra.mxu0 0
        %756 = vmatprep.subr.bf16.mxu0 0
        %757 = vmatpush1.bf16.xpose.msra.mxu0 0
        %758 = vmatprep.subr.bf16.mxu0 0
        %759 = vmatpush1.bf16.xpose.msra.mxu0 0
        %760 = vmatprep.subr.bf16.mxu0 0
        %761 = vmatpush1.bf16.xpose.msra.mxu0 0
        %762 = vmatprep.mubr.bf16.mxu0 %v658
        %763 = vmatmul.mubr.bf16.gmra.mrb[0].mxu0 %v657
        %v764 = vpop.f32.mrb[0].mxu0
        %v765 = vadd.f32 0.0, %v764
        %v766 = vpop.f32.mrb[0].mxu0
        %v767 = vpop.f32.mrb[0].mxu0
        %v768 = vadd.f32 0.0, %v767
        %v769 = vpop.f32.mrb[0].mxu0
        %770 = vmatprep.mubr.bf16.mxu0 %v660
        %771 = vmatmul.mubr.bf16.gmra.mrb[0].mxu0 %v659
        %v772 = vpop.f32.mrb[0].mxu0
        %v773 = vadd.f32 0.0, %v772
        %v774 = vpop.f32.mrb[0].mxu0
        %v775 = vpop.f32.mrb[0].mxu0
        %v776 = vadd.f32 0.0, %v775
        %v777 = vpop.f32.mrb[0].mxu0
        %778 = vmatprep.mubr.bf16.mxu0 %v662
        %779 = vmatmul.mubr.bf16.gmra.mrb[0].mxu0 %v661
        %v780 = vpop.f32.mrb[0].mxu0
        %v781 = vadd.f32 0.0, %v780
        %v782 = vpop.f32.mrb[0].mxu0
        %v783 = vpop.f32.mrb[0].mxu0
        %v784 = vadd.f32 0.0, %v783
        %v785 = vpop.f32.mrb[0].mxu0
        %786 = vmatprep.mubr.bf16.mxu0 %v664
        %787 = vmatmul.mubr.bf16.gmra.mrb[0].mxu0 %v663
        %v788 = vpop.f32.mrb[0].mxu0
        %v789 = vadd.f32 0.0, %v788
        %v790 = vpop.f32.mrb[0].mxu0
        %v791 = vpop.f32.mrb[0].mxu0
        %v792 = vadd.f32 0.0, %v791
        %v793 = vpop.f32.mrb[0].mxu0
        %794 = vdwg.mxu0
        %v795 = vpack.c.bf16 %v768, %v765
        %v796 = vpack.c.bf16 %v776, %v773
        %v797 = vpack.c.bf16 %v784, %v781
        %v798 = vpack.c.bf16 %v792, %v789
        %v799 = vmul.f32 %v207, %v700
        %v800 = vmul.f32 %v208, %v703
        %v801 = vmul.f32 %v209, %v708
        %v802 = vmul.f32 %v210, %v711
        %v803 = vmul.f32 %v211, %v716
        %v804 = vmul.f32 %v212, %v719
        %v805 = vmul.f32 %v213, %v724
        %v806 = vmul.f32 %v214, %v727
        %v808 = vsel %vm539, %v795, 0
        %v811 = vsel %vm539, %v796, 0
        %v814 = vsel %vm539, %v797, 0
        %v817 = vsel %vm539, %v798, 0
        %819 = vmatprep.subr.bf16.mxu0 0
        %820 = vmatpush1.bf16.msra.mxu0 %v215
        %821 = vmatprep.subr.bf16.mxu0 0
        %822 = vmatpush1.bf16.msra.mxu0 %v216
        %823 = vmatprep.subr.bf16.mxu0 0
        %824 = vmatpush1.bf16.msra.mxu0 %v217
        %825 = vmatprep.subr.bf16.mxu0 0
        %826 = vmatpush1.bf16.msra.mxu0 %v218
        %827 = vmatprep.subr.bf16.mxu0 0
        %828 = vmatpush1.bf16.msra.mxu0 0
        %829 = vmatprep.subr.bf16.mxu0 0
        %830 = vmatpush1.bf16.msra.mxu0 0
        %831 = vmatprep.subr.bf16.mxu0 0
        %832 = vmatpush1.bf16.msra.mxu0 0
        %833 = vmatprep.subr.bf16.mxu0 0
        %834 = vmatpush1.bf16.msra.mxu0 0
        %835 = vmatprep.subr.bf16.mxu0 0
        %836 = vmatpush1.bf16.msra.mxu0 0
        %837 = vmatprep.subr.bf16.mxu0 0
        %838 = vmatpush1.bf16.msra.mxu0 0
        %839 = vmatprep.subr.bf16.mxu0 0
        %840 = vmatpush1.bf16.msra.mxu0 0
        %841 = vmatprep.subr.bf16.mxu0 0
        %842 = vmatpush1.bf16.msra.mxu0 0
        %843 = vmatprep.subr.bf16.mxu0 0
        %844 = vmatpush1.bf16.msra.mxu0 0
        %845 = vmatprep.subr.bf16.mxu0 0
        %846 = vmatpush1.bf16.msra.mxu0 0
        %847 = vmatprep.subr.bf16.mxu0 0
        %848 = vmatpush1.bf16.msra.mxu0 0
        %849 = vmatprep.subr.bf16.mxu0 0
        %850 = vmatpush1.bf16.msra.mxu0 0
        %851 = vmatprep.mubr.bf16.mxu0 0
        %852 = vmatmul.mubr.bf16.gmra.mrb[0].mxu0 %v808
        %v853 = vpop.f32.mrb[0].mxu0
        %v854 = vadd.f32 1e-06, %v853
        %v855 = vpop.f32.mrb[0].mxu0
        %v856 = vpop.f32.mrb[0].mxu0
        %v857 = vadd.f32 1e-06, %v856
        %v858 = vpop.f32.mrb[0].mxu0
        %859 = vmatprep.mubr.bf16.mxu0 0
        %860 = vmatmul.mubr.bf16.gmra.mrb[0].mxu0 %v811
        %v861 = vpop.f32.mrb[0].mxu0
        %v862 = vadd.f32 1e-06, %v861
        %v863 = vpop.f32.mrb[0].mxu0
        %v864 = vpop.f32.mrb[0].mxu0
        %v865 = vadd.f32 1e-06, %v864
        %v866 = vpop.f32.mrb[0].mxu0
        %867 = vmatprep.mubr.bf16.mxu0 0
        %868 = vmatmul.mubr.bf16.gmra.mrb[0].mxu0 %v814
        %v869 = vpop.f32.mrb[0].mxu0
        %v870 = vadd.f32 1e-06, %v869
        %v871 = vpop.f32.mrb[0].mxu0
        %v872 = vpop.f32.mrb[0].mxu0
        %v873 = vadd.f32 1e-06, %v872
        %v874 = vpop.f32.mrb[0].mxu0
        %875 = vmatprep.mubr.bf16.mxu0 0
        %876 = vmatmul.mubr.bf16.gmra.mrb[0].mxu0 %v817
        %v877 = vpop.f32.mrb[0].mxu0
        %v878 = vadd.f32 1e-06, %v877
        %v879 = vpop.f32.mrb[0].mxu0
        %v880 = vpop.f32.mrb[0].mxu0
        %v881 = vadd.f32 1e-06, %v880
        %v882 = vpop.f32.mrb[0].mxu0
        %883 = vdwg.mxu0
        %v884 = vrcp.pop %v854
        %v885 = vrcp.pop %v857
        %v886 = vrcp.pop %v862
        %v887 = vrcp.pop %v865
        %v888 = vrcp.pop %v870
        %v889 = vrcp.pop %v873
        %v890 = vrcp.pop %v878
        %v891 = vrcp.pop %v881
        %v892 = vmul.f32 %v799, %v884
        %v893 = vmul.f32 %v800, %v885
        %v894 = vmul.f32 %v801, %v886
        %v895 = vmul.f32 %v802, %v887
        %v896 = vmul.f32 %v803, %v888
        %v897 = vmul.f32 %v804, %v889
        %v898 = vmul.f32 %v805, %v890
        %v899 = vmul.f32 %v806, %v891
        %v900 = vpack.c.bf16 %v893, %v892
        %v901 = vpack.c.bf16 %v895, %v894
        %v902 = vpack.c.bf16 %v897, %v896
        %v903 = vpack.c.bf16 %v899, %v898
        %v905 = vsel %vm219, %v900, 0
        %v908 = vsel %vm219, %v901, 0
        %v911 = vsel %vm219, %v902, 0
        %v914 = vsel %vm219, %v903, 0
        %916 = vmatprep.subr.bf16.mxu0 %v237
        %917 = vmatpush1.bf16.msra.mxu0 %v234
        %918 = vmatprep.subr.bf16.mxu0 0
        %919 = vmatpush1.bf16.msra.mxu0 0
        %920 = vmatprep.subr.bf16.mxu0 0
        %921 = vmatpush1.bf16.msra.mxu0 0
        %922 = vmatprep.subr.bf16.mxu0 0
        %923 = vmatpush1.bf16.msra.mxu0 0
        %924 = vmatprep.subr.bf16.mxu0 0
        %925 = vmatpush1.bf16.msra.mxu0 0
        %926 = vmatprep.subr.bf16.mxu0 0
        %927 = vmatpush1.bf16.msra.mxu0 0
        %928 = vmatprep.subr.bf16.mxu0 0
        %929 = vmatpush1.bf16.msra.mxu0 0
        %930 = vmatprep.subr.bf16.mxu0 0
        %931 = vmatpush1.bf16.msra.mxu0 0
        %932 = vmatprep.subr.bf16.mxu0 0
        %933 = vmatpush1.bf16.msra.mxu0 0
        %934 = vmatprep.subr.bf16.mxu0 0
        %935 = vmatpush1.bf16.msra.mxu0 0
        %936 = vmatprep.subr.bf16.mxu0 0
        %937 = vmatpush1.bf16.msra.mxu0 0
        %938 = vmatprep.subr.bf16.mxu0 0
        %939 = vmatpush1.bf16.msra.mxu0 0
        %940 = vmatprep.subr.bf16.mxu0 0
        %941 = vmatpush1.bf16.msra.mxu0 0
        %942 = vmatprep.subr.bf16.mxu0 0
        %943 = vmatpush1.bf16.msra.mxu0 0
        %944 = vmatprep.subr.bf16.mxu0 0
        %945 = vmatpush1.bf16.msra.mxu0 0
        %946 = vmatprep.subr.bf16.mxu0 0
        %947 = vmatpush1.bf16.msra.mxu0 0
        %948 = vmatprep.mubr.bf16.mxu0 0
        %949 = vmatmul.mubr.bf16.gmra.mrb[0].mxu0 %v905
        %v950 = vpop.f32.mrb[0].mxu0
        %v951 = vadd.f32 0.0, %v950
        %v952 = vpop.f32.mrb[0].mxu0
        %v953 = vadd.f32 0.0, %v952
        %v954 = vpop.f32.mrb[0].mxu0
        %v955 = vadd.f32 0.0, %v954
        %v956 = vpop.f32.mrb[0].mxu0
        %v957 = vadd.f32 0.0, %v956
        %958 = vmatprep.mubr.bf16.mxu0 0
        %959 = vmatmul.mubr.bf16.gmra.mrb[0].mxu0 %v908
        %v960 = vpop.f32.mrb[0].mxu0
        %v961 = vadd.f32 0.0, %v960
        %v962 = vpop.f32.mrb[0].mxu0
        %v963 = vadd.f32 0.0, %v962
        %v964 = vpop.f32.mrb[0].mxu0
        %v965 = vadd.f32 0.0, %v964
        %v966 = vpop.f32.mrb[0].mxu0
        %v967 = vadd.f32 0.0, %v966
        %968 = vmatprep.mubr.bf16.mxu0 0
        %969 = vmatmul.mubr.bf16.gmra.mrb[0].mxu0 %v911
        %v970 = vpop.f32.mrb[0].mxu0
        %v971 = vadd.f32 0.0, %v970
        %v972 = vpop.f32.mrb[0].mxu0
        %v973 = vadd.f32 0.0, %v972
        %v974 = vpop.f32.mrb[0].mxu0
        %v975 = vadd.f32 0.0, %v974
        %v976 = vpop.f32.mrb[0].mxu0
        %v977 = vadd.f32 0.0, %v976
        %978 = vmatprep.mubr.bf16.mxu0 0
        %979 = vmatmul.mubr.bf16.gmra.mrb[0].mxu0 %v914
        %v980 = vpop.f32.mrb[0].mxu0
        %v981 = vadd.f32 0.0, %v980
        %v982 = vpop.f32.mrb[0].mxu0
        %v983 = vadd.f32 0.0, %v982
        %v984 = vpop.f32.mrb[0].mxu0
        %v985 = vadd.f32 0.0, %v984
        %v986 = vpop.f32.mrb[0].mxu0
        %v987 = vadd.f32 0.0, %v986
        %988 = vdwg.mxu0
        %989 = vmatprep.subr.bf16.mxu0 0
        %990 = vmatpush1.bf16.xpose.msra.mxu0 %v905
        %991 = vmatprep.subr.bf16.mxu0 0
        %992 = vmatpush1.bf16.xpose.msra.mxu0 %v908
        %993 = vmatprep.subr.bf16.mxu0 0
        %994 = vmatpush1.bf16.xpose.msra.mxu0 %v911
        %995 = vmatprep.subr.bf16.mxu0 0
        %996 = vmatpush1.bf16.xpose.msra.mxu0 %v914
        %997 = vmatprep.subr.bf16.mxu0 0
        %998 = vmatpush1.bf16.xpose.msra.mxu0 0
        %999 = vmatprep.subr.bf16.mxu0 0
        %1000 = vmatpush1.bf16.xpose.msra.mxu0 0
        %1001 = vmatprep.subr.bf16.mxu0 0
        %1002 = vmatpush1.bf16.xpose.msra.mxu0 0
        %1003 = vmatprep.subr.bf16.mxu0 0
        %1004 = vmatpush1.bf16.xpose.msra.mxu0 0
        %1005 = vmatprep.subr.bf16.mxu0 0
        %1006 = vmatpush1.bf16.xpose.msra.mxu0 0
        %1007 = vmatprep.subr.bf16.mxu0 0
        %1008 = vmatpush1.bf16.xpose.msra.mxu0 0
        %1009 = vmatprep.subr.bf16.mxu0 0
        %1010 = vmatpush1.bf16.xpose.msra.mxu0 0
        %1011 = vmatprep.subr.bf16.mxu0 0
        %1012 = vmatpush1.bf16.xpose.msra.mxu0 0
        %1013 = vmatprep.subr.bf16.mxu0 0
        %1014 = vmatpush1.bf16.xpose.msra.mxu0 0
        %1015 = vmatprep.subr.bf16.mxu0 0
        %1016 = vmatpush1.bf16.xpose.msra.mxu0 0
        %1017 = vmatprep.subr.bf16.mxu0 0
        %1018 = vmatpush1.bf16.xpose.msra.mxu0 0
        %1019 = vmatprep.subr.bf16.mxu0 0
        %1020 = vmatpush1.bf16.xpose.msra.mxu0 0
        %1021 = vmatprep.mubr.bf16.mxu0 0
        %1022 = vmatmul.mubr.bf16.gmra.mrb[0].mxu0 %v905
        %v1023 = vpop.f32.mrb[0].mxu0
        %v1024 = vadd.f32 0.0, %v1023
        %v1025 = vpop.f32.mrb[0].mxu0
        %v1026 = vpop.f32.mrb[0].mxu0
        %v1027 = vadd.f32 0.0, %v1026
        %v1028 = vpop.f32.mrb[0].mxu0
        %1029 = vmatprep.mubr.bf16.mxu0 0
        %1030 = vmatmul.mubr.bf16.gmra.mrb[0].mxu0 %v908
        %v1031 = vpop.f32.mrb[0].mxu0
        %v1032 = vadd.f32 0.0, %v1031
        %v1033 = vpop.f32.mrb[0].mxu0
        %v1034 = vpop.f32.mrb[0].mxu0
        %v1035 = vadd.f32 0.0, %v1034
        %v1036 = vpop.f32.mrb[0].mxu0
        %1037 = vmatprep.mubr.bf16.mxu0 0
        %1038 = vmatmul.mubr.bf16.gmra.mrb[0].mxu0 %v911
        %v1039 = vpop.f32.mrb[0].mxu0
        %v1040 = vadd.f32 0.0, %v1039
        %v1041 = vpop.f32.mrb[0].mxu0
        %v1042 = vpop.f32.mrb[0].mxu0
        %v1043 = vadd.f32 0.0, %v1042
        %v1044 = vpop.f32.mrb[0].mxu0
        %1045 = vmatprep.mubr.bf16.mxu0 0
        %1046 = vmatmul.mubr.bf16.gmra.mrb[0].mxu0 %v914
        %v1047 = vpop.f32.mrb[0].mxu0
        %v1048 = vadd.f32 0.0, %v1047
        %v1049 = vpop.f32.mrb[0].mxu0
        %v1050 = vpop.f32.mrb[0].mxu0
        %v1051 = vadd.f32 0.0, %v1050
        %v1052 = vpop.f32.mrb[0].mxu0
        %1053 = vdwg.mxu0
        %v1054 = vpack.c.bf16 %v1027, %v1024
        %v1055 = vpack.c.bf16 %v1035, %v1032
        %v1056 = vpack.c.bf16 %v1043, %v1040
        %v1057 = vpack.c.bf16 %v1051, %v1048
        %v1058 = vmul.f32 %v641, %v951
        %v1059 = vmul.f32 %v642, %v953
        %v1060 = vmul.f32 %v643, %v955
        %v1061 = vmul.f32 %v644, %v957
        %v1062 = vmul.f32 %v645, %v961
        %v1063 = vmul.f32 %v646, %v963
        %v1064 = vmul.f32 %v647, %v965
        %v1065 = vmul.f32 %v648, %v967
        %v1066 = vmul.f32 %v649, %v971
        %v1067 = vmul.f32 %v650, %v973
        %v1068 = vmul.f32 %v651, %v975
        %v1069 = vmul.f32 %v652, %v977
        %v1070 = vmul.f32 %v653, %v981
        %v1071 = vmul.f32 %v654, %v983
        %v1072 = vmul.f32 %v655, %v985
        %v1073 = vmul.f32 %v656, %v987
        %v1075 = vsel %vm539, %v1054, 0
        %v1078 = vsel %vm539, %v1055, 0
        %v1081 = vsel %vm539, %v1056, 0
        %v1084 = vsel %vm539, %v1057, 0
        %1086 = vmatprep.subr.bf16.mxu0 %v658
        %1087 = vmatpush1.bf16.msra.mxu0 %v657
        %1088 = vmatprep.subr.bf16.mxu0 %v660
        %1089 = vmatpush1.bf16.msra.mxu0 %v659
        %1090 = vmatprep.subr.bf16.mxu0 %v662
        %1091 = vmatpush1.bf16.msra.mxu0 %v661
        %1092 = vmatprep.subr.bf16.mxu0 %v664
        %1093 = vmatpush1.bf16.msra.mxu0 %v663
        %1094 = vmatprep.subr.bf16.mxu0 0
        %1095 = vmatpush1.bf16.msra.mxu0 0
        %1096 = vmatprep.subr.bf16.mxu0 0
        %1097 = vmatpush1.bf16.msra.mxu0 0
        %1098 = vmatprep.subr.bf16.mxu0 0
        %1099 = vmatpush1.bf16.msra.mxu0 0
        %1100 = vmatprep.subr.bf16.mxu0 0
        %1101 = vmatpush1.bf16.msra.mxu0 0
        %1102 = vmatprep.subr.bf16.mxu0 0
        %1103 = vmatpush1.bf16.msra.mxu0 0
        %1104 = vmatprep.subr.bf16.mxu0 0
        %1105 = vmatpush1.bf16.msra.mxu0 0
        %1106 = vmatprep.subr.bf16.mxu0 0
        %1107 = vmatpush1.bf16.msra.mxu0 0
        %1108 = vmatprep.subr.bf16.mxu0 0
        %1109 = vmatpush1.bf16.msra.mxu0 0
        %1110 = vmatprep.subr.bf16.mxu0 0
        %1111 = vmatpush1.bf16.msra.mxu0 0
        %1112 = vmatprep.subr.bf16.mxu0 0
        %1113 = vmatpush1.bf16.msra.mxu0 0
        %1114 = vmatprep.subr.bf16.mxu0 0
        %1115 = vmatpush1.bf16.msra.mxu0 0
        %1116 = vmatprep.subr.bf16.mxu0 0
        %1117 = vmatpush1.bf16.msra.mxu0 0
        %1118 = vmatprep.mubr.bf16.mxu0 0
        %1119 = vmatmul.mubr.bf16.gmra.mrb[0].mxu0 %v1075
        %v1120 = vpop.f32.mrb[0].mxu0
        %v1121 = vadd.f32 1e-06, %v1120
        %v1122 = vpop.f32.mrb[0].mxu0
        %v1123 = vadd.f32 1e-06, %v1122
        %v1124 = vpop.f32.mrb[0].mxu0
        %v1125 = vadd.f32 1e-06, %v1124
        %v1126 = vpop.f32.mrb[0].mxu0
        %v1127 = vadd.f32 1e-06, %v1126
        %1128 = vmatprep.mubr.bf16.mxu0 0
        %1129 = vmatmul.mubr.bf16.gmra.mrb[0].mxu0 %v1078
        %v1130 = vpop.f32.mrb[0].mxu0
        %v1131 = vadd.f32 1e-06, %v1130
        %v1132 = vpop.f32.mrb[0].mxu0
        %v1133 = vadd.f32 1e-06, %v1132
        %v1134 = vpop.f32.mrb[0].mxu0
        %v1135 = vadd.f32 1e-06, %v1134
        %v1136 = vpop.f32.mrb[0].mxu0
        %v1137 = vadd.f32 1e-06, %v1136
        %1138 = vmatprep.mubr.bf16.mxu0 0
        %1139 = vmatmul.mubr.bf16.gmra.mrb[0].mxu0 %v1081
        %v1140 = vpop.f32.mrb[0].mxu0
        %v1141 = vadd.f32 1e-06, %v1140
        %v1142 = vpop.f32.mrb[0].mxu0
        %v1143 = vadd.f32 1e-06, %v1142
        %v1144 = vpop.f32.mrb[0].mxu0
        %v1145 = vadd.f32 1e-06, %v1144
        %v1146 = vpop.f32.mrb[0].mxu0
        %v1147 = vadd.f32 1e-06, %v1146
        %1148 = vmatprep.mubr.bf16.mxu0 0
        %1149 = vmatmul.mubr.bf16.gmra.mrb[0].mxu0 %v1084
        %v1150 = vpop.f32.mrb[0].mxu0
        %v1151 = vadd.f32 1e-06, %v1150
        %v1152 = vpop.f32.mrb[0].mxu0
        %v1153 = vadd.f32 1e-06, %v1152
        %v1154 = vpop.f32.mrb[0].mxu0
        %v1155 = vadd.f32 1e-06, %v1154
        %v1156 = vpop.f32.mrb[0].mxu0
        %v1157 = vadd.f32 1e-06, %v1156
        %1158 = vdwg.mxu0
        %v1159 = vrcp.pop %v1121
        %v1160 = vrcp.pop %v1123
        %v1161 = vrcp.pop %v1125
        %v1162 = vrcp.pop %v1127
        %v1163 = vrcp.pop %v1131
        %v1164 = vrcp.pop %v1133
        %v1165 = vrcp.pop %v1135
        %v1166 = vrcp.pop %v1137
        %v1167 = vrcp.pop %v1141
        %v1168 = vrcp.pop %v1143
        %v1169 = vrcp.pop %v1145
        %v1170 = vrcp.pop %v1147
        %v1171 = vrcp.pop %v1151
        %v1172 = vrcp.pop %v1153
        %v1173 = vrcp.pop %v1155
        %v1174 = vrcp.pop %v1157
        %v1175 = vmul.f32 %v1058, %v1159
        %v1176 = vmul.f32 %v1059, %v1160
        %v1177 = vmul.f32 %v1060, %v1161
        %v1178 = vmul.f32 %v1061, %v1162
        %v1179 = vmul.f32 %v1062, %v1163
        %v1180 = vmul.f32 %v1063, %v1164
        %v1181 = vmul.f32 %v1064, %v1165
        %v1182 = vmul.f32 %v1065, %v1166
        %v1183 = vmul.f32 %v1066, %v1167
        %v1184 = vmul.f32 %v1067, %v1168
        %v1185 = vmul.f32 %v1068, %v1169
        %v1186 = vmul.f32 %v1069, %v1170
        %v1187 = vmul.f32 %v1070, %v1171
        %v1188 = vmul.f32 %v1071, %v1172
        %v1189 = vmul.f32 %v1072, %v1173
        %v1190 = vmul.f32 %v1073, %v1174
        %v1191 = vpack.c.bf16 %v1177, %v1175
        %v1192 = vpack.c.bf16 %v1178, %v1176
        %v1193 = vpack.c.bf16 %v1181, %v1179
        %v1194 = vpack.c.bf16 %v1182, %v1180
        %v1195 = vpack.c.bf16 %v1185, %v1183
        %v1196 = vpack.c.bf16 %v1186, %v1184
        %v1197 = vpack.c.bf16 %v1189, %v1187
        %v1198 = vpack.c.bf16 %v1190, %v1188
        %1199 = vmatprep.subr.bf16.mxu0 %v206
        %1200 = vmatpush1.bf16.xpose.msra.mxu0 %v205
        %1201 = vmatprep.subr.bf16.mxu0 0
        %1202 = vmatpush1.bf16.xpose.msra.mxu0 0
        %1203 = vmatprep.subr.bf16.mxu0 0
        %1204 = vmatpush1.bf16.xpose.msra.mxu0 0
        %1205 = vmatprep.subr.bf16.mxu0 0
        %1206 = vmatpush1.bf16.xpose.msra.mxu0 0
        %1207 = vmatprep.subr.bf16.mxu0 0
        %1208 = vmatpush1.bf16.xpose.msra.mxu0 0
        %1209 = vmatprep.subr.bf16.mxu0 0
        %1210 = vmatpush1.bf16.xpose.msra.mxu0 0
        %1211 = vmatprep.subr.bf16.mxu0 0
        %1212 = vmatpush1.bf16.xpose.msra.mxu0 0
        %1213 = vmatprep.subr.bf16.mxu0 0
        %1214 = vmatpush1.bf16.xpose.msra.mxu0 0
        %1215 = vmatprep.subr.bf16.mxu0 0
        %1216 = vmatpush1.bf16.xpose.msra.mxu0 0
        %1217 = vmatprep.subr.bf16.mxu0 0
        %1218 = vmatpush1.bf16.xpose.msra.mxu0 0
        %1219 = vmatprep.subr.bf16.mxu0 0
        %1220 = vmatpush1.bf16.xpose.msra.mxu0 0
        %1221 = vmatprep.subr.bf16.mxu0 0
        %1222 = vmatpush1.bf16.xpose.msra.mxu0 0
        %1223 = vmatprep.subr.bf16.mxu0 0
        %1224 = vmatpush1.bf16.xpose.msra.mxu0 0
        %1225 = vmatprep.subr.bf16.mxu0 0
        %1226 = vmatpush1.bf16.xpose.msra.mxu0 0
        %1227 = vmatprep.subr.bf16.mxu0 0
        %1228 = vmatpush1.bf16.xpose.msra.mxu0 0
        %1229 = vmatprep.subr.bf16.mxu0 0
        %1230 = vmatpush1.bf16.xpose.msra.mxu0 0
        %1231 = vmatprep.mubr.bf16.mxu0 %v1192
        %1232 = vmatmul.mubr.bf16.gmra.mrb[0].mxu0 %v1191
        %v1233 = vpop.f32.mrb[0].mxu0
        %v1234 = vadd.f32 0.0, %v1233
        %v1235 = vpop.f32.mrb[0].mxu0
        %v1236 = vpop.f32.mrb[0].mxu0
        %v1237 = vadd.f32 0.0, %v1236
        %v1238 = vpop.f32.mrb[0].mxu0
        %1239 = vmatprep.mubr.bf16.mxu0 %v1194
        %1240 = vmatmul.mubr.bf16.gmra.mrb[0].mxu0 %v1193
        %v1241 = vpop.f32.mrb[0].mxu0
        %v1242 = vadd.f32 0.0, %v1241
        %v1243 = vpop.f32.mrb[0].mxu0
        %v1244 = vpop.f32.mrb[0].mxu0
        %v1245 = vadd.f32 0.0, %v1244
        %v1246 = vpop.f32.mrb[0].mxu0
        %1247 = vmatprep.mubr.bf16.mxu0 %v1196
        %1248 = vmatmul.mubr.bf16.gmra.mrb[0].mxu0 %v1195
        %v1249 = vpop.f32.mrb[0].mxu0
        %v1250 = vadd.f32 0.0, %v1249
        %v1251 = vpop.f32.mrb[0].mxu0
        %v1252 = vpop.f32.mrb[0].mxu0
        %v1253 = vadd.f32 0.0, %v1252
        %v1254 = vpop.f32.mrb[0].mxu0
        %1255 = vmatprep.mubr.bf16.mxu0 %v1198
        %1256 = vmatmul.mubr.bf16.gmra.mrb[0].mxu0 %v1197
        %v1257 = vpop.f32.mrb[0].mxu0
        %v1258 = vadd.f32 0.0, %v1257
        %v1259 = vpop.f32.mrb[0].mxu0
        %v1260 = vpop.f32.mrb[0].mxu0
        %v1261 = vadd.f32 0.0, %v1260
        %v1262 = vpop.f32.mrb[0].mxu0
        %1263 = vdwg.mxu0
        %1264 = vmatprep.subr.bf16.mxu0 %v1192
        %1265 = vmatpush1.bf16.xpose.msra.mxu0 %v1191
        %1266 = vmatprep.subr.bf16.mxu0 %v1194
        %1267 = vmatpush1.bf16.xpose.msra.mxu0 %v1193
        %1268 = vmatprep.subr.bf16.mxu0 %v1196
        %1269 = vmatpush1.bf16.xpose.msra.mxu0 %v1195
        %1270 = vmatprep.subr.bf16.mxu0 %v1198
        %1271 = vmatpush1.bf16.xpose.msra.mxu0 %v1197
        %1272 = vmatprep.subr.bf16.mxu0 0
        %1273 = vmatpush1.bf16.xpose.msra.mxu0 0
        %1274 = vmatprep.subr.bf16.mxu0 0
        %1275 = vmatpush1.bf16.xpose.msra.mxu0 0
        %1276 = vmatprep.subr.bf16.mxu0 0
        %1277 = vmatpush1.bf16.xpose.msra.mxu0 0
        %1278 = vmatprep.subr.bf16.mxu0 0
        %1279 = vmatpush1.bf16.xpose.msra.mxu0 0
        %1280 = vmatprep.subr.bf16.mxu0 0
        %1281 = vmatpush1.bf16.xpose.msra.mxu0 0
        %1282 = vmatprep.subr.bf16.mxu0 0
        %1283 = vmatpush1.bf16.xpose.msra.mxu0 0
        %1284 = vmatprep.subr.bf16.mxu0 0
        %1285 = vmatpush1.bf16.xpose.msra.mxu0 0
        %1286 = vmatprep.subr.bf16.mxu0 0
        %1287 = vmatpush1.bf16.xpose.msra.mxu0 0
        %1288 = vmatprep.subr.bf16.mxu0 0
        %1289 = vmatpush1.bf16.xpose.msra.mxu0 0
        %1290 = vmatprep.subr.bf16.mxu0 0
        %1291 = vmatpush1.bf16.xpose.msra.mxu0 0
        %1292 = vmatprep.subr.bf16.mxu0 0
        %1293 = vmatpush1.bf16.xpose.msra.mxu0 0
        %1294 = vmatprep.subr.bf16.mxu0 0
        %1295 = vmatpush1.bf16.xpose.msra.mxu0 0
        %1296 = vmatprep.mubr.bf16.mxu0 %v1192
        %1297 = vmatmul.mubr.bf16.gmra.mrb[0].mxu0 %v1191
        %v1298 = vpop.f32.mrb[0].mxu0
        %v1299 = vadd.f32 0.0, %v1298
        %v1300 = vpop.f32.mrb[0].mxu0
        %v1301 = vpop.f32.mrb[0].mxu0
        %v1302 = vadd.f32 0.0, %v1301
        %v1303 = vpop.f32.mrb[0].mxu0
        %1304 = vmatprep.mubr.bf16.mxu0 %v1194
        %1305 = vmatmul.mubr.bf16.gmra.mrb[0].mxu0 %v1193
        %v1306 = vpop.f32.mrb[0].mxu0
        %v1307 = vadd.f32 0.0, %v1306
        %v1308 = vpop.f32.mrb[0].mxu0
        %v1309 = vpop.f32.mrb[0].mxu0
        %v1310 = vadd.f32 0.0, %v1309
        %v1311 = vpop.f32.mrb[0].mxu0
        %1312 = vmatprep.mubr.bf16.mxu0 %v1196
        %1313 = vmatmul.mubr.bf16.gmra.mrb[0].mxu0 %v1195
        %v1314 = vpop.f32.mrb[0].mxu0
        %v1315 = vadd.f32 0.0, %v1314
        %v1316 = vpop.f32.mrb[0].mxu0
        %v1317 = vpop.f32.mrb[0].mxu0
        %v1318 = vadd.f32 0.0, %v1317
        %v1319 = vpop.f32.mrb[0].mxu0
        %1320 = vmatprep.mubr.bf16.mxu0 %v1198
        %1321 = vmatmul.mubr.bf16.gmra.mrb[0].mxu0 %v1197
        %v1322 = vpop.f32.mrb[0].mxu0
        %v1323 = vadd.f32 0.0, %v1322
        %v1324 = vpop.f32.mrb[0].mxu0
        %v1325 = vpop.f32.mrb[0].mxu0
        %v1326 = vadd.f32 0.0, %v1325
        %v1327 = vpop.f32.mrb[0].mxu0
        %1328 = vdwg.mxu0
        %v1329 = vpack.c.bf16 %v1302, %v1299
        %v1330 = vpack.c.bf16 %v1310, %v1307
        %v1331 = vpack.c.bf16 %v1318, %v1315
        %v1332 = vpack.c.bf16 %v1326, %v1323
        %v1333 = vmul.f32 %v892, %v1234
        %v1334 = vmul.f32 %v893, %v1237
        %v1335 = vmul.f32 %v894, %v1242
        %v1336 = vmul.f32 %v895, %v1245
        %v1337 = vmul.f32 %v896, %v1250
        %v1338 = vmul.f32 %v897, %v1253
        %v1339 = vmul.f32 %v898, %v1258
        %v1340 = vmul.f32 %v899, %v1261
        %v1342 = vsel %vm539, %v1329, 0
        %v1345 = vsel %vm539, %v1330, 0
        %v1348 = vsel %vm539, %v1331, 0
        %v1351 = vsel %vm539, %v1332, 0
        %1353 = vmatprep.subr.bf16.mxu0 0
        %1354 = vmatpush1.bf16.msra.mxu0 %v900
        %1355 = vmatprep.subr.bf16.mxu0 0
        %1356 = vmatpush1.bf16.msra.mxu0 %v901
        %1357 = vmatprep.subr.bf16.mxu0 0
        %1358 = vmatpush1.bf16.msra.mxu0 %v902
        %1359 = vmatprep.subr.bf16.mxu0 0
        %1360 = vmatpush1.bf16.msra.mxu0 %v903
        %1361 = vmatprep.subr.bf16.mxu0 0
        %1362 = vmatpush1.bf16.msra.mxu0 0
        %1363 = vmatprep.subr.bf16.mxu0 0
        %1364 = vmatpush1.bf16.msra.mxu0 0
        %1365 = vmatprep.subr.bf16.mxu0 0
        %1366 = vmatpush1.bf16.msra.mxu0 0
        %1367 = vmatprep.subr.bf16.mxu0 0
        %1368 = vmatpush1.bf16.msra.mxu0 0
        %1369 = vmatprep.subr.bf16.mxu0 0
        %1370 = vmatpush1.bf16.msra.mxu0 0
        %1371 = vmatprep.subr.bf16.mxu0 0
        %1372 = vmatpush1.bf16.msra.mxu0 0
        %1373 = vmatprep.subr.bf16.mxu0 0
        %1374 = vmatpush1.bf16.msra.mxu0 0
        %1375 = vmatprep.subr.bf16.mxu0 0
        %1376 = vmatpush1.bf16.msra.mxu0 0
        %1377 = vmatprep.subr.bf16.mxu0 0
        %1378 = vmatpush1.bf16.msra.mxu0 0
        %1379 = vmatprep.subr.bf16.mxu0 0
        %1380 = vmatpush1.bf16.msra.mxu0 0
        %1381 = vmatprep.subr.bf16.mxu0 0
        %1382 = vmatpush1.bf16.msra.mxu0 0
        %1383 = vmatprep.subr.bf16.mxu0 0
        %1384 = vmatpush1.bf16.msra.mxu0 0
        %1385 = vmatprep.mubr.bf16.mxu0 0
        %1386 = vmatmul.mubr.bf16.gmra.mrb[0].mxu0 %v1342
        %v1387 = vpop.f32.mrb[0].mxu0
        %v1388 = vadd.f32 1e-06, %v1387
        %v1389 = vpop.f32.mrb[0].mxu0
        %v1390 = vpop.f32.mrb[0].mxu0
        %v1391 = vadd.f32 1e-06, %v1390
        %v1392 = vpop.f32.mrb[0].mxu0
        %1393 = vmatprep.mubr.bf16.mxu0 0
        %1394 = vmatmul.mubr.bf16.gmra.mrb[0].mxu0 %v1345
        %v1395 = vpop.f32.mrb[0].mxu0
        %v1396 = vadd.f32 1e-06, %v1395
        %v1397 = vpop.f32.mrb[0].mxu0
        %v1398 = vpop.f32.mrb[0].mxu0
        %v1399 = vadd.f32 1e-06, %v1398
        %v1400 = vpop.f32.mrb[0].mxu0
        %1401 = vmatprep.mubr.bf16.mxu0 0
        %1402 = vmatmul.mubr.bf16.gmra.mrb[0].mxu0 %v1348
        %v1403 = vpop.f32.mrb[0].mxu0
        %v1404 = vadd.f32 1e-06, %v1403
        %v1405 = vpop.f32.mrb[0].mxu0
        %v1406 = vpop.f32.mrb[0].mxu0
        %v1407 = vadd.f32 1e-06, %v1406
        %v1408 = vpop.f32.mrb[0].mxu0
        %1409 = vmatprep.mubr.bf16.mxu0 0
        %1410 = vmatmul.mubr.bf16.gmra.mrb[0].mxu0 %v1351
        %v1411 = vpop.f32.mrb[0].mxu0
        %v1412 = vadd.f32 1e-06, %v1411
        %v1413 = vpop.f32.mrb[0].mxu0
        %v1414 = vpop.f32.mrb[0].mxu0
        %v1415 = vadd.f32 1e-06, %v1414
        %v1416 = vpop.f32.mrb[0].mxu0
        %1417 = vdwg.mxu0
        %v1418 = vrcp.pop %v1388
        %v1419 = vrcp.pop %v1391
        %v1420 = vrcp.pop %v1396
        %v1421 = vrcp.pop %v1399
        %v1422 = vrcp.pop %v1404
        %v1423 = vrcp.pop %v1407
        %v1424 = vrcp.pop %v1412
        %v1425 = vrcp.pop %v1415
        %v1426 = vmul.f32 %v1333, %v1418
        %v1427 = vmul.f32 %v1334, %v1419
        %v1428 = vmul.f32 %v1335, %v1420
        %v1429 = vmul.f32 %v1336, %v1421
        %v1430 = vmul.f32 %v1337, %v1422
        %v1431 = vmul.f32 %v1338, %v1423
        %v1432 = vmul.f32 %v1339, %v1424
        %v1433 = vmul.f32 %v1340, %v1425
        %v1434 = vpack.c.bf16 %v1427, %v1426
        %v1435 = vpack.c.bf16 %v1429, %v1428
        %v1436 = vpack.c.bf16 %v1431, %v1430
        %v1437 = vpack.c.bf16 %v1433, %v1432
        %v1439 = vsel %vm219, %v1434, 0
        %v1442 = vsel %vm219, %v1435, 0
        %v1445 = vsel %vm219, %v1436, 0
        %v1448 = vsel %vm219, %v1437, 0
        %1450 = vmatprep.subr.bf16.mxu0 %v237
        %1451 = vmatpush1.bf16.msra.mxu0 %v234
        %1452 = vmatprep.subr.bf16.mxu0 0
        %1453 = vmatpush1.bf16.msra.mxu0 0
        %1454 = vmatprep.subr.bf16.mxu0 0
        %1455 = vmatpush1.bf16.msra.mxu0 0
        %1456 = vmatprep.subr.bf16.mxu0 0
        %1457 = vmatpush1.bf16.msra.mxu0 0
        %1458 = vmatprep.subr.bf16.mxu0 0
        %1459 = vmatpush1.bf16.msra.mxu0 0
        %1460 = vmatprep.subr.bf16.mxu0 0
        %1461 = vmatpush1.bf16.msra.mxu0 0
        %1462 = vmatprep.subr.bf16.mxu0 0
        %1463 = vmatpush1.bf16.msra.mxu0 0
        %1464 = vmatprep.subr.bf16.mxu0 0
        %1465 = vmatpush1.bf16.msra.mxu0 0
        %1466 = vmatprep.subr.bf16.mxu0 0
        %1467 = vmatpush1.bf16.msra.mxu0 0
        %1468 = vmatprep.subr.bf16.mxu0 0
        %1469 = vmatpush1.bf16.msra.mxu0 0
        %1470 = vmatprep.subr.bf16.mxu0 0
        %1471 = vmatpush1.bf16.msra.mxu0 0
        %1472 = vmatprep.subr.bf16.mxu0 0
        %1473 = vmatpush1.bf16.msra.mxu0 0
        %1474 = vmatprep.subr.bf16.mxu0 0
        %1475 = vmatpush1.bf16.msra.mxu0 0
        %1476 = vmatprep.subr.bf16.mxu0 0
        %1477 = vmatpush1.bf16.msra.mxu0 0
        %1478 = vmatprep.subr.bf16.mxu0 0
        %1479 = vmatpush1.bf16.msra.mxu0 0
        %1480 = vmatprep.subr.bf16.mxu0 0
        %1481 = vmatpush1.bf16.msra.mxu0 0
        %1482 = vmatprep.mubr.bf16.mxu0 0
        %1483 = vmatmul.mubr.bf16.gmra.mrb[0].mxu0 %v1439
        %v1484 = vpop.f32.mrb[0].mxu0
        %v1485 = vadd.f32 0.0, %v1484
        %v1486 = vpop.f32.mrb[0].mxu0
        %v1487 = vadd.f32 0.0, %v1486
        %v1488 = vpop.f32.mrb[0].mxu0
        %v1489 = vadd.f32 0.0, %v1488
        %v1490 = vpop.f32.mrb[0].mxu0
        %v1491 = vadd.f32 0.0, %v1490
        %1492 = vmatprep.mubr.bf16.mxu0 0
        %1493 = vmatmul.mubr.bf16.gmra.mrb[0].mxu0 %v1442
        %v1494 = vpop.f32.mrb[0].mxu0
        %v1495 = vadd.f32 0.0, %v1494
        %v1496 = vpop.f32.mrb[0].mxu0
        %v1497 = vadd.f32 0.0, %v1496
        %v1498 = vpop.f32.mrb[0].mxu0
        %v1499 = vadd.f32 0.0, %v1498
        %v1500 = vpop.f32.mrb[0].mxu0
        %v1501 = vadd.f32 0.0, %v1500
        %1502 = vmatprep.mubr.bf16.mxu0 0
        %1503 = vmatmul.mubr.bf16.gmra.mrb[0].mxu0 %v1445
        %v1504 = vpop.f32.mrb[0].mxu0
        %v1505 = vadd.f32 0.0, %v1504
        %v1506 = vpop.f32.mrb[0].mxu0
        %v1507 = vadd.f32 0.0, %v1506
        %v1508 = vpop.f32.mrb[0].mxu0
        %v1509 = vadd.f32 0.0, %v1508
        %v1510 = vpop.f32.mrb[0].mxu0
        %v1511 = vadd.f32 0.0, %v1510
        %1512 = vmatprep.mubr.bf16.mxu0 0
        %1513 = vmatmul.mubr.bf16.gmra.mrb[0].mxu0 %v1448
        %v1514 = vpop.f32.mrb[0].mxu0
        %v1515 = vadd.f32 0.0, %v1514
        %v1516 = vpop.f32.mrb[0].mxu0
        %v1517 = vadd.f32 0.0, %v1516
        %v1518 = vpop.f32.mrb[0].mxu0
        %v1519 = vadd.f32 0.0, %v1518
        %v1520 = vpop.f32.mrb[0].mxu0
        %v1521 = vadd.f32 0.0, %v1520
        %1522 = vdwg.mxu0
        %1523 = vmatprep.subr.bf16.mxu0 0
        %1524 = vmatpush1.bf16.xpose.msra.mxu0 %v1439
        %1525 = vmatprep.subr.bf16.mxu0 0
        %1526 = vmatpush1.bf16.xpose.msra.mxu0 %v1442
        %1527 = vmatprep.subr.bf16.mxu0 0
        %1528 = vmatpush1.bf16.xpose.msra.mxu0 %v1445
        %1529 = vmatprep.subr.bf16.mxu0 0
        %1530 = vmatpush1.bf16.xpose.msra.mxu0 %v1448
        %1531 = vmatprep.subr.bf16.mxu0 0
        %1532 = vmatpush1.bf16.xpose.msra.mxu0 0
        %1533 = vmatprep.subr.bf16.mxu0 0
        %1534 = vmatpush1.bf16.xpose.msra.mxu0 0
        %1535 = vmatprep.subr.bf16.mxu0 0
        %1536 = vmatpush1.bf16.xpose.msra.mxu0 0
        %1537 = vmatprep.subr.bf16.mxu0 0
        %1538 = vmatpush1.bf16.xpose.msra.mxu0 0
        %1539 = vmatprep.subr.bf16.mxu0 0
        %1540 = vmatpush1.bf16.xpose.msra.mxu0 0
        %1541 = vmatprep.subr.bf16.mxu0 0
        %1542 = vmatpush1.bf16.xpose.msra.mxu0 0
        %1543 = vmatprep.subr.bf16.mxu0 0
        %1544 = vmatpush1.bf16.xpose.msra.mxu0 0
        %1545 = vmatprep.subr.bf16.mxu0 0
        %1546 = vmatpush1.bf16.xpose.msra.mxu0 0
        %1547 = vmatprep.subr.bf16.mxu0 0
        %1548 = vmatpush1.bf16.xpose.msra.mxu0 0
        %1549 = vmatprep.subr.bf16.mxu0 0
        %1550 = vmatpush1.bf16.xpose.msra.mxu0 0
        %1551 = vmatprep.subr.bf16.mxu0 0
        %1552 = vmatpush1.bf16.xpose.msra.mxu0 0
        %1553 = vmatprep.subr.bf16.mxu0 0
        %1554 = vmatpush1.bf16.xpose.msra.mxu0 0
        %1555 = vmatprep.mubr.bf16.mxu0 0
        %1556 = vmatmul.mubr.bf16.gmra.mrb[0].mxu0 %v1439
        %v1557 = vpop.f32.mrb[0].mxu0
        %v1558 = vadd.f32 0.0, %v1557
        %v1559 = vpop.f32.mrb[0].mxu0
        %v1560 = vpop.f32.mrb[0].mxu0
        %v1561 = vadd.f32 0.0, %v1560
        %v1562 = vpop.f32.mrb[0].mxu0
        %1563 = vmatprep.mubr.bf16.mxu0 0
        %1564 = vmatmul.mubr.bf16.gmra.mrb[0].mxu0 %v1442
        %v1565 = vpop.f32.mrb[0].mxu0
        %v1566 = vadd.f32 0.0, %v1565
        %v1567 = vpop.f32.mrb[0].mxu0
        %v1568 = vpop.f32.mrb[0].mxu0
        %v1569 = vadd.f32 0.0, %v1568
        %v1570 = vpop.f32.mrb[0].mxu0
        %1571 = vmatprep.mubr.bf16.mxu0 0
        %1572 = vmatmul.mubr.bf16.gmra.mrb[0].mxu0 %v1445
        %v1573 = vpop.f32.mrb[0].mxu0
        %v1574 = vadd.f32 0.0, %v1573
        %v1575 = vpop.f32.mrb[0].mxu0
        %v1576 = vpop.f32.mrb[0].mxu0
        %v1577 = vadd.f32 0.0, %v1576
        %v1578 = vpop.f32.mrb[0].mxu0
        %1579 = vmatprep.mubr.bf16.mxu0 0
        %1580 = vmatmul.mubr.bf16.gmra.mrb[0].mxu0 %v1448
        %v1581 = vpop.f32.mrb[0].mxu0
        %v1582 = vadd.f32 0.0, %v1581
        %v1583 = vpop.f32.mrb[0].mxu0
        %v1584 = vpop.f32.mrb[0].mxu0
        %v1585 = vadd.f32 0.0, %v1584
        %v1586 = vpop.f32.mrb[0].mxu0
        %1587 = vdwg.mxu0
        %v1588 = vpack.c.bf16 %v1561, %v1558
        %v1589 = vpack.c.bf16 %v1569, %v1566
        %v1590 = vpack.c.bf16 %v1577, %v1574
        %v1591 = vpack.c.bf16 %v1585, %v1582
        %v1592 = vmul.f32 %v1175, %v1485
        %v1593 = vmul.f32 %v1176, %v1487
        %v1594 = vmul.f32 %v1177, %v1489
        %v1595 = vmul.f32 %v1178, %v1491
        %v1596 = vmul.f32 %v1179, %v1495
        %v1597 = vmul.f32 %v1180, %v1497
        %v1598 = vmul.f32 %v1181, %v1499
        %v1599 = vmul.f32 %v1182, %v1501
        %v1600 = vmul.f32 %v1183, %v1505
        %v1601 = vmul.f32 %v1184, %v1507
        %v1602 = vmul.f32 %v1185, %v1509
        %v1603 = vmul.f32 %v1186, %v1511
        %v1604 = vmul.f32 %v1187, %v1515
        %v1605 = vmul.f32 %v1188, %v1517
        %v1606 = vmul.f32 %v1189, %v1519
        %v1607 = vmul.f32 %v1190, %v1521
        %v1609 = vsel %vm539, %v1588, 0
        %v1612 = vsel %vm539, %v1589, 0
        %v1615 = vsel %vm539, %v1590, 0
        %v1618 = vsel %vm539, %v1591, 0
        %1620 = vmatprep.subr.bf16.mxu0 %v1192
        %1621 = vmatpush1.bf16.msra.mxu0 %v1191
        %1622 = vmatprep.subr.bf16.mxu0 %v1194
        %1623 = vmatpush1.bf16.msra.mxu0 %v1193
        %1624 = vmatprep.subr.bf16.mxu0 %v1196
        %1625 = vmatpush1.bf16.msra.mxu0 %v1195
        %1626 = vmatprep.subr.bf16.mxu0 %v1198
        %1627 = vmatpush1.bf16.msra.mxu0 %v1197
        %1628 = vmatprep.subr.bf16.mxu0 0
        %1629 = vmatpush1.bf16.msra.mxu0 0
        %1630 = vmatprep.subr.bf16.mxu0 0
        %1631 = vmatpush1.bf16.msra.mxu0 0
        %1632 = vmatprep.subr.bf16.mxu0 0
        %1633 = vmatpush1.bf16.msra.mxu0 0
        %1634 = vmatprep.subr.bf16.mxu0 0
        %1635 = vmatpush1.bf16.msra.mxu0 0
        %1636 = vmatprep.subr.bf16.mxu0 0
        %1637 = vmatpush1.bf16.msra.mxu0 0
        %1638 = vmatprep.subr.bf16.mxu0 0
        %1639 = vmatpush1.bf16.msra.mxu0 0
        %1640 = vmatprep.subr.bf16.mxu0 0
        %1641 = vmatpush1.bf16.msra.mxu0 0
        %1642 = vmatprep.subr.bf16.mxu0 0
        %1643 = vmatpush1.bf16.msra.mxu0 0
        %1644 = vmatprep.subr.bf16.mxu0 0
        %1645 = vmatpush1.bf16.msra.mxu0 0
        %1646 = vmatprep.subr.bf16.mxu0 0
        %1647 = vmatpush1.bf16.msra.mxu0 0
        %1648 = vmatprep.subr.bf16.mxu0 0
        %1649 = vmatpush1.bf16.msra.mxu0 0
        %1650 = vmatprep.subr.bf16.mxu0 0
        %1651 = vmatpush1.bf16.msra.mxu0 0
        %1652 = vmatprep.mubr.bf16.mxu0 0
        %1653 = vmatmul.mubr.bf16.gmra.mrb[0].mxu0 %v1609
        %v1654 = vpop.f32.mrb[0].mxu0
        %v1655 = vadd.f32 1e-06, %v1654
        %v1656 = vpop.f32.mrb[0].mxu0
        %v1657 = vadd.f32 1e-06, %v1656
        %v1658 = vpop.f32.mrb[0].mxu0
        %v1659 = vadd.f32 1e-06, %v1658
        %v1660 = vpop.f32.mrb[0].mxu0
        %v1661 = vadd.f32 1e-06, %v1660
        %1662 = vmatprep.mubr.bf16.mxu0 0
        %1663 = vmatmul.mubr.bf16.gmra.mrb[0].mxu0 %v1612
        %v1664 = vpop.f32.mrb[0].mxu0
        %v1665 = vadd.f32 1e-06, %v1664
        %v1666 = vpop.f32.mrb[0].mxu0
        %v1667 = vadd.f32 1e-06, %v1666
        %v1668 = vpop.f32.mrb[0].mxu0
        %v1669 = vadd.f32 1e-06, %v1668
        %v1670 = vpop.f32.mrb[0].mxu0
        %v1671 = vadd.f32 1e-06, %v1670
        %1672 = vmatprep.mubr.bf16.mxu0 0
        %1673 = vmatmul.mubr.bf16.gmra.mrb[0].mxu0 %v1615
        %v1674 = vpop.f32.mrb[0].mxu0
        %v1675 = vadd.f32 1e-06, %v1674
        %v1676 = vpop.f32.mrb[0].mxu0
        %v1677 = vadd.f32 1e-06, %v1676
        %v1678 = vpop.f32.mrb[0].mxu0
        %v1679 = vadd.f32 1e-06, %v1678
        %v1680 = vpop.f32.mrb[0].mxu0
        %v1681 = vadd.f32 1e-06, %v1680
        %1682 = vmatprep.mubr.bf16.mxu0 0
        %1683 = vmatmul.mubr.bf16.gmra.mrb[0].mxu0 %v1618
        %v1684 = vpop.f32.mrb[0].mxu0
        %v1685 = vadd.f32 1e-06, %v1684
        %v1686 = vpop.f32.mrb[0].mxu0
        %v1687 = vadd.f32 1e-06, %v1686
        %v1688 = vpop.f32.mrb[0].mxu0
        %v1689 = vadd.f32 1e-06, %v1688
        %v1690 = vpop.f32.mrb[0].mxu0
        %v1691 = vadd.f32 1e-06, %v1690
        %1692 = vdwg.mxu0
        %v1693 = vrcp.pop %v1655
        %v1694 = vrcp.pop %v1657
        %v1695 = vrcp.pop %v1659
        %v1696 = vrcp.pop %v1661
        %v1697 = vrcp.pop %v1665
        %v1698 = vrcp.pop %v1667
        %v1699 = vrcp.pop %v1669
        %v1700 = vrcp.pop %v1671
        %v1701 = vrcp.pop %v1675
        %v1702 = vrcp.pop %v1677
        %v1703 = vrcp.pop %v1679
        %v1704 = vrcp.pop %v1681
        %v1705 = vrcp.pop %v1685
        %v1706 = vrcp.pop %v1687
        %v1707 = vrcp.pop %v1689
        %v1708 = vrcp.pop %v1691
        %v1709 = vmul.f32 %v1592, %v1693
        %v1710 = vmul.f32 %v1593, %v1694
        %v1711 = vmul.f32 %v1594, %v1695
        %v1712 = vmul.f32 %v1595, %v1696
        %v1713 = vmul.f32 %v1596, %v1697
        %v1714 = vmul.f32 %v1597, %v1698
        %v1715 = vmul.f32 %v1598, %v1699
        %v1716 = vmul.f32 %v1599, %v1700
        %v1717 = vmul.f32 %v1600, %v1701
        %v1718 = vmul.f32 %v1601, %v1702
        %v1719 = vmul.f32 %v1602, %v1703
        %v1720 = vmul.f32 %v1603, %v1704
        %v1721 = vmul.f32 %v1604, %v1705
        %v1722 = vmul.f32 %v1605, %v1706
        %v1723 = vmul.f32 %v1606, %v1707
        %v1724 = vmul.f32 %v1607, %v1708
        %v1725 = vpack.c.bf16 %v1711, %v1709
        %v1726 = vpack.c.bf16 %v1712, %v1710
        %v1727 = vpack.c.bf16 %v1715, %v1713
        %v1728 = vpack.c.bf16 %v1716, %v1714
        %v1729 = vpack.c.bf16 %v1719, %v1717
        %v1730 = vpack.c.bf16 %v1720, %v1718
        %v1731 = vpack.c.bf16 %v1723, %v1721
        %v1732 = vpack.c.bf16 %v1724, %v1722
        %1733 = vmatprep.subr.bf16.mxu0 %v206
        %1734 = vmatpush1.bf16.xpose.msra.mxu0 %v205
        %1735 = vmatprep.subr.bf16.mxu0 0
        %1736 = vmatpush1.bf16.xpose.msra.mxu0 0
        %1737 = vmatprep.subr.bf16.mxu0 0
        %1738 = vmatpush1.bf16.xpose.msra.mxu0 0
        %1739 = vmatprep.subr.bf16.mxu0 0
        %1740 = vmatpush1.bf16.xpose.msra.mxu0 0
        %1741 = vmatprep.subr.bf16.mxu0 0
        %1742 = vmatpush1.bf16.xpose.msra.mxu0 0
        %1743 = vmatprep.subr.bf16.mxu0 0
        %1744 = vmatpush1.bf16.xpose.msra.mxu0 0
        %1745 = vmatprep.subr.bf16.mxu0 0
        %1746 = vmatpush1.bf16.xpose.msra.mxu0 0
        %1747 = vmatprep.subr.bf16.mxu0 0
        %1748 = vmatpush1.bf16.xpose.msra.mxu0 0
        %1749 = vmatprep.subr.bf16.mxu0 0
        %1750 = vmatpush1.bf16.xpose.msra.mxu0 0
        %1751 = vmatprep.subr.bf16.mxu0 0
        %1752 = vmatpush1.bf16.xpose.msra.mxu0 0
        %1753 = vmatprep.subr.bf16.mxu0 0
        %1754 = vmatpush1.bf16.xpose.msra.mxu0 0
        %1755 = vmatprep.subr.bf16.mxu0 0
        %1756 = vmatpush1.bf16.xpose.msra.mxu0 0
        %1757 = vmatprep.subr.bf16.mxu0 0
        %1758 = vmatpush1.bf16.xpose.msra.mxu0 0
        %1759 = vmatprep.subr.bf16.mxu0 0
        %1760 = vmatpush1.bf16.xpose.msra.mxu0 0
        %1761 = vmatprep.subr.bf16.mxu0 0
        %1762 = vmatpush1.bf16.xpose.msra.mxu0 0
        %1763 = vmatprep.subr.bf16.mxu0 0
        %1764 = vmatpush1.bf16.xpose.msra.mxu0 0
        %1765 = vmatprep.mubr.bf16.mxu0 %v1726
        %1766 = vmatmul.mubr.bf16.gmra.mrb[0].mxu0 %v1725
        %v1767 = vpop.f32.mrb[0].mxu0
        %v1768 = vadd.f32 0.0, %v1767
        %v1769 = vpop.f32.mrb[0].mxu0
        %v1770 = vpop.f32.mrb[0].mxu0
        %v1771 = vadd.f32 0.0, %v1770
        %v1772 = vpop.f32.mrb[0].mxu0
        %1773 = vmatprep.mubr.bf16.mxu0 %v1728
        %1774 = vmatmul.mubr.bf16.gmra.mrb[0].mxu0 %v1727
        %v1775 = vpop.f32.mrb[0].mxu0
        %v1776 = vadd.f32 0.0, %v1775
        %v1777 = vpop.f32.mrb[0].mxu0
        %v1778 = vpop.f32.mrb[0].mxu0
        %v1779 = vadd.f32 0.0, %v1778
        %v1780 = vpop.f32.mrb[0].mxu0
        %1781 = vmatprep.mubr.bf16.mxu0 %v1730
        %1782 = vmatmul.mubr.bf16.gmra.mrb[0].mxu0 %v1729
        %v1783 = vpop.f32.mrb[0].mxu0
        %v1784 = vadd.f32 0.0, %v1783
        %v1785 = vpop.f32.mrb[0].mxu0
        %v1786 = vpop.f32.mrb[0].mxu0
        %v1787 = vadd.f32 0.0, %v1786
        %v1788 = vpop.f32.mrb[0].mxu0
        %1789 = vmatprep.mubr.bf16.mxu0 %v1732
        %1790 = vmatmul.mubr.bf16.gmra.mrb[0].mxu0 %v1731
        %v1791 = vpop.f32.mrb[0].mxu0
        %v1792 = vadd.f32 0.0, %v1791
        %v1793 = vpop.f32.mrb[0].mxu0
        %v1794 = vpop.f32.mrb[0].mxu0
        %v1795 = vadd.f32 0.0, %v1794
        %v1796 = vpop.f32.mrb[0].mxu0
        %1797 = vdwg.mxu0
        %1798 = vmatprep.subr.bf16.mxu0 %v1726
        %1799 = vmatpush1.bf16.xpose.msra.mxu0 %v1725
        %1800 = vmatprep.subr.bf16.mxu0 %v1728
        %1801 = vmatpush1.bf16.xpose.msra.mxu0 %v1727
        %1802 = vmatprep.subr.bf16.mxu0 %v1730
        %1803 = vmatpush1.bf16.xpose.msra.mxu0 %v1729
        %1804 = vmatprep.subr.bf16.mxu0 %v1732
        %1805 = vmatpush1.bf16.xpose.msra.mxu0 %v1731
        %1806 = vmatprep.subr.bf16.mxu0 0
        %1807 = vmatpush1.bf16.xpose.msra.mxu0 0
        %1808 = vmatprep.subr.bf16.mxu0 0
        %1809 = vmatpush1.bf16.xpose.msra.mxu0 0
        %1810 = vmatprep.subr.bf16.mxu0 0
        %1811 = vmatpush1.bf16.xpose.msra.mxu0 0
        %1812 = vmatprep.subr.bf16.mxu0 0
        %1813 = vmatpush1.bf16.xpose.msra.mxu0 0
        %1814 = vmatprep.subr.bf16.mxu0 0
        %1815 = vmatpush1.bf16.xpose.msra.mxu0 0
        %1816 = vmatprep.subr.bf16.mxu0 0
        %1817 = vmatpush1.bf16.xpose.msra.mxu0 0
        %1818 = vmatprep.subr.bf16.mxu0 0
        %1819 = vmatpush1.bf16.xpose.msra.mxu0 0
        %1820 = vmatprep.subr.bf16.mxu0 0
        %1821 = vmatpush1.bf16.xpose.msra.mxu0 0
        %1822 = vmatprep.subr.bf16.mxu0 0
        %1823 = vmatpush1.bf16.xpose.msra.mxu0 0
        %1824 = vmatprep.subr.bf16.mxu0 0
        %1825 = vmatpush1.bf16.xpose.msra.mxu0 0
        %1826 = vmatprep.subr.bf16.mxu0 0
        %1827 = vmatpush1.bf16.xpose.msra.mxu0 0
        %1828 = vmatprep.subr.bf16.mxu0 0
        %1829 = vmatpush1.bf16.xpose.msra.mxu0 0
        %1830 = vmatprep.mubr.bf16.mxu0 %v1726
        %1831 = vmatmul.mubr.bf16.gmra.mrb[0].mxu0 %v1725
        %v1832 = vpop.f32.mrb[0].mxu0
        %v1833 = vadd.f32 0.0, %v1832
        %v1834 = vpop.f32.mrb[0].mxu0
        %v1835 = vpop.f32.mrb[0].mxu0
        %v1836 = vadd.f32 0.0, %v1835
        %v1837 = vpop.f32.mrb[0].mxu0
        %1838 = vmatprep.mubr.bf16.mxu0 %v1728
        %1839 = vmatmul.mubr.bf16.gmra.mrb[0].mxu0 %v1727
        %v1840 = vpop.f32.mrb[0].mxu0
        %v1841 = vadd.f32 0.0, %v1840
        %v1842 = vpop.f32.mrb[0].mxu0
        %v1843 = vpop.f32.mrb[0].mxu0
        %v1844 = vadd.f32 0.0, %v1843
        %v1845 = vpop.f32.mrb[0].mxu0
        %1846 = vmatprep.mubr.bf16.mxu0 %v1730
        %1847 = vmatmul.mubr.bf16.gmra.mrb[0].mxu0 %v1729
        %v1848 = vpop.f32.mrb[0].mxu0
        %v1849 = vadd.f32 0.0, %v1848
        %v1850 = vpop.f32.mrb[0].mxu0
        %v1851 = vpop.f32.mrb[0].mxu0
        %v1852 = vadd.f32 0.0, %v1851
        %v1853 = vpop.f32.mrb[0].mxu0
        %1854 = vmatprep.mubr.bf16.mxu0 %v1732
        %1855 = vmatmul.mubr.bf16.gmra.mrb[0].mxu0 %v1731
        %v1856 = vpop.f32.mrb[0].mxu0
        %v1857 = vadd.f32 0.0, %v1856
        %v1858 = vpop.f32.mrb[0].mxu0
        %v1859 = vpop.f32.mrb[0].mxu0
        %v1860 = vadd.f32 0.0, %v1859
        %v1861 = vpop.f32.mrb[0].mxu0
        %1862 = vdwg.mxu0
        %v1863 = vpack.c.bf16 %v1836, %v1833
        %v1864 = vpack.c.bf16 %v1844, %v1841
        %v1865 = vpack.c.bf16 %v1852, %v1849
        %v1866 = vpack.c.bf16 %v1860, %v1857
        %v1867 = vmul.f32 %v1426, %v1768
        %v1868 = vmul.f32 %v1427, %v1771
        %v1869 = vmul.f32 %v1428, %v1776
        %v1870 = vmul.f32 %v1429, %v1779
        %v1871 = vmul.f32 %v1430, %v1784
        %v1872 = vmul.f32 %v1431, %v1787
        %v1873 = vmul.f32 %v1432, %v1792
        %v1874 = vmul.f32 %v1433, %v1795
        %v1876 = vsel %vm539, %v1863, 0
        %v1879 = vsel %vm539, %v1864, 0
        %v1882 = vsel %vm539, %v1865, 0
        %v1885 = vsel %vm539, %v1866, 0
        %1887 = vmatprep.subr.bf16.mxu0 0
        %1888 = vmatpush1.bf16.msra.mxu0 %v1434
        %1889 = vmatprep.subr.bf16.mxu0 0
        %1890 = vmatpush1.bf16.msra.mxu0 %v1435
        %1891 = vmatprep.subr.bf16.mxu0 0
        %1892 = vmatpush1.bf16.msra.mxu0 %v1436
        %1893 = vmatprep.subr.bf16.mxu0 0
        %1894 = vmatpush1.bf16.msra.mxu0 %v1437
        %1895 = vmatprep.subr.bf16.mxu0 0
        %1896 = vmatpush1.bf16.msra.mxu0 0
        %1897 = vmatprep.subr.bf16.mxu0 0
        %1898 = vmatpush1.bf16.msra.mxu0 0
        %1899 = vmatprep.subr.bf16.mxu0 0
        %1900 = vmatpush1.bf16.msra.mxu0 0
        %1901 = vmatprep.subr.bf16.mxu0 0
        %1902 = vmatpush1.bf16.msra.mxu0 0
        %1903 = vmatprep.subr.bf16.mxu0 0
        %1904 = vmatpush1.bf16.msra.mxu0 0
        %1905 = vmatprep.subr.bf16.mxu0 0
        %1906 = vmatpush1.bf16.msra.mxu0 0
        %1907 = vmatprep.subr.bf16.mxu0 0
        %1908 = vmatpush1.bf16.msra.mxu0 0
        %1909 = vmatprep.subr.bf16.mxu0 0
        %1910 = vmatpush1.bf16.msra.mxu0 0
        %1911 = vmatprep.subr.bf16.mxu0 0
        %1912 = vmatpush1.bf16.msra.mxu0 0
        %1913 = vmatprep.subr.bf16.mxu0 0
        %1914 = vmatpush1.bf16.msra.mxu0 0
        %1915 = vmatprep.subr.bf16.mxu0 0
        %1916 = vmatpush1.bf16.msra.mxu0 0
        %1917 = vmatprep.subr.bf16.mxu0 0
        %1918 = vmatpush1.bf16.msra.mxu0 0
        %1919 = vmatprep.mubr.bf16.mxu0 0
        %1920 = vmatmul.mubr.bf16.gmra.mrb[0].mxu0 %v1876
        %v1921 = vpop.f32.mrb[0].mxu0
        %v1922 = vadd.f32 1e-06, %v1921
        %v1923 = vpop.f32.mrb[0].mxu0
        %v1924 = vpop.f32.mrb[0].mxu0
        %v1925 = vadd.f32 1e-06, %v1924
        %v1926 = vpop.f32.mrb[0].mxu0
        %1927 = vmatprep.mubr.bf16.mxu0 0
        %1928 = vmatmul.mubr.bf16.gmra.mrb[0].mxu0 %v1879
        %v1929 = vpop.f32.mrb[0].mxu0
        %v1930 = vadd.f32 1e-06, %v1929
        %v1931 = vpop.f32.mrb[0].mxu0
        %v1932 = vpop.f32.mrb[0].mxu0
        %v1933 = vadd.f32 1e-06, %v1932
        %v1934 = vpop.f32.mrb[0].mxu0
        %1935 = vmatprep.mubr.bf16.mxu0 0
        %1936 = vmatmul.mubr.bf16.gmra.mrb[0].mxu0 %v1882
        %v1937 = vpop.f32.mrb[0].mxu0
        %v1938 = vadd.f32 1e-06, %v1937
        %v1939 = vpop.f32.mrb[0].mxu0
        %v1940 = vpop.f32.mrb[0].mxu0
        %v1941 = vadd.f32 1e-06, %v1940
        %v1942 = vpop.f32.mrb[0].mxu0
        %1943 = vmatprep.mubr.bf16.mxu0 0
        %1944 = vmatmul.mubr.bf16.gmra.mrb[0].mxu0 %v1885
        %v1945 = vpop.f32.mrb[0].mxu0
        %v1946 = vadd.f32 1e-06, %v1945
        %v1947 = vpop.f32.mrb[0].mxu0
        %v1948 = vpop.f32.mrb[0].mxu0
        %v1949 = vadd.f32 1e-06, %v1948
        %v1950 = vpop.f32.mrb[0].mxu0
        %1951 = vdwg.mxu0
        %v1952 = vrcp.pop %v1922
        %v1953 = vrcp.pop %v1925
        %v1954 = vrcp.pop %v1930
        %v1955 = vrcp.pop %v1933
        %v1956 = vrcp.pop %v1938
        %v1957 = vrcp.pop %v1941
        %v1958 = vrcp.pop %v1946
        %v1959 = vrcp.pop %v1949
        %v1960 = vmul.f32 %v1867, %v1952
        %v1961 = vmul.f32 %v1868, %v1953
        %v1962 = vmul.f32 %v1869, %v1954
        %v1963 = vmul.f32 %v1870, %v1955
        %v1964 = vmul.f32 %v1871, %v1956
        %v1965 = vmul.f32 %v1872, %v1957
        %v1966 = vmul.f32 %v1873, %v1958
        %v1967 = vmul.f32 %v1874, %v1959
        %v1968 = vpack.c.bf16 %v1961, %v1960
        %v1969 = vpack.c.bf16 %v1963, %v1962
        %v1970 = vpack.c.bf16 %v1965, %v1964
        %v1971 = vpack.c.bf16 %v1967, %v1966
        %v1973 = vsel %vm219, %v1968, 0
        %v1976 = vsel %vm219, %v1969, 0
        %v1979 = vsel %vm219, %v1970, 0
        %v1982 = vsel %vm219, %v1971, 0
        %1984 = vmatprep.subr.bf16.mxu0 %v237
        %1985 = vmatpush1.bf16.msra.mxu0 %v234
        %1986 = vmatprep.subr.bf16.mxu0 0
        %1987 = vmatpush1.bf16.msra.mxu0 0
        %1988 = vmatprep.subr.bf16.mxu0 0
        %1989 = vmatpush1.bf16.msra.mxu0 0
        %1990 = vmatprep.subr.bf16.mxu0 0
        %1991 = vmatpush1.bf16.msra.mxu0 0
        %1992 = vmatprep.subr.bf16.mxu0 0
        %1993 = vmatpush1.bf16.msra.mxu0 0
        %1994 = vmatprep.subr.bf16.mxu0 0
        %1995 = vmatpush1.bf16.msra.mxu0 0
        %1996 = vmatprep.subr.bf16.mxu0 0
        %1997 = vmatpush1.bf16.msra.mxu0 0
        %1998 = vmatprep.subr.bf16.mxu0 0
        %1999 = vmatpush1.bf16.msra.mxu0 0
        %2000 = vmatprep.subr.bf16.mxu0 0
        %2001 = vmatpush1.bf16.msra.mxu0 0
        %2002 = vmatprep.subr.bf16.mxu0 0
        %2003 = vmatpush1.bf16.msra.mxu0 0
        %2004 = vmatprep.subr.bf16.mxu0 0
        %2005 = vmatpush1.bf16.msra.mxu0 0
        %2006 = vmatprep.subr.bf16.mxu0 0
        %2007 = vmatpush1.bf16.msra.mxu0 0
        %2008 = vmatprep.subr.bf16.mxu0 0
        %2009 = vmatpush1.bf16.msra.mxu0 0
        %2010 = vmatprep.subr.bf16.mxu0 0
        %2011 = vmatpush1.bf16.msra.mxu0 0
        %2012 = vmatprep.subr.bf16.mxu0 0
        %2013 = vmatpush1.bf16.msra.mxu0 0
        %2014 = vmatprep.subr.bf16.mxu0 0
        %2015 = vmatpush1.bf16.msra.mxu0 0
        %2016 = vmatprep.mubr.bf16.mxu0 0
        %2017 = vmatmul.mubr.bf16.gmra.mrb[0].mxu0 %v1973
        %v2018 = vpop.f32.mrb[0].mxu0
        %v2019 = vadd.f32 0.0, %v2018
        %v2020 = vpop.f32.mrb[0].mxu0
        %v2021 = vadd.f32 0.0, %v2020
        %v2022 = vpop.f32.mrb[0].mxu0
        %v2023 = vadd.f32 0.0, %v2022
        %v2024 = vpop.f32.mrb[0].mxu0
        %v2025 = vadd.f32 0.0, %v2024
        %2026 = vmatprep.mubr.bf16.mxu0 0
        %2027 = vmatmul.mubr.bf16.gmra.mrb[0].mxu0 %v1976
        %v2028 = vpop.f32.mrb[0].mxu0
        %v2029 = vadd.f32 0.0, %v2028
        %v2030 = vpop.f32.mrb[0].mxu0
        %v2031 = vadd.f32 0.0, %v2030
        %v2032 = vpop.f32.mrb[0].mxu0
        %v2033 = vadd.f32 0.0, %v2032
        %v2034 = vpop.f32.mrb[0].mxu0
        %v2035 = vadd.f32 0.0, %v2034
        %2036 = vmatprep.mubr.bf16.mxu0 0
        %2037 = vmatmul.mubr.bf16.gmra.mrb[0].mxu0 %v1979
        %v2038 = vpop.f32.mrb[0].mxu0
        %v2039 = vadd.f32 0.0, %v2038
        %v2040 = vpop.f32.mrb[0].mxu0
        %v2041 = vadd.f32 0.0, %v2040
        %v2042 = vpop.f32.mrb[0].mxu0
        %v2043 = vadd.f32 0.0, %v2042
        %v2044 = vpop.f32.mrb[0].mxu0
        %v2045 = vadd.f32 0.0, %v2044
        %2046 = vmatprep.mubr.bf16.mxu0 0
        %2047 = vmatmul.mubr.bf16.gmra.mrb[0].mxu0 %v1982
        %v2048 = vpop.f32.mrb[0].mxu0
        %v2049 = vadd.f32 0.0, %v2048
        %v2050 = vpop.f32.mrb[0].mxu0
        %v2051 = vadd.f32 0.0, %v2050
        %v2052 = vpop.f32.mrb[0].mxu0
        %v2053 = vadd.f32 0.0, %v2052
        %v2054 = vpop.f32.mrb[0].mxu0
        %v2055 = vadd.f32 0.0, %v2054
        %2056 = vdwg.mxu0
        %2057 = vmatprep.subr.bf16.mxu0 0
        %2058 = vmatpush1.bf16.xpose.msra.mxu0 %v1973
        %2059 = vmatprep.subr.bf16.mxu0 0
        %2060 = vmatpush1.bf16.xpose.msra.mxu0 %v1976
        %2061 = vmatprep.subr.bf16.mxu0 0
        %2062 = vmatpush1.bf16.xpose.msra.mxu0 %v1979
        %2063 = vmatprep.subr.bf16.mxu0 0
        %2064 = vmatpush1.bf16.xpose.msra.mxu0 %v1982
        %2065 = vmatprep.subr.bf16.mxu0 0
        %2066 = vmatpush1.bf16.xpose.msra.mxu0 0
        %2067 = vmatprep.subr.bf16.mxu0 0
        %2068 = vmatpush1.bf16.xpose.msra.mxu0 0
        %2069 = vmatprep.subr.bf16.mxu0 0
        %2070 = vmatpush1.bf16.xpose.msra.mxu0 0
        %2071 = vmatprep.subr.bf16.mxu0 0
        %2072 = vmatpush1.bf16.xpose.msra.mxu0 0
        %2073 = vmatprep.subr.bf16.mxu0 0
        %2074 = vmatpush1.bf16.xpose.msra.mxu0 0
        %2075 = vmatprep.subr.bf16.mxu0 0
        %2076 = vmatpush1.bf16.xpose.msra.mxu0 0
        %2077 = vmatprep.subr.bf16.mxu0 0
        %2078 = vmatpush1.bf16.xpose.msra.mxu0 0
        %2079 = vmatprep.subr.bf16.mxu0 0
        %2080 = vmatpush1.bf16.xpose.msra.mxu0 0
        %2081 = vmatprep.subr.bf16.mxu0 0
        %2082 = vmatpush1.bf16.xpose.msra.mxu0 0
        %2083 = vmatprep.subr.bf16.mxu0 0
        %2084 = vmatpush1.bf16.xpose.msra.mxu0 0
        %2085 = vmatprep.subr.bf16.mxu0 0
        %2086 = vmatpush1.bf16.xpose.msra.mxu0 0
        %2087 = vmatprep.subr.bf16.mxu0 0
        %2088 = vmatpush1.bf16.xpose.msra.mxu0 0
        %2089 = vmatprep.mubr.bf16.mxu0 0
        %2090 = vmatmul.mubr.bf16.gmra.mrb[0].mxu0 %v1973
        %v2091 = vpop.f32.mrb[0].mxu0
        %v2092 = vadd.f32 0.0, %v2091
        %v2093 = vpop.f32.mrb[0].mxu0
        %v2094 = vpop.f32.mrb[0].mxu0
        %v2095 = vadd.f32 0.0, %v2094
        %v2096 = vpop.f32.mrb[0].mxu0
        %2097 = vmatprep.mubr.bf16.mxu0 0
        %2098 = vmatmul.mubr.bf16.gmra.mrb[0].mxu0 %v1976
        %v2099 = vpop.f32.mrb[0].mxu0
        %v2100 = vadd.f32 0.0, %v2099
        %v2101 = vpop.f32.mrb[0].mxu0
        %v2102 = vpop.f32.mrb[0].mxu0
        %v2103 = vadd.f32 0.0, %v2102
        %v2104 = vpop.f32.mrb[0].mxu0
        %2105 = vmatprep.mubr.bf16.mxu0 0
        %2106 = vmatmul.mubr.bf16.gmra.mrb[0].mxu0 %v1979
        %v2107 = vpop.f32.mrb[0].mxu0
        %v2108 = vadd.f32 0.0, %v2107
        %v2109 = vpop.f32.mrb[0].mxu0
        %v2110 = vpop.f32.mrb[0].mxu0
        %v2111 = vadd.f32 0.0, %v2110
        %v2112 = vpop.f32.mrb[0].mxu0
        %2113 = vmatprep.mubr.bf16.mxu0 0
        %2114 = vmatmul.mubr.bf16.gmra.mrb[0].mxu0 %v1982
        %v2115 = vpop.f32.mrb[0].mxu0
        %v2116 = vadd.f32 0.0, %v2115
        %v2117 = vpop.f32.mrb[0].mxu0
        %v2118 = vpop.f32.mrb[0].mxu0
        %v2119 = vadd.f32 0.0, %v2118
        %v2120 = vpop.f32.mrb[0].mxu0
        %2121 = vdwg.mxu0
        %v2122 = vpack.c.bf16 %v2095, %v2092
        %v2123 = vpack.c.bf16 %v2103, %v2100
        %v2124 = vpack.c.bf16 %v2111, %v2108
        %v2125 = vpack.c.bf16 %v2119, %v2116
        %v2126 = vmul.f32 %v1709, %v2019
        %v2127 = vmul.f32 %v1710, %v2021
        %v2128 = vmul.f32 %v1711, %v2023
        %v2129 = vmul.f32 %v1712, %v2025
        %v2130 = vmul.f32 %v1713, %v2029
        %v2131 = vmul.f32 %v1714, %v2031
        %v2132 = vmul.f32 %v1715, %v2033
        %v2133 = vmul.f32 %v1716, %v2035
        %v2134 = vmul.f32 %v1717, %v2039
        %v2135 = vmul.f32 %v1718, %v2041
        %v2136 = vmul.f32 %v1719, %v2043
        %v2137 = vmul.f32 %v1720, %v2045
        %v2138 = vmul.f32 %v1721, %v2049
        %v2139 = vmul.f32 %v1722, %v2051
        %v2140 = vmul.f32 %v1723, %v2053
        %v2141 = vmul.f32 %v1724, %v2055
        %v2143 = vsel %vm539, %v2122, 0
        %v2146 = vsel %vm539, %v2123, 0
        %v2149 = vsel %vm539, %v2124, 0
        %v2152 = vsel %vm539, %v2125, 0
        %2154 = vmatprep.subr.bf16.mxu0 %v1726
        %2155 = vmatpush1.bf16.msra.mxu0 %v1725
        %2156 = vmatprep.subr.bf16.mxu0 %v1728
        %2157 = vmatpush1.bf16.msra.mxu0 %v1727
        %2158 = vmatprep.subr.bf16.mxu0 %v1730
        %2159 = vmatpush1.bf16.msra.mxu0 %v1729
        %2160 = vmatprep.subr.bf16.mxu0 %v1732
        %2161 = vmatpush1.bf16.msra.mxu0 %v1731
        %2162 = vmatprep.subr.bf16.mxu0 0
        %2163 = vmatpush1.bf16.msra.mxu0 0
        %2164 = vmatprep.subr.bf16.mxu0 0
        %2165 = vmatpush1.bf16.msra.mxu0 0
        %2166 = vmatprep.subr.bf16.mxu0 0
        %2167 = vmatpush1.bf16.msra.mxu0 0
        %2168 = vmatprep.subr.bf16.mxu0 0
        %2169 = vmatpush1.bf16.msra.mxu0 0
        %2170 = vmatprep.subr.bf16.mxu0 0
        %2171 = vmatpush1.bf16.msra.mxu0 0
        %2172 = vmatprep.subr.bf16.mxu0 0
        %2173 = vmatpush1.bf16.msra.mxu0 0
        %2174 = vmatprep.subr.bf16.mxu0 0
        %2175 = vmatpush1.bf16.msra.mxu0 0
        %2176 = vmatprep.subr.bf16.mxu0 0
        %2177 = vmatpush1.bf16.msra.mxu0 0
        %2178 = vmatprep.subr.bf16.mxu0 0
        %2179 = vmatpush1.bf16.msra.mxu0 0
        %2180 = vmatprep.subr.bf16.mxu0 0
        %2181 = vmatpush1.bf16.msra.mxu0 0
        %2182 = vmatprep.subr.bf16.mxu0 0
        %2183 = vmatpush1.bf16.msra.mxu0 0
        %2184 = vmatprep.subr.bf16.mxu0 0
        %2185 = vmatpush1.bf16.msra.mxu0 0
        %2186 = vmatprep.mubr.bf16.mxu0 0
        %2187 = vmatmul.mubr.bf16.gmra.mrb[0].mxu0 %v2143
        %v2188 = vpop.f32.mrb[0].mxu0
        %v2189 = vadd.f32 1e-06, %v2188
        %v2190 = vpop.f32.mrb[0].mxu0
        %v2191 = vadd.f32 1e-06, %v2190
        %v2192 = vpop.f32.mrb[0].mxu0
        %v2193 = vadd.f32 1e-06, %v2192
        %v2194 = vpop.f32.mrb[0].mxu0
        %v2195 = vadd.f32 1e-06, %v2194
        %2196 = vmatprep.mubr.bf16.mxu0 0
        %2197 = vmatmul.mubr.bf16.gmra.mrb[0].mxu0 %v2146
        %v2198 = vpop.f32.mrb[0].mxu0
        %v2199 = vadd.f32 1e-06, %v2198
        %v2200 = vpop.f32.mrb[0].mxu0
        %v2201 = vadd.f32 1e-06, %v2200
        %v2202 = vpop.f32.mrb[0].mxu0
        %v2203 = vadd.f32 1e-06, %v2202
        %v2204 = vpop.f32.mrb[0].mxu0
        %v2205 = vadd.f32 1e-06, %v2204
        %2206 = vmatprep.mubr.bf16.mxu0 0
        %2207 = vmatmul.mubr.bf16.gmra.mrb[0].mxu0 %v2149
        %v2208 = vpop.f32.mrb[0].mxu0
        %v2209 = vadd.f32 1e-06, %v2208
        %v2210 = vpop.f32.mrb[0].mxu0
        %v2211 = vadd.f32 1e-06, %v2210
        %v2212 = vpop.f32.mrb[0].mxu0
        %v2213 = vadd.f32 1e-06, %v2212
        %v2214 = vpop.f32.mrb[0].mxu0
        %v2215 = vadd.f32 1e-06, %v2214
        %2216 = vmatprep.mubr.bf16.mxu0 0
        %2217 = vmatmul.mubr.bf16.gmra.mrb[0].mxu0 %v2152
        %v2218 = vpop.f32.mrb[0].mxu0
        %v2219 = vadd.f32 1e-06, %v2218
        %v2220 = vpop.f32.mrb[0].mxu0
        %v2221 = vadd.f32 1e-06, %v2220
        %v2222 = vpop.f32.mrb[0].mxu0
        %v2223 = vadd.f32 1e-06, %v2222
        %v2224 = vpop.f32.mrb[0].mxu0
        %v2225 = vadd.f32 1e-06, %v2224
        %2226 = vdwg.mxu0
        %v2227 = vrcp.pop %v2189
        %v2228 = vrcp.pop %v2191
        %v2229 = vrcp.pop %v2193
        %v2230 = vrcp.pop %v2195
        %v2231 = vrcp.pop %v2199
        %v2232 = vrcp.pop %v2201
        %v2233 = vrcp.pop %v2203
        %v2234 = vrcp.pop %v2205
        %v2235 = vrcp.pop %v2209
        %v2236 = vrcp.pop %v2211
        %v2237 = vrcp.pop %v2213
        %v2238 = vrcp.pop %v2215
        %v2239 = vrcp.pop %v2219
        %v2240 = vrcp.pop %v2221
        %v2241 = vrcp.pop %v2223
        %v2242 = vrcp.pop %v2225
        %v2243 = vmul.f32 %v2126, %v2227
        %v2244 = vmul.f32 %v2127, %v2228
        %v2245 = vmul.f32 %v2128, %v2229
        %v2246 = vmul.f32 %v2129, %v2230
        %v2247 = vmul.f32 %v2130, %v2231
        %v2248 = vmul.f32 %v2131, %v2232
        %v2249 = vmul.f32 %v2132, %v2233
        %v2250 = vmul.f32 %v2133, %v2234
        %v2251 = vmul.f32 %v2134, %v2235
        %v2252 = vmul.f32 %v2135, %v2236
        %v2253 = vmul.f32 %v2136, %v2237
        %v2254 = vmul.f32 %v2137, %v2238
        %v2255 = vmul.f32 %v2138, %v2239
        %v2256 = vmul.f32 %v2139, %v2240
        %v2257 = vmul.f32 %v2140, %v2241
        %v2258 = vmul.f32 %v2141, %v2242
        %v2259 = vpack.c.bf16 %v2245, %v2243
        %v2260 = vpack.c.bf16 %v2246, %v2244
        %v2261 = vpack.c.bf16 %v2249, %v2247
        %v2262 = vpack.c.bf16 %v2250, %v2248
        %v2263 = vpack.c.bf16 %v2253, %v2251
        %v2264 = vpack.c.bf16 %v2254, %v2252
        %v2265 = vpack.c.bf16 %v2257, %v2255
        %v2266 = vpack.c.bf16 %v2258, %v2256
        %2267 = vmatprep.subr.bf16.mxu0 %v206
        %2268 = vmatpush1.bf16.xpose.msra.mxu0 %v205
        %2269 = vmatprep.subr.bf16.mxu0 0
        %2270 = vmatpush1.bf16.xpose.msra.mxu0 0
        %2271 = vmatprep.subr.bf16.mxu0 0
        %2272 = vmatpush1.bf16.xpose.msra.mxu0 0
        %2273 = vmatprep.subr.bf16.mxu0 0
        %2274 = vmatpush1.bf16.xpose.msra.mxu0 0
        %2275 = vmatprep.subr.bf16.mxu0 0
        %2276 = vmatpush1.bf16.xpose.msra.mxu0 0
        %2277 = vmatprep.subr.bf16.mxu0 0
        %2278 = vmatpush1.bf16.xpose.msra.mxu0 0
        %2279 = vmatprep.subr.bf16.mxu0 0
        %2280 = vmatpush1.bf16.xpose.msra.mxu0 0
        %2281 = vmatprep.subr.bf16.mxu0 0
        %2282 = vmatpush1.bf16.xpose.msra.mxu0 0
        %2283 = vmatprep.subr.bf16.mxu0 0
        %2284 = vmatpush1.bf16.xpose.msra.mxu0 0
        %2285 = vmatprep.subr.bf16.mxu0 0
        %2286 = vmatpush1.bf16.xpose.msra.mxu0 0
        %2287 = vmatprep.subr.bf16.mxu0 0
        %2288 = vmatpush1.bf16.xpose.msra.mxu0 0
        %2289 = vmatprep.subr.bf16.mxu0 0
        %2290 = vmatpush1.bf16.xpose.msra.mxu0 0
        %2291 = vmatprep.subr.bf16.mxu0 0
        %2292 = vmatpush1.bf16.xpose.msra.mxu0 0
        %2293 = vmatprep.subr.bf16.mxu0 0
        %2294 = vmatpush1.bf16.xpose.msra.mxu0 0
        %2295 = vmatprep.subr.bf16.mxu0 0
        %2296 = vmatpush1.bf16.xpose.msra.mxu0 0
        %2297 = vmatprep.subr.bf16.mxu0 0
        %2298 = vmatpush1.bf16.xpose.msra.mxu0 0
        %2299 = vmatprep.mubr.bf16.mxu0 %v2260
        %2300 = vmatmul.mubr.bf16.gmra.mrb[0].mxu0 %v2259
        %v2301 = vpop.f32.mrb[0].mxu0
        %v2302 = vadd.f32 0.0, %v2301
        %v2303 = vpop.f32.mrb[0].mxu0
        %v2304 = vpop.f32.mrb[0].mxu0
        %v2305 = vadd.f32 0.0, %v2304
        %v2306 = vpop.f32.mrb[0].mxu0
        %2307 = vmatprep.mubr.bf16.mxu0 %v2262
        %2308 = vmatmul.mubr.bf16.gmra.mrb[0].mxu0 %v2261
        %v2309 = vpop.f32.mrb[0].mxu0
        %v2310 = vadd.f32 0.0, %v2309
        %v2311 = vpop.f32.mrb[0].mxu0
        %v2312 = vpop.f32.mrb[0].mxu0
        %v2313 = vadd.f32 0.0, %v2312
        %v2314 = vpop.f32.mrb[0].mxu0
        %2315 = vmatprep.mubr.bf16.mxu0 %v2264
        %2316 = vmatmul.mubr.bf16.gmra.mrb[0].mxu0 %v2263
        %v2317 = vpop.f32.mrb[0].mxu0
        %v2318 = vadd.f32 0.0, %v2317
        %v2319 = vpop.f32.mrb[0].mxu0
        %v2320 = vpop.f32.mrb[0].mxu0
        %v2321 = vadd.f32 0.0, %v2320
        %v2322 = vpop.f32.mrb[0].mxu0
        %2323 = vmatprep.mubr.bf16.mxu0 %v2266
        %2324 = vmatmul.mubr.bf16.gmra.mrb[0].mxu0 %v2265
        %v2325 = vpop.f32.mrb[0].mxu0
        %v2326 = vadd.f32 0.0, %v2325
        %v2327 = vpop.f32.mrb[0].mxu0
        %v2328 = vpop.f32.mrb[0].mxu0
        %v2329 = vadd.f32 0.0, %v2328
        %v2330 = vpop.f32.mrb[0].mxu0
        %2331 = vdwg.mxu0
        %2332 = vmatprep.subr.bf16.mxu0 %v2260
        %2333 = vmatpush1.bf16.xpose.msra.mxu0 %v2259
        %2334 = vmatprep.subr.bf16.mxu0 %v2262
        %2335 = vmatpush1.bf16.xpose.msra.mxu0 %v2261
        %2336 = vmatprep.subr.bf16.mxu0 %v2264
        %2337 = vmatpush1.bf16.xpose.msra.mxu0 %v2263
        %2338 = vmatprep.subr.bf16.mxu0 %v2266
        %2339 = vmatpush1.bf16.xpose.msra.mxu0 %v2265
        %2340 = vmatprep.subr.bf16.mxu0 0
        %2341 = vmatpush1.bf16.xpose.msra.mxu0 0
        %2342 = vmatprep.subr.bf16.mxu0 0
        %2343 = vmatpush1.bf16.xpose.msra.mxu0 0
        %2344 = vmatprep.subr.bf16.mxu0 0
        %2345 = vmatpush1.bf16.xpose.msra.mxu0 0
        %2346 = vmatprep.subr.bf16.mxu0 0
        %2347 = vmatpush1.bf16.xpose.msra.mxu0 0
        %2348 = vmatprep.subr.bf16.mxu0 0
        %2349 = vmatpush1.bf16.xpose.msra.mxu0 0
        %2350 = vmatprep.subr.bf16.mxu0 0
        %2351 = vmatpush1.bf16.xpose.msra.mxu0 0
        %2352 = vmatprep.subr.bf16.mxu0 0
        %2353 = vmatpush1.bf16.xpose.msra.mxu0 0
        %2354 = vmatprep.subr.bf16.mxu0 0
        %2355 = vmatpush1.bf16.xpose.msra.mxu0 0
        %2356 = vmatprep.subr.bf16.mxu0 0
        %2357 = vmatpush1.bf16.xpose.msra.mxu0 0
        %2358 = vmatprep.subr.bf16.mxu0 0
        %2359 = vmatpush1.bf16.xpose.msra.mxu0 0
        %2360 = vmatprep.subr.bf16.mxu0 0
        %2361 = vmatpush1.bf16.xpose.msra.mxu0 0
        %2362 = vmatprep.subr.bf16.mxu0 0
        %2363 = vmatpush1.bf16.xpose.msra.mxu0 0
        %2364 = vmatprep.mubr.bf16.mxu0 %v2260
        %2365 = vmatmul.mubr.bf16.gmra.mrb[0].mxu0 %v2259
        %v2366 = vpop.f32.mrb[0].mxu0
        %v2367 = vadd.f32 0.0, %v2366
        %v2368 = vpop.f32.mrb[0].mxu0
        %v2369 = vpop.f32.mrb[0].mxu0
        %v2370 = vadd.f32 0.0, %v2369
        %v2371 = vpop.f32.mrb[0].mxu0
        %2372 = vmatprep.mubr.bf16.mxu0 %v2262
        %2373 = vmatmul.mubr.bf16.gmra.mrb[0].mxu0 %v2261
        %v2374 = vpop.f32.mrb[0].mxu0
        %v2375 = vadd.f32 0.0, %v2374
        %v2376 = vpop.f32.mrb[0].mxu0
        %v2377 = vpop.f32.mrb[0].mxu0
        %v2378 = vadd.f32 0.0, %v2377
        %v2379 = vpop.f32.mrb[0].mxu0
        %2380 = vmatprep.mubr.bf16.mxu0 %v2264
        %2381 = vmatmul.mubr.bf16.gmra.mrb[0].mxu0 %v2263
        %v2382 = vpop.f32.mrb[0].mxu0
        %v2383 = vadd.f32 0.0, %v2382
        %v2384 = vpop.f32.mrb[0].mxu0
        %v2385 = vpop.f32.mrb[0].mxu0
        %v2386 = vadd.f32 0.0, %v2385
        %v2387 = vpop.f32.mrb[0].mxu0
        %2388 = vmatprep.mubr.bf16.mxu0 %v2266
        %2389 = vmatmul.mubr.bf16.gmra.mrb[0].mxu0 %v2265
        %v2390 = vpop.f32.mrb[0].mxu0
        %v2391 = vadd.f32 0.0, %v2390
        %v2392 = vpop.f32.mrb[0].mxu0
        %v2393 = vpop.f32.mrb[0].mxu0
        %v2394 = vadd.f32 0.0, %v2393
        %v2395 = vpop.f32.mrb[0].mxu0
        %2396 = vdwg.mxu0
        %v2397 = vpack.c.bf16 %v2370, %v2367
        %v2398 = vpack.c.bf16 %v2378, %v2375
        %v2399 = vpack.c.bf16 %v2386, %v2383
        %v2400 = vpack.c.bf16 %v2394, %v2391
        %v2401 = vmul.f32 %v1960, %v2302
        %v2402 = vmul.f32 %v1961, %v2305
        %v2403 = vmul.f32 %v1962, %v2310
        %v2404 = vmul.f32 %v1963, %v2313
        %v2405 = vmul.f32 %v1964, %v2318
        %v2406 = vmul.f32 %v1965, %v2321
        %v2407 = vmul.f32 %v1966, %v2326
        %v2408 = vmul.f32 %v1967, %v2329
        %v2410 = vsel %vm539, %v2397, 0
        %v2413 = vsel %vm539, %v2398, 0
        %v2416 = vsel %vm539, %v2399, 0
        %v2419 = vsel %vm539, %v2400, 0
        %2421 = vmatprep.subr.bf16.mxu0 0
        %2422 = vmatpush1.bf16.msra.mxu0 %v1968
        %2423 = vmatprep.subr.bf16.mxu0 0
        %2424 = vmatpush1.bf16.msra.mxu0 %v1969
        %2425 = vmatprep.subr.bf16.mxu0 0
        %2426 = vmatpush1.bf16.msra.mxu0 %v1970
        %2427 = vmatprep.subr.bf16.mxu0 0
        %2428 = vmatpush1.bf16.msra.mxu0 %v1971
        %2429 = vmatprep.subr.bf16.mxu0 0
        %2430 = vmatpush1.bf16.msra.mxu0 0
        %2431 = vmatprep.subr.bf16.mxu0 0
        %2432 = vmatpush1.bf16.msra.mxu0 0
        %2433 = vmatprep.subr.bf16.mxu0 0
        %2434 = vmatpush1.bf16.msra.mxu0 0
        %2435 = vmatprep.subr.bf16.mxu0 0
        %2436 = vmatpush1.bf16.msra.mxu0 0
        %2437 = vmatprep.subr.bf16.mxu0 0
        %2438 = vmatpush1.bf16.msra.mxu0 0
        %2439 = vmatprep.subr.bf16.mxu0 0
        %2440 = vmatpush1.bf16.msra.mxu0 0
        %2441 = vmatprep.subr.bf16.mxu0 0
        %2442 = vmatpush1.bf16.msra.mxu0 0
        %2443 = vmatprep.subr.bf16.mxu0 0
        %2444 = vmatpush1.bf16.msra.mxu0 0
        %2445 = vmatprep.subr.bf16.mxu0 0
        %2446 = vmatpush1.bf16.msra.mxu0 0
        %2447 = vmatprep.subr.bf16.mxu0 0
        %2448 = vmatpush1.bf16.msra.mxu0 0
        %2449 = vmatprep.subr.bf16.mxu0 0
        %2450 = vmatpush1.bf16.msra.mxu0 0
        %2451 = vmatprep.subr.bf16.mxu0 0
        %2452 = vmatpush1.bf16.msra.mxu0 0
        %2453 = vmatprep.mubr.bf16.mxu0 0
        %2454 = vmatmul.mubr.bf16.gmra.mrb[0].mxu0 %v2410
        %v2455 = vpop.f32.mrb[0].mxu0
        %v2456 = vadd.f32 1e-06, %v2455
        %v2457 = vpop.f32.mrb[0].mxu0
        %v2458 = vpop.f32.mrb[0].mxu0
        %v2459 = vadd.f32 1e-06, %v2458
        %v2460 = vpop.f32.mrb[0].mxu0
        %2461 = vmatprep.mubr.bf16.mxu0 0
        %2462 = vmatmul.mubr.bf16.gmra.mrb[0].mxu0 %v2413
        %v2463 = vpop.f32.mrb[0].mxu0
        %v2464 = vadd.f32 1e-06, %v2463
        %v2465 = vpop.f32.mrb[0].mxu0
        %v2466 = vpop.f32.mrb[0].mxu0
        %v2467 = vadd.f32 1e-06, %v2466
        %v2468 = vpop.f32.mrb[0].mxu0
        %2469 = vmatprep.mubr.bf16.mxu0 0
        %2470 = vmatmul.mubr.bf16.gmra.mrb[0].mxu0 %v2416
        %v2471 = vpop.f32.mrb[0].mxu0
        %v2472 = vadd.f32 1e-06, %v2471
        %v2473 = vpop.f32.mrb[0].mxu0
        %v2474 = vpop.f32.mrb[0].mxu0
        %v2475 = vadd.f32 1e-06, %v2474
        %v2476 = vpop.f32.mrb[0].mxu0
        %2477 = vmatprep.mubr.bf16.mxu0 0
        %2478 = vmatmul.mubr.bf16.gmra.mrb[0].mxu0 %v2419
        %v2479 = vpop.f32.mrb[0].mxu0
        %v2480 = vadd.f32 1e-06, %v2479
        %v2481 = vpop.f32.mrb[0].mxu0
        %v2482 = vpop.f32.mrb[0].mxu0
        %v2483 = vadd.f32 1e-06, %v2482
        %v2484 = vpop.f32.mrb[0].mxu0
        %2485 = vdwg.mxu0
        %v2486 = vrcp.pop %v2456
        %v2487 = vrcp.pop %v2459
        %v2488 = vrcp.pop %v2464
        %v2489 = vrcp.pop %v2467
        %v2490 = vrcp.pop %v2472
        %v2491 = vrcp.pop %v2475
        %v2492 = vrcp.pop %v2480
        %v2493 = vrcp.pop %v2483
        %v2494 = vmul.f32 %v2401, %v2486
        %v2495 = vmul.f32 %v2402, %v2487
        %v2496 = vmul.f32 %v2403, %v2488
        %v2497 = vmul.f32 %v2404, %v2489
        %v2498 = vmul.f32 %v2405, %v2490
        %v2499 = vmul.f32 %v2406, %v2491
        %v2500 = vmul.f32 %v2407, %v2492
        %v2501 = vmul.f32 %v2408, %v2493
        %v2502 = vpack.c.bf16 %v2495, %v2494
        %v2503 = vpack.c.bf16 %v2497, %v2496
        %v2504 = vpack.c.bf16 %v2499, %v2498
        %v2505 = vpack.c.bf16 %v2501, %v2500
        %v2507 = vsel %vm219, %v2502, 0
        %v2510 = vsel %vm219, %v2503, 0
        %v2513 = vsel %vm219, %v2504, 0
        %v2516 = vsel %vm219, %v2505, 0
        %2518 = vmatprep.subr.bf16.mxu0 %v237
        %2519 = vmatpush1.bf16.msra.mxu0 %v234
        %2520 = vmatprep.subr.bf16.mxu0 0
        %2521 = vmatpush1.bf16.msra.mxu0 0
        %2522 = vmatprep.subr.bf16.mxu0 0
        %2523 = vmatpush1.bf16.msra.mxu0 0
        %2524 = vmatprep.subr.bf16.mxu0 0
        %2525 = vmatpush1.bf16.msra.mxu0 0
        %2526 = vmatprep.subr.bf16.mxu0 0
        %2527 = vmatpush1.bf16.msra.mxu0 0
        %2528 = vmatprep.subr.bf16.mxu0 0
        %2529 = vmatpush1.bf16.msra.mxu0 0
        %2530 = vmatprep.subr.bf16.mxu0 0
        %2531 = vmatpush1.bf16.msra.mxu0 0
        %2532 = vmatprep.subr.bf16.mxu0 0
        %2533 = vmatpush1.bf16.msra.mxu0 0
        %2534 = vmatprep.subr.bf16.mxu0 0
        %2535 = vmatpush1.bf16.msra.mxu0 0
        %2536 = vmatprep.subr.bf16.mxu0 0
        %2537 = vmatpush1.bf16.msra.mxu0 0
        %2538 = vmatprep.subr.bf16.mxu0 0
        %2539 = vmatpush1.bf16.msra.mxu0 0
        %2540 = vmatprep.subr.bf16.mxu0 0
        %2541 = vmatpush1.bf16.msra.mxu0 0
        %2542 = vmatprep.subr.bf16.mxu0 0
        %2543 = vmatpush1.bf16.msra.mxu0 0
        %2544 = vmatprep.subr.bf16.mxu0 0
        %2545 = vmatpush1.bf16.msra.mxu0 0
        %2546 = vmatprep.subr.bf16.mxu0 0
        %2547 = vmatpush1.bf16.msra.mxu0 0
        %2548 = vmatprep.subr.bf16.mxu0 0
        %2549 = vmatpush1.bf16.msra.mxu0 0
        %2550 = vmatprep.mubr.bf16.mxu0 0
        %2551 = vmatmul.mubr.bf16.gmra.mrb[0].mxu0 %v2507
        %v2552 = vpop.f32.mrb[0].mxu0
        %v2553 = vadd.f32 0.0, %v2552
        %v2554 = vpop.f32.mrb[0].mxu0
        %v2555 = vadd.f32 0.0, %v2554
        %v2556 = vpop.f32.mrb[0].mxu0
        %v2557 = vadd.f32 0.0, %v2556
        %v2558 = vpop.f32.mrb[0].mxu0
        %v2559 = vadd.f32 0.0, %v2558
        %2560 = vmatprep.mubr.bf16.mxu0 0
        %2561 = vmatmul.mubr.bf16.gmra.mrb[0].mxu0 %v2510
        %v2562 = vpop.f32.mrb[0].mxu0
        %v2563 = vadd.f32 0.0, %v2562
        %v2564 = vpop.f32.mrb[0].mxu0
        %v2565 = vadd.f32 0.0, %v2564
        %v2566 = vpop.f32.mrb[0].mxu0
        %v2567 = vadd.f32 0.0, %v2566
        %v2568 = vpop.f32.mrb[0].mxu0
        %v2569 = vadd.f32 0.0, %v2568
        %2570 = vmatprep.mubr.bf16.mxu0 0
        %2571 = vmatmul.mubr.bf16.gmra.mrb[0].mxu0 %v2513
        %v2572 = vpop.f32.mrb[0].mxu0
        %v2573 = vadd.f32 0.0, %v2572
        %v2574 = vpop.f32.mrb[0].mxu0
        %v2575 = vadd.f32 0.0, %v2574
        %v2576 = vpop.f32.mrb[0].mxu0
        %v2577 = vadd.f32 0.0, %v2576
        %v2578 = vpop.f32.mrb[0].mxu0
        %v2579 = vadd.f32 0.0, %v2578
        %2580 = vmatprep.mubr.bf16.mxu0 0
        %2581 = vmatmul.mubr.bf16.gmra.mrb[0].mxu0 %v2516
        %v2582 = vpop.f32.mrb[0].mxu0
        %v2583 = vadd.f32 0.0, %v2582
        %v2584 = vpop.f32.mrb[0].mxu0
        %v2585 = vadd.f32 0.0, %v2584
        %v2586 = vpop.f32.mrb[0].mxu0
        %v2587 = vadd.f32 0.0, %v2586
        %v2588 = vpop.f32.mrb[0].mxu0
        %v2589 = vadd.f32 0.0, %v2588
        %2590 = vdwg.mxu0
        %2591 = vmatprep.subr.bf16.mxu0 0
        %2592 = vmatpush1.bf16.xpose.msra.mxu0 %v2507
        %2593 = vmatprep.subr.bf16.mxu0 0
        %2594 = vmatpush1.bf16.xpose.msra.mxu0 %v2510
        %2595 = vmatprep.subr.bf16.mxu0 0
        %2596 = vmatpush1.bf16.xpose.msra.mxu0 %v2513
        %2597 = vmatprep.subr.bf16.mxu0 0
        %2598 = vmatpush1.bf16.xpose.msra.mxu0 %v2516
        %2599 = vmatprep.subr.bf16.mxu0 0
        %2600 = vmatpush1.bf16.xpose.msra.mxu0 0
        %2601 = vmatprep.subr.bf16.mxu0 0
        %2602 = vmatpush1.bf16.xpose.msra.mxu0 0
        %2603 = vmatprep.subr.bf16.mxu0 0
        %2604 = vmatpush1.bf16.xpose.msra.mxu0 0
        %2605 = vmatprep.subr.bf16.mxu0 0
        %2606 = vmatpush1.bf16.xpose.msra.mxu0 0
        %2607 = vmatprep.subr.bf16.mxu0 0
        %2608 = vmatpush1.bf16.xpose.msra.mxu0 0
        %2609 = vmatprep.subr.bf16.mxu0 0
        %2610 = vmatpush1.bf16.xpose.msra.mxu0 0
        %2611 = vmatprep.subr.bf16.mxu0 0
        %2612 = vmatpush1.bf16.xpose.msra.mxu0 0
        %2613 = vmatprep.subr.bf16.mxu0 0
        %2614 = vmatpush1.bf16.xpose.msra.mxu0 0
        %2615 = vmatprep.subr.bf16.mxu0 0
        %2616 = vmatpush1.bf16.xpose.msra.mxu0 0
        %2617 = vmatprep.subr.bf16.mxu0 0
        %2618 = vmatpush1.bf16.xpose.msra.mxu0 0
        %2619 = vmatprep.subr.bf16.mxu0 0
        %2620 = vmatpush1.bf16.xpose.msra.mxu0 0
        %2621 = vmatprep.subr.bf16.mxu0 0
        %2622 = vmatpush1.bf16.xpose.msra.mxu0 0
        %2623 = vmatprep.mubr.bf16.mxu0 0
        %2624 = vmatmul.mubr.bf16.gmra.mrb[0].mxu0 %v2507
        %v2625 = vpop.f32.mrb[0].mxu0
        %v2626 = vadd.f32 0.0, %v2625
        %v2627 = vpop.f32.mrb[0].mxu0
        %v2628 = vpop.f32.mrb[0].mxu0
        %v2629 = vadd.f32 0.0, %v2628
        %v2630 = vpop.f32.mrb[0].mxu0
        %2631 = vmatprep.mubr.bf16.mxu0 0
        %2632 = vmatmul.mubr.bf16.gmra.mrb[0].mxu0 %v2510
        %v2633 = vpop.f32.mrb[0].mxu0
        %v2634 = vadd.f32 0.0, %v2633
        %v2635 = vpop.f32.mrb[0].mxu0
        %v2636 = vpop.f32.mrb[0].mxu0
        %v2637 = vadd.f32 0.0, %v2636
        %v2638 = vpop.f32.mrb[0].mxu0
        %2639 = vmatprep.mubr.bf16.mxu0 0
        %2640 = vmatmul.mubr.bf16.gmra.mrb[0].mxu0 %v2513
        %v2641 = vpop.f32.mrb[0].mxu0
        %v2642 = vadd.f32 0.0, %v2641
        %v2643 = vpop.f32.mrb[0].mxu0
        %v2644 = vpop.f32.mrb[0].mxu0
        %v2645 = vadd.f32 0.0, %v2644
        %v2646 = vpop.f32.mrb[0].mxu0
        %2647 = vmatprep.mubr.bf16.mxu0 0
        %2648 = vmatmul.mubr.bf16.gmra.mrb[0].mxu0 %v2516
        %v2649 = vpop.f32.mrb[0].mxu0
        %v2650 = vadd.f32 0.0, %v2649
        %v2651 = vpop.f32.mrb[0].mxu0
        %v2652 = vpop.f32.mrb[0].mxu0
        %v2653 = vadd.f32 0.0, %v2652
        %v2654 = vpop.f32.mrb[0].mxu0
        %2655 = vdwg.mxu0
        %v2656 = vpack.c.bf16 %v2629, %v2626
        %v2657 = vpack.c.bf16 %v2637, %v2634
        %v2658 = vpack.c.bf16 %v2645, %v2642
        %v2659 = vpack.c.bf16 %v2653, %v2650
        %v2660 = vmul.f32 %v2243, %v2553
        %v2661 = vmul.f32 %v2244, %v2555
        %v2662 = vmul.f32 %v2245, %v2557
        %v2663 = vmul.f32 %v2246, %v2559
        %v2664 = vmul.f32 %v2247, %v2563
        %v2665 = vmul.f32 %v2248, %v2565
        %v2666 = vmul.f32 %v2249, %v2567
        %v2667 = vmul.f32 %v2250, %v2569
        %v2668 = vmul.f32 %v2251, %v2573
        %v2669 = vmul.f32 %v2252, %v2575
        %v2670 = vmul.f32 %v2253, %v2577
        %v2671 = vmul.f32 %v2254, %v2579
        %v2672 = vmul.f32 %v2255, %v2583
        %v2673 = vmul.f32 %v2256, %v2585
        %v2674 = vmul.f32 %v2257, %v2587
        %v2675 = vmul.f32 %v2258, %v2589
        %v2677 = vsel %vm539, %v2656, 0
        %v2680 = vsel %vm539, %v2657, 0
        %v2683 = vsel %vm539, %v2658, 0
        %v2686 = vsel %vm539, %v2659, 0
        %2688 = vmatprep.subr.bf16.mxu0 %v2260
        %2689 = vmatpush1.bf16.msra.mxu0 %v2259
        %2690 = vmatprep.subr.bf16.mxu0 %v2262
        %2691 = vmatpush1.bf16.msra.mxu0 %v2261
        %2692 = vmatprep.subr.bf16.mxu0 %v2264
        %2693 = vmatpush1.bf16.msra.mxu0 %v2263
        %2694 = vmatprep.subr.bf16.mxu0 %v2266
        %2695 = vmatpush1.bf16.msra.mxu0 %v2265
        %2696 = vmatprep.subr.bf16.mxu0 0
        %2697 = vmatpush1.bf16.msra.mxu0 0
        %2698 = vmatprep.subr.bf16.mxu0 0
        %2699 = vmatpush1.bf16.msra.mxu0 0
        %2700 = vmatprep.subr.bf16.mxu0 0
        %2701 = vmatpush1.bf16.msra.mxu0 0
        %2702 = vmatprep.subr.bf16.mxu0 0
        %2703 = vmatpush1.bf16.msra.mxu0 0
        %2704 = vmatprep.subr.bf16.mxu0 0
        %2705 = vmatpush1.bf16.msra.mxu0 0
        %2706 = vmatprep.subr.bf16.mxu0 0
        %2707 = vmatpush1.bf16.msra.mxu0 0
        %2708 = vmatprep.subr.bf16.mxu0 0
        %2709 = vmatpush1.bf16.msra.mxu0 0
        %2710 = vmatprep.subr.bf16.mxu0 0
        %2711 = vmatpush1.bf16.msra.mxu0 0
        %2712 = vmatprep.subr.bf16.mxu0 0
        %2713 = vmatpush1.bf16.msra.mxu0 0
        %2714 = vmatprep.subr.bf16.mxu0 0
        %2715 = vmatpush1.bf16.msra.mxu0 0
        %2716 = vmatprep.subr.bf16.mxu0 0
        %2717 = vmatpush1.bf16.msra.mxu0 0
        %2718 = vmatprep.subr.bf16.mxu0 0
        %2719 = vmatpush1.bf16.msra.mxu0 0
        %2720 = vmatprep.mubr.bf16.mxu0 0
        %2721 = vmatmul.mubr.bf16.gmra.mrb[0].mxu0 %v2677
        %v2722 = vpop.f32.mrb[0].mxu0
        %v2723 = vadd.f32 1e-06, %v2722
        %v2724 = vpop.f32.mrb[0].mxu0
        %v2725 = vadd.f32 1e-06, %v2724
        %v2726 = vpop.f32.mrb[0].mxu0
        %v2727 = vadd.f32 1e-06, %v2726
        %v2728 = vpop.f32.mrb[0].mxu0
        %v2729 = vadd.f32 1e-06, %v2728
        %2730 = vmatprep.mubr.bf16.mxu0 0
        %2731 = vmatmul.mubr.bf16.gmra.mrb[0].mxu0 %v2680
        %v2732 = vpop.f32.mrb[0].mxu0
        %v2733 = vadd.f32 1e-06, %v2732
        %v2734 = vpop.f32.mrb[0].mxu0
        %v2735 = vadd.f32 1e-06, %v2734
        %v2736 = vpop.f32.mrb[0].mxu0
        %v2737 = vadd.f32 1e-06, %v2736
        %v2738 = vpop.f32.mrb[0].mxu0
        %v2739 = vadd.f32 1e-06, %v2738
        %2740 = vmatprep.mubr.bf16.mxu0 0
        %2741 = vmatmul.mubr.bf16.gmra.mrb[0].mxu0 %v2683
        %v2742 = vpop.f32.mrb[0].mxu0
        %v2743 = vadd.f32 1e-06, %v2742
        %v2744 = vpop.f32.mrb[0].mxu0
        %v2745 = vadd.f32 1e-06, %v2744
        %v2746 = vpop.f32.mrb[0].mxu0
        %v2747 = vadd.f32 1e-06, %v2746
        %v2748 = vpop.f32.mrb[0].mxu0
        %v2749 = vadd.f32 1e-06, %v2748
        %2750 = vmatprep.mubr.bf16.mxu0 0
        %2751 = vmatmul.mubr.bf16.gmra.mrb[0].mxu0 %v2686
        %v2752 = vpop.f32.mrb[0].mxu0
        %v2753 = vadd.f32 1e-06, %v2752
        %v2754 = vpop.f32.mrb[0].mxu0
        %v2755 = vadd.f32 1e-06, %v2754
        %v2756 = vpop.f32.mrb[0].mxu0
        %v2757 = vadd.f32 1e-06, %v2756
        %v2758 = vpop.f32.mrb[0].mxu0
        %v2759 = vadd.f32 1e-06, %v2758
        %2760 = vdwg.mxu0
        %v2761 = vrcp.pop %v2723
        %v2762 = vrcp.pop %v2725
        %v2763 = vrcp.pop %v2727
        %v2764 = vrcp.pop %v2729
        %v2765 = vrcp.pop %v2733
        %v2766 = vrcp.pop %v2735
        %v2767 = vrcp.pop %v2737
        %v2768 = vrcp.pop %v2739
        %v2769 = vrcp.pop %v2743
        %v2770 = vrcp.pop %v2745
        %v2771 = vrcp.pop %v2747
        %v2772 = vrcp.pop %v2749
        %v2773 = vrcp.pop %v2753
        %v2774 = vrcp.pop %v2755
        %v2775 = vrcp.pop %v2757
        %v2776 = vrcp.pop %v2759
        %v2777 = vmul.f32 %v2660, %v2761
        %v2778 = vmul.f32 %v2661, %v2762
        %v2779 = vmul.f32 %v2662, %v2763
        %v2780 = vmul.f32 %v2663, %v2764
        %v2781 = vmul.f32 %v2664, %v2765
        %v2782 = vmul.f32 %v2665, %v2766
        %v2783 = vmul.f32 %v2666, %v2767
        %v2784 = vmul.f32 %v2667, %v2768
        %v2785 = vmul.f32 %v2668, %v2769
        %v2786 = vmul.f32 %v2669, %v2770
        %v2787 = vmul.f32 %v2670, %v2771
        %v2788 = vmul.f32 %v2671, %v2772
        %v2789 = vmul.f32 %v2672, %v2773
        %v2790 = vmul.f32 %v2673, %v2774
        %v2791 = vmul.f32 %v2674, %v2775
        %v2792 = vmul.f32 %v2675, %v2776
        %v2793 = vpack.c.bf16 %v2779, %v2777
        %v2794 = vpack.c.bf16 %v2780, %v2778
        %v2795 = vpack.c.bf16 %v2783, %v2781
        %v2796 = vpack.c.bf16 %v2784, %v2782
        %v2797 = vpack.c.bf16 %v2787, %v2785
        %v2798 = vpack.c.bf16 %v2788, %v2786
        %v2799 = vpack.c.bf16 %v2791, %v2789
        %v2800 = vpack.c.bf16 %v2792, %v2790
        %2801 = vmatprep.subr.bf16.mxu0 %v206
        %2802 = vmatpush1.bf16.xpose.msra.mxu0 %v205
        %2803 = vmatprep.subr.bf16.mxu0 0
        %2804 = vmatpush1.bf16.xpose.msra.mxu0 0
        %2805 = vmatprep.subr.bf16.mxu0 0
        %2806 = vmatpush1.bf16.xpose.msra.mxu0 0
        %2807 = vmatprep.subr.bf16.mxu0 0
        %2808 = vmatpush1.bf16.xpose.msra.mxu0 0
        %2809 = vmatprep.subr.bf16.mxu0 0
        %2810 = vmatpush1.bf16.xpose.msra.mxu0 0
        %2811 = vmatprep.subr.bf16.mxu0 0
        %2812 = vmatpush1.bf16.xpose.msra.mxu0 0
        %2813 = vmatprep.subr.bf16.mxu0 0
        %2814 = vmatpush1.bf16.xpose.msra.mxu0 0
        %2815 = vmatprep.subr.bf16.mxu0 0
        %2816 = vmatpush1.bf16.xpose.msra.mxu0 0
        %2817 = vmatprep.subr.bf16.mxu0 0
        %2818 = vmatpush1.bf16.xpose.msra.mxu0 0
        %2819 = vmatprep.subr.bf16.mxu0 0
        %2820 = vmatpush1.bf16.xpose.msra.mxu0 0
        %2821 = vmatprep.subr.bf16.mxu0 0
        %2822 = vmatpush1.bf16.xpose.msra.mxu0 0
        %2823 = vmatprep.subr.bf16.mxu0 0
        %2824 = vmatpush1.bf16.xpose.msra.mxu0 0
        %2825 = vmatprep.subr.bf16.mxu0 0
        %2826 = vmatpush1.bf16.xpose.msra.mxu0 0
        %2827 = vmatprep.subr.bf16.mxu0 0
        %2828 = vmatpush1.bf16.xpose.msra.mxu0 0
        %2829 = vmatprep.subr.bf16.mxu0 0
        %2830 = vmatpush1.bf16.xpose.msra.mxu0 0
        %2831 = vmatprep.subr.bf16.mxu0 0
        %2832 = vmatpush1.bf16.xpose.msra.mxu0 0
        %2833 = vmatprep.mubr.bf16.mxu0 %v2794
        %2834 = vmatmul.mubr.bf16.gmra.mrb[0].mxu0 %v2793
        %v2835 = vpop.f32.mrb[0].mxu0
        %v2836 = vadd.f32 0.0, %v2835
        %v2837 = vpop.f32.mrb[0].mxu0
        %v2838 = vpop.f32.mrb[0].mxu0
        %v2839 = vadd.f32 0.0, %v2838
        %v2840 = vpop.f32.mrb[0].mxu0
        %2841 = vmatprep.mubr.bf16.mxu0 %v2796
        %2842 = vmatmul.mubr.bf16.gmra.mrb[0].mxu0 %v2795
        %v2843 = vpop.f32.mrb[0].mxu0
        %v2844 = vadd.f32 0.0, %v2843
        %v2845 = vpop.f32.mrb[0].mxu0
        %v2846 = vpop.f32.mrb[0].mxu0
        %v2847 = vadd.f32 0.0, %v2846
        %v2848 = vpop.f32.mrb[0].mxu0
        %2849 = vmatprep.mubr.bf16.mxu0 %v2798
        %2850 = vmatmul.mubr.bf16.gmra.mrb[0].mxu0 %v2797
        %v2851 = vpop.f32.mrb[0].mxu0
        %v2852 = vadd.f32 0.0, %v2851
        %v2853 = vpop.f32.mrb[0].mxu0
        %v2854 = vpop.f32.mrb[0].mxu0
        %v2855 = vadd.f32 0.0, %v2854
        %v2856 = vpop.f32.mrb[0].mxu0
        %2857 = vmatprep.mubr.bf16.mxu0 %v2800
        %2858 = vmatmul.mubr.bf16.gmra.mrb[0].mxu0 %v2799
        %v2859 = vpop.f32.mrb[0].mxu0
        %v2860 = vadd.f32 0.0, %v2859
        %v2861 = vpop.f32.mrb[0].mxu0
        %v2862 = vpop.f32.mrb[0].mxu0
        %v2863 = vadd.f32 0.0, %v2862
        %v2864 = vpop.f32.mrb[0].mxu0
        %2865 = vdwg.mxu0
        %2866 = vmatprep.subr.bf16.mxu0 %v2794
        %2867 = vmatpush1.bf16.xpose.msra.mxu0 %v2793
        %2868 = vmatprep.subr.bf16.mxu0 %v2796
        %2869 = vmatpush1.bf16.xpose.msra.mxu0 %v2795
        %2870 = vmatprep.subr.bf16.mxu0 %v2798
        %2871 = vmatpush1.bf16.xpose.msra.mxu0 %v2797
        %2872 = vmatprep.subr.bf16.mxu0 %v2800
        %2873 = vmatpush1.bf16.xpose.msra.mxu0 %v2799
        %2874 = vmatprep.subr.bf16.mxu0 0
        %2875 = vmatpush1.bf16.xpose.msra.mxu0 0
        %2876 = vmatprep.subr.bf16.mxu0 0
        %2877 = vmatpush1.bf16.xpose.msra.mxu0 0
        %2878 = vmatprep.subr.bf16.mxu0 0
        %2879 = vmatpush1.bf16.xpose.msra.mxu0 0
        %2880 = vmatprep.subr.bf16.mxu0 0
        %2881 = vmatpush1.bf16.xpose.msra.mxu0 0
        %2882 = vmatprep.subr.bf16.mxu0 0
        %2883 = vmatpush1.bf16.xpose.msra.mxu0 0
        %2884 = vmatprep.subr.bf16.mxu0 0
        %2885 = vmatpush1.bf16.xpose.msra.mxu0 0
        %2886 = vmatprep.subr.bf16.mxu0 0
        %2887 = vmatpush1.bf16.xpose.msra.mxu0 0
        %2888 = vmatprep.subr.bf16.mxu0 0
        %2889 = vmatpush1.bf16.xpose.msra.mxu0 0
        %2890 = vmatprep.subr.bf16.mxu0 0
        %2891 = vmatpush1.bf16.xpose.msra.mxu0 0
        %2892 = vmatprep.subr.bf16.mxu0 0
        %2893 = vmatpush1.bf16.xpose.msra.mxu0 0
        %2894 = vmatprep.subr.bf16.mxu0 0
        %2895 = vmatpush1.bf16.xpose.msra.mxu0 0
        %2896 = vmatprep.subr.bf16.mxu0 0
        %2897 = vmatpush1.bf16.xpose.msra.mxu0 0
        %2898 = vmatprep.mubr.bf16.mxu0 %v2794
        %2899 = vmatmul.mubr.bf16.gmra.mrb[0].mxu0 %v2793
        %v2900 = vpop.f32.mrb[0].mxu0
        %v2901 = vadd.f32 0.0, %v2900
        %v2902 = vpop.f32.mrb[0].mxu0
        %v2903 = vpop.f32.mrb[0].mxu0
        %v2904 = vadd.f32 0.0, %v2903
        %v2905 = vpop.f32.mrb[0].mxu0
        %2906 = vmatprep.mubr.bf16.mxu0 %v2796
        %2907 = vmatmul.mubr.bf16.gmra.mrb[0].mxu0 %v2795
        %v2908 = vpop.f32.mrb[0].mxu0
        %v2909 = vadd.f32 0.0, %v2908
        %v2910 = vpop.f32.mrb[0].mxu0
        %v2911 = vpop.f32.mrb[0].mxu0
        %v2912 = vadd.f32 0.0, %v2911
        %v2913 = vpop.f32.mrb[0].mxu0
        %2914 = vmatprep.mubr.bf16.mxu0 %v2798
        %2915 = vmatmul.mubr.bf16.gmra.mrb[0].mxu0 %v2797
        %v2916 = vpop.f32.mrb[0].mxu0
        %v2917 = vadd.f32 0.0, %v2916
        %v2918 = vpop.f32.mrb[0].mxu0
        %v2919 = vpop.f32.mrb[0].mxu0
        %v2920 = vadd.f32 0.0, %v2919
        %v2921 = vpop.f32.mrb[0].mxu0
        %2922 = vmatprep.mubr.bf16.mxu0 %v2800
        %2923 = vmatmul.mubr.bf16.gmra.mrb[0].mxu0 %v2799
        %v2924 = vpop.f32.mrb[0].mxu0
        %v2925 = vadd.f32 0.0, %v2924
        %v2926 = vpop.f32.mrb[0].mxu0
        %v2927 = vpop.f32.mrb[0].mxu0
        %v2928 = vadd.f32 0.0, %v2927
        %v2929 = vpop.f32.mrb[0].mxu0
        %2930 = vdwg.mxu0
        %v2931 = vpack.c.bf16 %v2904, %v2901
        %v2932 = vpack.c.bf16 %v2912, %v2909
        %v2933 = vpack.c.bf16 %v2920, %v2917
        %v2934 = vpack.c.bf16 %v2928, %v2925
        %v2935 = vmul.f32 %v2494, %v2836
        %v2936 = vmul.f32 %v2495, %v2839
        %v2937 = vmul.f32 %v2496, %v2844
        %v2938 = vmul.f32 %v2497, %v2847
        %v2939 = vmul.f32 %v2498, %v2852
        %v2940 = vmul.f32 %v2499, %v2855
        %v2941 = vmul.f32 %v2500, %v2860
        %v2942 = vmul.f32 %v2501, %v2863
        %v2944 = vsel %vm539, %v2931, 0
        %v2947 = vsel %vm539, %v2932, 0
        %v2950 = vsel %vm539, %v2933, 0
        %v2953 = vsel %vm539, %v2934, 0
        %2955 = vmatprep.subr.bf16.mxu0 0
        %2956 = vmatpush1.bf16.msra.mxu0 %v2502
        %2957 = vmatprep.subr.bf16.mxu0 0
        %2958 = vmatpush1.bf16.msra.mxu0 %v2503
        %2959 = vmatprep.subr.bf16.mxu0 0
        %2960 = vmatpush1.bf16.msra.mxu0 %v2504
        %2961 = vmatprep.subr.bf16.mxu0 0
        %2962 = vmatpush1.bf16.msra.mxu0 %v2505
        %2963 = vmatprep.subr.bf16.mxu0 0
        %2964 = vmatpush1.bf16.msra.mxu0 0
        %2965 = vmatprep.subr.bf16.mxu0 0
        %2966 = vmatpush1.bf16.msra.mxu0 0
        %2967 = vmatprep.subr.bf16.mxu0 0
        %2968 = vmatpush1.bf16.msra.mxu0 0
        %2969 = vmatprep.subr.bf16.mxu0 0
        %2970 = vmatpush1.bf16.msra.mxu0 0
        %2971 = vmatprep.subr.bf16.mxu0 0
        %2972 = vmatpush1.bf16.msra.mxu0 0
        %2973 = vmatprep.subr.bf16.mxu0 0
        %2974 = vmatpush1.bf16.msra.mxu0 0
        %2975 = vmatprep.subr.bf16.mxu0 0
        %2976 = vmatpush1.bf16.msra.mxu0 0
        %2977 = vmatprep.subr.bf16.mxu0 0
        %2978 = vmatpush1.bf16.msra.mxu0 0
        %2979 = vmatprep.subr.bf16.mxu0 0
        %2980 = vmatpush1.bf16.msra.mxu0 0
        %2981 = vmatprep.subr.bf16.mxu0 0
        %2982 = vmatpush1.bf16.msra.mxu0 0
        %2983 = vmatprep.subr.bf16.mxu0 0
        %2984 = vmatpush1.bf16.msra.mxu0 0
        %2985 = vmatprep.subr.bf16.mxu0 0
        %2986 = vmatpush1.bf16.msra.mxu0 0
        %2987 = vmatprep.mubr.bf16.mxu0 0
        %2988 = vmatmul.mubr.bf16.gmra.mrb[0].mxu0 %v2944
        %v2989 = vpop.f32.mrb[0].mxu0
        %v2990 = vadd.f32 1e-06, %v2989
        %v2991 = vpop.f32.mrb[0].mxu0
        %v2992 = vpop.f32.mrb[0].mxu0
        %v2993 = vadd.f32 1e-06, %v2992
        %v2994 = vpop.f32.mrb[0].mxu0
        %2995 = vmatprep.mubr.bf16.mxu0 0
        %2996 = vmatmul.mubr.bf16.gmra.mrb[0].mxu0 %v2947
        %v2997 = vpop.f32.mrb[0].mxu0
        %v2998 = vadd.f32 1e-06, %v2997
        %v2999 = vpop.f32.mrb[0].mxu0
        %v3000 = vpop.f32.mrb[0].mxu0
        %v3001 = vadd.f32 1e-06, %v3000
        %v3002 = vpop.f32.mrb[0].mxu0
        %3003 = vmatprep.mubr.bf16.mxu0 0
        %3004 = vmatmul.mubr.bf16.gmra.mrb[0].mxu0 %v2950
        %v3005 = vpop.f32.mrb[0].mxu0
        %v3006 = vadd.f32 1e-06, %v3005
        %v3007 = vpop.f32.mrb[0].mxu0
        %v3008 = vpop.f32.mrb[0].mxu0
        %v3009 = vadd.f32 1e-06, %v3008
        %v3010 = vpop.f32.mrb[0].mxu0
        %3011 = vmatprep.mubr.bf16.mxu0 0
        %3012 = vmatmul.mubr.bf16.gmra.mrb[0].mxu0 %v2953
        %v3013 = vpop.f32.mrb[0].mxu0
        %v3014 = vadd.f32 1e-06, %v3013
        %v3015 = vpop.f32.mrb[0].mxu0
        %v3016 = vpop.f32.mrb[0].mxu0
        %v3017 = vadd.f32 1e-06, %v3016
        %v3018 = vpop.f32.mrb[0].mxu0
        %3019 = vdwg.mxu0
        %v3020 = vrcp.pop %v2990
        %v3021 = vrcp.pop %v2993
        %v3022 = vrcp.pop %v2998
        %v3023 = vrcp.pop %v3001
        %v3024 = vrcp.pop %v3006
        %v3025 = vrcp.pop %v3009
        %v3026 = vrcp.pop %v3014
        %v3027 = vrcp.pop %v3017
        %v3028 = vmul.f32 %v2935, %v3020
        %v3029 = vmul.f32 %v2936, %v3021
        %v3030 = vmul.f32 %v2937, %v3022
        %v3031 = vmul.f32 %v2938, %v3023
        %v3032 = vmul.f32 %v2939, %v3024
        %v3033 = vmul.f32 %v2940, %v3025
        %v3034 = vmul.f32 %v2941, %v3026
        %v3035 = vmul.f32 %v2942, %v3027
        %v3036 = vpack.c.bf16 %v3029, %v3028
        %v3037 = vpack.c.bf16 %v3031, %v3030
        %v3038 = vpack.c.bf16 %v3033, %v3032
        %v3039 = vpack.c.bf16 %v3035, %v3034
        %v3041 = vsel %vm219, %v3036, 0
        %v3044 = vsel %vm219, %v3037, 0
        %v3047 = vsel %vm219, %v3038, 0
        %v3050 = vsel %vm219, %v3039, 0
        %3052 = vmatprep.subr.bf16.mxu0 %v237
        %3053 = vmatpush1.bf16.msra.mxu0 %v234
        %3054 = vmatprep.subr.bf16.mxu0 0
        %3055 = vmatpush1.bf16.msra.mxu0 0
        %3056 = vmatprep.subr.bf16.mxu0 0
        %3057 = vmatpush1.bf16.msra.mxu0 0
        %3058 = vmatprep.subr.bf16.mxu0 0
        %3059 = vmatpush1.bf16.msra.mxu0 0
        %3060 = vmatprep.subr.bf16.mxu0 0
        %3061 = vmatpush1.bf16.msra.mxu0 0
        %3062 = vmatprep.subr.bf16.mxu0 0
        %3063 = vmatpush1.bf16.msra.mxu0 0
        %3064 = vmatprep.subr.bf16.mxu0 0
        %3065 = vmatpush1.bf16.msra.mxu0 0
        %3066 = vmatprep.subr.bf16.mxu0 0
        %3067 = vmatpush1.bf16.msra.mxu0 0
        %3068 = vmatprep.subr.bf16.mxu0 0
        %3069 = vmatpush1.bf16.msra.mxu0 0
        %3070 = vmatprep.subr.bf16.mxu0 0
        %3071 = vmatpush1.bf16.msra.mxu0 0
        %3072 = vmatprep.subr.bf16.mxu0 0
        %3073 = vmatpush1.bf16.msra.mxu0 0
        %3074 = vmatprep.subr.bf16.mxu0 0
        %3075 = vmatpush1.bf16.msra.mxu0 0
        %3076 = vmatprep.subr.bf16.mxu0 0
        %3077 = vmatpush1.bf16.msra.mxu0 0
        %3078 = vmatprep.subr.bf16.mxu0 0
        %3079 = vmatpush1.bf16.msra.mxu0 0
        %3080 = vmatprep.subr.bf16.mxu0 0
        %3081 = vmatpush1.bf16.msra.mxu0 0
        %3082 = vmatprep.subr.bf16.mxu0 0
        %3083 = vmatpush1.bf16.msra.mxu0 0
        %3084 = vmatprep.mubr.bf16.mxu0 0
        %3085 = vmatmul.mubr.bf16.gmra.mrb[0].mxu0 %v3041
        %v3086 = vpop.f32.mrb[0].mxu0
        %v3087 = vadd.f32 0.0, %v3086
        %v3088 = vpop.f32.mrb[0].mxu0
        %v3089 = vadd.f32 0.0, %v3088
        %v3090 = vpop.f32.mrb[0].mxu0
        %v3091 = vadd.f32 0.0, %v3090
        %v3092 = vpop.f32.mrb[0].mxu0
        %v3093 = vadd.f32 0.0, %v3092
        %3094 = vmatprep.mubr.bf16.mxu0 0
        %3095 = vmatmul.mubr.bf16.gmra.mrb[0].mxu0 %v3044
        %v3096 = vpop.f32.mrb[0].mxu0
        %v3097 = vadd.f32 0.0, %v3096
        %v3098 = vpop.f32.mrb[0].mxu0
        %v3099 = vadd.f32 0.0, %v3098
        %v3100 = vpop.f32.mrb[0].mxu0
        %v3101 = vadd.f32 0.0, %v3100
        %v3102 = vpop.f32.mrb[0].mxu0
        %v3103 = vadd.f32 0.0, %v3102
        %3104 = vmatprep.mubr.bf16.mxu0 0
        %3105 = vmatmul.mubr.bf16.gmra.mrb[0].mxu0 %v3047
        %v3106 = vpop.f32.mrb[0].mxu0
        %v3107 = vadd.f32 0.0, %v3106
        %v3108 = vpop.f32.mrb[0].mxu0
        %v3109 = vadd.f32 0.0, %v3108
        %v3110 = vpop.f32.mrb[0].mxu0
        %v3111 = vadd.f32 0.0, %v3110
        %v3112 = vpop.f32.mrb[0].mxu0
        %v3113 = vadd.f32 0.0, %v3112
        %3114 = vmatprep.mubr.bf16.mxu0 0
        %3115 = vmatmul.mubr.bf16.gmra.mrb[0].mxu0 %v3050
        %v3116 = vpop.f32.mrb[0].mxu0
        %v3117 = vadd.f32 0.0, %v3116
        %v3118 = vpop.f32.mrb[0].mxu0
        %v3119 = vadd.f32 0.0, %v3118
        %v3120 = vpop.f32.mrb[0].mxu0
        %v3121 = vadd.f32 0.0, %v3120
        %v3122 = vpop.f32.mrb[0].mxu0
        %v3123 = vadd.f32 0.0, %v3122
        %3124 = vdwg.mxu0
        %3125 = vmatprep.subr.bf16.mxu0 0
        %3126 = vmatpush1.bf16.xpose.msra.mxu0 %v3041
        %3127 = vmatprep.subr.bf16.mxu0 0
        %3128 = vmatpush1.bf16.xpose.msra.mxu0 %v3044
        %3129 = vmatprep.subr.bf16.mxu0 0
        %3130 = vmatpush1.bf16.xpose.msra.mxu0 %v3047
        %3131 = vmatprep.subr.bf16.mxu0 0
        %3132 = vmatpush1.bf16.xpose.msra.mxu0 %v3050
        %3133 = vmatprep.subr.bf16.mxu0 0
        %3134 = vmatpush1.bf16.xpose.msra.mxu0 0
        %3135 = vmatprep.subr.bf16.mxu0 0
        %3136 = vmatpush1.bf16.xpose.msra.mxu0 0
        %3137 = vmatprep.subr.bf16.mxu0 0
        %3138 = vmatpush1.bf16.xpose.msra.mxu0 0
        %3139 = vmatprep.subr.bf16.mxu0 0
        %3140 = vmatpush1.bf16.xpose.msra.mxu0 0
        %3141 = vmatprep.subr.bf16.mxu0 0
        %3142 = vmatpush1.bf16.xpose.msra.mxu0 0
        %3143 = vmatprep.subr.bf16.mxu0 0
        %3144 = vmatpush1.bf16.xpose.msra.mxu0 0
        %3145 = vmatprep.subr.bf16.mxu0 0
        %3146 = vmatpush1.bf16.xpose.msra.mxu0 0
        %3147 = vmatprep.subr.bf16.mxu0 0
        %3148 = vmatpush1.bf16.xpose.msra.mxu0 0
        %3149 = vmatprep.subr.bf16.mxu0 0
        %3150 = vmatpush1.bf16.xpose.msra.mxu0 0
        %3151 = vmatprep.subr.bf16.mxu0 0
        %3152 = vmatpush1.bf16.xpose.msra.mxu0 0
        %3153 = vmatprep.subr.bf16.mxu0 0
        %3154 = vmatpush1.bf16.xpose.msra.mxu0 0
        %3155 = vmatprep.subr.bf16.mxu0 0
        %3156 = vmatpush1.bf16.xpose.msra.mxu0 0
        %3157 = vmatprep.mubr.bf16.mxu0 0
        %3158 = vmatmul.mubr.bf16.gmra.mrb[0].mxu0 %v3041
        %v3159 = vpop.f32.mrb[0].mxu0
        %v3160 = vadd.f32 0.0, %v3159
        %v3161 = vpop.f32.mrb[0].mxu0
        %v3162 = vpop.f32.mrb[0].mxu0
        %v3163 = vadd.f32 0.0, %v3162
        %v3164 = vpop.f32.mrb[0].mxu0
        %3165 = vmatprep.mubr.bf16.mxu0 0
        %3166 = vmatmul.mubr.bf16.gmra.mrb[0].mxu0 %v3044
        %v3167 = vpop.f32.mrb[0].mxu0
        %v3168 = vadd.f32 0.0, %v3167
        %v3169 = vpop.f32.mrb[0].mxu0
        %v3170 = vpop.f32.mrb[0].mxu0
        %v3171 = vadd.f32 0.0, %v3170
        %v3172 = vpop.f32.mrb[0].mxu0
        %3173 = vmatprep.mubr.bf16.mxu0 0
        %3174 = vmatmul.mubr.bf16.gmra.mrb[0].mxu0 %v3047
        %v3175 = vpop.f32.mrb[0].mxu0
        %v3176 = vadd.f32 0.0, %v3175
        %v3177 = vpop.f32.mrb[0].mxu0
        %v3178 = vpop.f32.mrb[0].mxu0
        %v3179 = vadd.f32 0.0, %v3178
        %v3180 = vpop.f32.mrb[0].mxu0
        %3181 = vmatprep.mubr.bf16.mxu0 0
        %3182 = vmatmul.mubr.bf16.gmra.mrb[0].mxu0 %v3050
        %v3183 = vpop.f32.mrb[0].mxu0
        %v3184 = vadd.f32 0.0, %v3183
        %v3185 = vpop.f32.mrb[0].mxu0
        %v3186 = vpop.f32.mrb[0].mxu0
        %v3187 = vadd.f32 0.0, %v3186
        %v3188 = vpop.f32.mrb[0].mxu0
        %3189 = vdwg.mxu0
        %v3190 = vpack.c.bf16 %v3163, %v3160
        %v3191 = vpack.c.bf16 %v3171, %v3168
        %v3192 = vpack.c.bf16 %v3179, %v3176
        %v3193 = vpack.c.bf16 %v3187, %v3184
        %v3194 = vmul.f32 %v2777, %v3087
        %v3195 = vmul.f32 %v2778, %v3089
        %v3196 = vmul.f32 %v2779, %v3091
        %v3197 = vmul.f32 %v2780, %v3093
        %v3198 = vmul.f32 %v2781, %v3097
        %v3199 = vmul.f32 %v2782, %v3099
        %v3200 = vmul.f32 %v2783, %v3101
        %v3201 = vmul.f32 %v2784, %v3103
        %v3202 = vmul.f32 %v2785, %v3107
        %v3203 = vmul.f32 %v2786, %v3109
        %v3204 = vmul.f32 %v2787, %v3111
        %v3205 = vmul.f32 %v2788, %v3113
        %v3206 = vmul.f32 %v2789, %v3117
        %v3207 = vmul.f32 %v2790, %v3119
        %v3208 = vmul.f32 %v2791, %v3121
        %v3209 = vmul.f32 %v2792, %v3123
        %v3211 = vsel %vm539, %v3190, 0
        %v3214 = vsel %vm539, %v3191, 0
        %v3217 = vsel %vm539, %v3192, 0
        %v3220 = vsel %vm539, %v3193, 0
        %3222 = vmatprep.subr.bf16.mxu0 %v2794
        %3223 = vmatpush1.bf16.msra.mxu0 %v2793
        %3224 = vmatprep.subr.bf16.mxu0 %v2796
        %3225 = vmatpush1.bf16.msra.mxu0 %v2795
        %3226 = vmatprep.subr.bf16.mxu0 %v2798
        %3227 = vmatpush1.bf16.msra.mxu0 %v2797
        %3228 = vmatprep.subr.bf16.mxu0 %v2800
        %3229 = vmatpush1.bf16.msra.mxu0 %v2799
        %3230 = vmatprep.subr.bf16.mxu0 0
        %3231 = vmatpush1.bf16.msra.mxu0 0
        %3232 = vmatprep.subr.bf16.mxu0 0
        %3233 = vmatpush1.bf16.msra.mxu0 0
        %3234 = vmatprep.subr.bf16.mxu0 0
        %3235 = vmatpush1.bf16.msra.mxu0 0
        %3236 = vmatprep.subr.bf16.mxu0 0
        %3237 = vmatpush1.bf16.msra.mxu0 0
        %3238 = vmatprep.subr.bf16.mxu0 0
        %3239 = vmatpush1.bf16.msra.mxu0 0
        %3240 = vmatprep.subr.bf16.mxu0 0
        %3241 = vmatpush1.bf16.msra.mxu0 0
        %3242 = vmatprep.subr.bf16.mxu0 0
        %3243 = vmatpush1.bf16.msra.mxu0 0
        %3244 = vmatprep.subr.bf16.mxu0 0
        %3245 = vmatpush1.bf16.msra.mxu0 0
        %3246 = vmatprep.subr.bf16.mxu0 0
        %3247 = vmatpush1.bf16.msra.mxu0 0
        %3248 = vmatprep.subr.bf16.mxu0 0
        %3249 = vmatpush1.bf16.msra.mxu0 0
        %3250 = vmatprep.subr.bf16.mxu0 0
        %3251 = vmatpush1.bf16.msra.mxu0 0
        %3252 = vmatprep.subr.bf16.mxu0 0
        %3253 = vmatpush1.bf16.msra.mxu0 0
        %3254 = vmatprep.mubr.bf16.mxu0 0
        %3255 = vmatmul.mubr.bf16.gmra.mrb[0].mxu0 %v3211
        %v3256 = vpop.f32.mrb[0].mxu0
        %v3257 = vadd.f32 1e-06, %v3256
        %v3258 = vpop.f32.mrb[0].mxu0
        %v3259 = vadd.f32 1e-06, %v3258
        %v3260 = vpop.f32.mrb[0].mxu0
        %v3261 = vadd.f32 1e-06, %v3260
        %v3262 = vpop.f32.mrb[0].mxu0
        %v3263 = vadd.f32 1e-06, %v3262
        %3264 = vmatprep.mubr.bf16.mxu0 0
        %3265 = vmatmul.mubr.bf16.gmra.mrb[0].mxu0 %v3214
        %v3266 = vpop.f32.mrb[0].mxu0
        %v3267 = vadd.f32 1e-06, %v3266
        %v3268 = vpop.f32.mrb[0].mxu0
        %v3269 = vadd.f32 1e-06, %v3268
        %v3270 = vpop.f32.mrb[0].mxu0
        %v3271 = vadd.f32 1e-06, %v3270
        %v3272 = vpop.f32.mrb[0].mxu0
        %v3273 = vadd.f32 1e-06, %v3272
        %3274 = vmatprep.mubr.bf16.mxu0 0
        %3275 = vmatmul.mubr.bf16.gmra.mrb[0].mxu0 %v3217
        %v3276 = vpop.f32.mrb[0].mxu0
        %v3277 = vadd.f32 1e-06, %v3276
        %v3278 = vpop.f32.mrb[0].mxu0
        %v3279 = vadd.f32 1e-06, %v3278
        %v3280 = vpop.f32.mrb[0].mxu0
        %v3281 = vadd.f32 1e-06, %v3280
        %v3282 = vpop.f32.mrb[0].mxu0
        %v3283 = vadd.f32 1e-06, %v3282
        %3284 = vmatprep.mubr.bf16.mxu0 0
        %3285 = vmatmul.mubr.bf16.gmra.mrb[0].mxu0 %v3220
        %v3286 = vpop.f32.mrb[0].mxu0
        %v3287 = vadd.f32 1e-06, %v3286
        %v3288 = vpop.f32.mrb[0].mxu0
        %v3289 = vadd.f32 1e-06, %v3288
        %v3290 = vpop.f32.mrb[0].mxu0
        %v3291 = vadd.f32 1e-06, %v3290
        %v3292 = vpop.f32.mrb[0].mxu0
        %v3293 = vadd.f32 1e-06, %v3292
        %3294 = vdwg.mxu0
        %v3295 = vrcp.pop %v3257
        %v3296 = vrcp.pop %v3259
        %v3297 = vrcp.pop %v3261
        %v3298 = vrcp.pop %v3263
        %v3299 = vrcp.pop %v3267
        %v3300 = vrcp.pop %v3269
        %v3301 = vrcp.pop %v3271
        %v3302 = vrcp.pop %v3273
        %v3303 = vrcp.pop %v3277
        %v3304 = vrcp.pop %v3279
        %v3305 = vrcp.pop %v3281
        %v3306 = vrcp.pop %v3283
        %v3307 = vrcp.pop %v3287
        %v3308 = vrcp.pop %v3289
        %v3309 = vrcp.pop %v3291
        %v3310 = vrcp.pop %v3293
        %v3311 = vmul.f32 %v3194, %v3295
        %v3312 = vmul.f32 %v3195, %v3296
        %v3313 = vmul.f32 %v3196, %v3297
        %v3314 = vmul.f32 %v3197, %v3298
        %v3315 = vmul.f32 %v3198, %v3299
        %v3316 = vmul.f32 %v3199, %v3300
        %v3317 = vmul.f32 %v3200, %v3301
        %v3318 = vmul.f32 %v3201, %v3302
        %v3319 = vmul.f32 %v3202, %v3303
        %v3320 = vmul.f32 %v3203, %v3304
        %v3321 = vmul.f32 %v3204, %v3305
        %v3322 = vmul.f32 %v3205, %v3306
        %v3323 = vmul.f32 %v3206, %v3307
        %v3324 = vmul.f32 %v3207, %v3308
        %v3325 = vmul.f32 %v3208, %v3309
        %v3326 = vmul.f32 %v3209, %v3310
        %v3327 = vpack.c.bf16 %v3313, %v3311
        %v3328 = vpack.c.bf16 %v3314, %v3312
        %v3329 = vpack.c.bf16 %v3317, %v3315
        %v3330 = vpack.c.bf16 %v3318, %v3316
        %v3331 = vpack.c.bf16 %v3321, %v3319
        %v3332 = vpack.c.bf16 %v3322, %v3320
        %v3333 = vpack.c.bf16 %v3325, %v3323
        %v3334 = vpack.c.bf16 %v3326, %v3324
        %3335 = vmatprep.subr.bf16.mxu0 %v206
        %3336 = vmatpush1.bf16.xpose.msra.mxu0 %v205
        %3337 = vmatprep.subr.bf16.mxu0 0
        %3338 = vmatpush1.bf16.xpose.msra.mxu0 0
        %3339 = vmatprep.subr.bf16.mxu0 0
        %3340 = vmatpush1.bf16.xpose.msra.mxu0 0
        %3341 = vmatprep.subr.bf16.mxu0 0
        %3342 = vmatpush1.bf16.xpose.msra.mxu0 0
        %3343 = vmatprep.subr.bf16.mxu0 0
        %3344 = vmatpush1.bf16.xpose.msra.mxu0 0
        %3345 = vmatprep.subr.bf16.mxu0 0
        %3346 = vmatpush1.bf16.xpose.msra.mxu0 0
        %3347 = vmatprep.subr.bf16.mxu0 0
        %3348 = vmatpush1.bf16.xpose.msra.mxu0 0
        %3349 = vmatprep.subr.bf16.mxu0 0
        %3350 = vmatpush1.bf16.xpose.msra.mxu0 0
        %3351 = vmatprep.subr.bf16.mxu0 0
        %3352 = vmatpush1.bf16.xpose.msra.mxu0 0
        %3353 = vmatprep.subr.bf16.mxu0 0
        %3354 = vmatpush1.bf16.xpose.msra.mxu0 0
        %3355 = vmatprep.subr.bf16.mxu0 0
        %3356 = vmatpush1.bf16.xpose.msra.mxu0 0
        %3357 = vmatprep.subr.bf16.mxu0 0
        %3358 = vmatpush1.bf16.xpose.msra.mxu0 0
        %3359 = vmatprep.subr.bf16.mxu0 0
        %3360 = vmatpush1.bf16.xpose.msra.mxu0 0
        %3361 = vmatprep.subr.bf16.mxu0 0
        %3362 = vmatpush1.bf16.xpose.msra.mxu0 0
        %3363 = vmatprep.subr.bf16.mxu0 0
        %3364 = vmatpush1.bf16.xpose.msra.mxu0 0
        %3365 = vmatprep.subr.bf16.mxu0 0
        %3366 = vmatpush1.bf16.xpose.msra.mxu0 0
        %3367 = vmatprep.mubr.bf16.mxu0 %v3328
        %3368 = vmatmul.mubr.bf16.gmra.mrb[0].mxu0 %v3327
        %v3369 = vpop.f32.mrb[0].mxu0
        %v3370 = vadd.f32 0.0, %v3369
        %v3371 = vpop.f32.mrb[0].mxu0
        %v3372 = vpop.f32.mrb[0].mxu0
        %v3373 = vadd.f32 0.0, %v3372
        %v3374 = vpop.f32.mrb[0].mxu0
        %3375 = vmatprep.mubr.bf16.mxu0 %v3330
        %3376 = vmatmul.mubr.bf16.gmra.mrb[0].mxu0 %v3329
        %v3377 = vpop.f32.mrb[0].mxu0
        %v3378 = vadd.f32 0.0, %v3377
        %v3379 = vpop.f32.mrb[0].mxu0
        %v3380 = vpop.f32.mrb[0].mxu0
        %v3381 = vadd.f32 0.0, %v3380
        %v3382 = vpop.f32.mrb[0].mxu0
        %3383 = vmatprep.mubr.bf16.mxu0 %v3332
        %3384 = vmatmul.mubr.bf16.gmra.mrb[0].mxu0 %v3331
        %v3385 = vpop.f32.mrb[0].mxu0
        %v3386 = vadd.f32 0.0, %v3385
        %v3387 = vpop.f32.mrb[0].mxu0
        %v3388 = vpop.f32.mrb[0].mxu0
        %v3389 = vadd.f32 0.0, %v3388
        %v3390 = vpop.f32.mrb[0].mxu0
        %3391 = vmatprep.mubr.bf16.mxu0 %v3334
        %3392 = vmatmul.mubr.bf16.gmra.mrb[0].mxu0 %v3333
        %v3393 = vpop.f32.mrb[0].mxu0
        %v3394 = vadd.f32 0.0, %v3393
        %v3395 = vpop.f32.mrb[0].mxu0
        %v3396 = vpop.f32.mrb[0].mxu0
        %v3397 = vadd.f32 0.0, %v3396
        %v3398 = vpop.f32.mrb[0].mxu0
        %3399 = vdwg.mxu0
        %3400 = vmatprep.subr.bf16.mxu0 %v3328
        %3401 = vmatpush1.bf16.xpose.msra.mxu0 %v3327
        %3402 = vmatprep.subr.bf16.mxu0 %v3330
        %3403 = vmatpush1.bf16.xpose.msra.mxu0 %v3329
        %3404 = vmatprep.subr.bf16.mxu0 %v3332
        %3405 = vmatpush1.bf16.xpose.msra.mxu0 %v3331
        %3406 = vmatprep.subr.bf16.mxu0 %v3334
        %3407 = vmatpush1.bf16.xpose.msra.mxu0 %v3333
        %3408 = vmatprep.subr.bf16.mxu0 0
        %3409 = vmatpush1.bf16.xpose.msra.mxu0 0
        %3410 = vmatprep.subr.bf16.mxu0 0
        %3411 = vmatpush1.bf16.xpose.msra.mxu0 0
        %3412 = vmatprep.subr.bf16.mxu0 0
        %3413 = vmatpush1.bf16.xpose.msra.mxu0 0
        %3414 = vmatprep.subr.bf16.mxu0 0
        %3415 = vmatpush1.bf16.xpose.msra.mxu0 0
        %3416 = vmatprep.subr.bf16.mxu0 0
        %3417 = vmatpush1.bf16.xpose.msra.mxu0 0
        %3418 = vmatprep.subr.bf16.mxu0 0
        %3419 = vmatpush1.bf16.xpose.msra.mxu0 0
        %3420 = vmatprep.subr.bf16.mxu0 0
        %3421 = vmatpush1.bf16.xpose.msra.mxu0 0
        %3422 = vmatprep.subr.bf16.mxu0 0
        %3423 = vmatpush1.bf16.xpose.msra.mxu0 0
        %3424 = vmatprep.subr.bf16.mxu0 0
        %3425 = vmatpush1.bf16.xpose.msra.mxu0 0
        %3426 = vmatprep.subr.bf16.mxu0 0
        %3427 = vmatpush1.bf16.xpose.msra.mxu0 0
        %3428 = vmatprep.subr.bf16.mxu0 0
        %3429 = vmatpush1.bf16.xpose.msra.mxu0 0
        %3430 = vmatprep.subr.bf16.mxu0 0
        %3431 = vmatpush1.bf16.xpose.msra.mxu0 0
        %3432 = vmatprep.mubr.bf16.mxu0 %v3328
        %3433 = vmatmul.mubr.bf16.gmra.mrb[0].mxu0 %v3327
        %v3434 = vpop.f32.mrb[0].mxu0
        %v3435 = vadd.f32 0.0, %v3434
        %v3436 = vpop.f32.mrb[0].mxu0
        %v3437 = vpop.f32.mrb[0].mxu0
        %v3438 = vadd.f32 0.0, %v3437
        %v3439 = vpop.f32.mrb[0].mxu0
        %3440 = vmatprep.mubr.bf16.mxu0 %v3330
        %3441 = vmatmul.mubr.bf16.gmra.mrb[0].mxu0 %v3329
        %v3442 = vpop.f32.mrb[0].mxu0
        %v3443 = vadd.f32 0.0, %v3442
        %v3444 = vpop.f32.mrb[0].mxu0
        %v3445 = vpop.f32.mrb[0].mxu0
        %v3446 = vadd.f32 0.0, %v3445
        %v3447 = vpop.f32.mrb[0].mxu0
        %3448 = vmatprep.mubr.bf16.mxu0 %v3332
        %3449 = vmatmul.mubr.bf16.gmra.mrb[0].mxu0 %v3331
        %v3450 = vpop.f32.mrb[0].mxu0
        %v3451 = vadd.f32 0.0, %v3450
        %v3452 = vpop.f32.mrb[0].mxu0
        %v3453 = vpop.f32.mrb[0].mxu0
        %v3454 = vadd.f32 0.0, %v3453
        %v3455 = vpop.f32.mrb[0].mxu0
        %3456 = vmatprep.mubr.bf16.mxu0 %v3334
        %3457 = vmatmul.mubr.bf16.gmra.mrb[0].mxu0 %v3333
        %v3458 = vpop.f32.mrb[0].mxu0
        %v3459 = vadd.f32 0.0, %v3458
        %v3460 = vpop.f32.mrb[0].mxu0
        %v3461 = vpop.f32.mrb[0].mxu0
        %v3462 = vadd.f32 0.0, %v3461
        %v3463 = vpop.f32.mrb[0].mxu0
        %3464 = vdwg.mxu0
        %v3465 = vpack.c.bf16 %v3438, %v3435
        %v3466 = vpack.c.bf16 %v3446, %v3443
        %v3467 = vpack.c.bf16 %v3454, %v3451
        %v3468 = vpack.c.bf16 %v3462, %v3459
        %v3469 = vmul.f32 %v3028, %v3370
        %v3470 = vmul.f32 %v3029, %v3373
        %v3471 = vmul.f32 %v3030, %v3378
        %v3472 = vmul.f32 %v3031, %v3381
        %v3473 = vmul.f32 %v3032, %v3386
        %v3474 = vmul.f32 %v3033, %v3389
        %v3475 = vmul.f32 %v3034, %v3394
        %v3476 = vmul.f32 %v3035, %v3397
        %v3478 = vsel %vm539, %v3465, 0
        %v3481 = vsel %vm539, %v3466, 0
        %v3484 = vsel %vm539, %v3467, 0
        %v3487 = vsel %vm539, %v3468, 0
        %3489 = vmatprep.subr.bf16.mxu0 0
        %3490 = vmatpush1.bf16.msra.mxu0 %v3036
        %3491 = vmatprep.subr.bf16.mxu0 0
        %3492 = vmatpush1.bf16.msra.mxu0 %v3037
        %3493 = vmatprep.subr.bf16.mxu0 0
        %3494 = vmatpush1.bf16.msra.mxu0 %v3038
        %3495 = vmatprep.subr.bf16.mxu0 0
        %3496 = vmatpush1.bf16.msra.mxu0 %v3039
        %3497 = vmatprep.subr.bf16.mxu0 0
        %3498 = vmatpush1.bf16.msra.mxu0 0
        %3499 = vmatprep.subr.bf16.mxu0 0
        %3500 = vmatpush1.bf16.msra.mxu0 0
        %3501 = vmatprep.subr.bf16.mxu0 0
        %3502 = vmatpush1.bf16.msra.mxu0 0
        %3503 = vmatprep.subr.bf16.mxu0 0
        %3504 = vmatpush1.bf16.msra.mxu0 0
        %3505 = vmatprep.subr.bf16.mxu0 0
        %3506 = vmatpush1.bf16.msra.mxu0 0
        %3507 = vmatprep.subr.bf16.mxu0 0
        %3508 = vmatpush1.bf16.msra.mxu0 0
        %3509 = vmatprep.subr.bf16.mxu0 0
        %3510 = vmatpush1.bf16.msra.mxu0 0
        %3511 = vmatprep.subr.bf16.mxu0 0
        %3512 = vmatpush1.bf16.msra.mxu0 0
        %3513 = vmatprep.subr.bf16.mxu0 0
        %3514 = vmatpush1.bf16.msra.mxu0 0
        %3515 = vmatprep.subr.bf16.mxu0 0
        %3516 = vmatpush1.bf16.msra.mxu0 0
        %3517 = vmatprep.subr.bf16.mxu0 0
        %3518 = vmatpush1.bf16.msra.mxu0 0
        %3519 = vmatprep.subr.bf16.mxu0 0
        %3520 = vmatpush1.bf16.msra.mxu0 0
        %3521 = vmatprep.mubr.bf16.mxu0 0
        %3522 = vmatmul.mubr.bf16.gmra.mrb[0].mxu0 %v3478
        %v3523 = vpop.f32.mrb[0].mxu0
        %v3524 = vadd.f32 1e-06, %v3523
        %v3525 = vpop.f32.mrb[0].mxu0
        %v3526 = vpop.f32.mrb[0].mxu0
        %v3527 = vadd.f32 1e-06, %v3526
        %v3528 = vpop.f32.mrb[0].mxu0
        %3529 = vmatprep.mubr.bf16.mxu0 0
        %3530 = vmatmul.mubr.bf16.gmra.mrb[0].mxu0 %v3481
        %v3531 = vpop.f32.mrb[0].mxu0
        %v3532 = vadd.f32 1e-06, %v3531
        %v3533 = vpop.f32.mrb[0].mxu0
        %v3534 = vpop.f32.mrb[0].mxu0
        %v3535 = vadd.f32 1e-06, %v3534
        %v3536 = vpop.f32.mrb[0].mxu0
        %3537 = vmatprep.mubr.bf16.mxu0 0
        %3538 = vmatmul.mubr.bf16.gmra.mrb[0].mxu0 %v3484
        %v3539 = vpop.f32.mrb[0].mxu0
        %v3540 = vadd.f32 1e-06, %v3539
        %v3541 = vpop.f32.mrb[0].mxu0
        %v3542 = vpop.f32.mrb[0].mxu0
        %v3543 = vadd.f32 1e-06, %v3542
        %v3544 = vpop.f32.mrb[0].mxu0
        %3545 = vmatprep.mubr.bf16.mxu0 0
        %3546 = vmatmul.mubr.bf16.gmra.mrb[0].mxu0 %v3487
        %v3547 = vpop.f32.mrb[0].mxu0
        %v3548 = vadd.f32 1e-06, %v3547
        %v3549 = vpop.f32.mrb[0].mxu0
        %v3550 = vpop.f32.mrb[0].mxu0
        %v3551 = vadd.f32 1e-06, %v3550
        %v3552 = vpop.f32.mrb[0].mxu0
        %3553 = vdwg.mxu0
        %v3554 = vrcp.pop %v3524
        %v3555 = vrcp.pop %v3527
        %v3556 = vrcp.pop %v3532
        %v3557 = vrcp.pop %v3535
        %v3558 = vrcp.pop %v3540
        %v3559 = vrcp.pop %v3543
        %v3560 = vrcp.pop %v3548
        %v3561 = vrcp.pop %v3551
        %v3562 = vmul.f32 %v3469, %v3554
        %v3563 = vmul.f32 %v3470, %v3555
        %v3564 = vmul.f32 %v3471, %v3556
        %v3565 = vmul.f32 %v3472, %v3557
        %v3566 = vmul.f32 %v3473, %v3558
        %v3567 = vmul.f32 %v3474, %v3559
        %v3568 = vmul.f32 %v3475, %v3560
        %v3569 = vmul.f32 %v3476, %v3561
        %v3570 = vpack.c.bf16 %v3563, %v3562
        %v3571 = vpack.c.bf16 %v3565, %v3564
        %v3572 = vpack.c.bf16 %v3567, %v3566
        %v3573 = vpack.c.bf16 %v3569, %v3568
        %v3575 = vsel %vm219, %v3570, 0
        %v3578 = vsel %vm219, %v3571, 0
        %v3581 = vsel %vm219, %v3572, 0
        %v3584 = vsel %vm219, %v3573, 0
        %3586 = vmatprep.subr.bf16.mxu0 %v237
        %3587 = vmatpush1.bf16.msra.mxu0 %v234
        %3588 = vmatprep.subr.bf16.mxu0 0
        %3589 = vmatpush1.bf16.msra.mxu0 0
        %3590 = vmatprep.subr.bf16.mxu0 0
        %3591 = vmatpush1.bf16.msra.mxu0 0
        %3592 = vmatprep.subr.bf16.mxu0 0
        %3593 = vmatpush1.bf16.msra.mxu0 0
        %3594 = vmatprep.subr.bf16.mxu0 0
        %3595 = vmatpush1.bf16.msra.mxu0 0
        %3596 = vmatprep.subr.bf16.mxu0 0
        %3597 = vmatpush1.bf16.msra.mxu0 0
        %3598 = vmatprep.subr.bf16.mxu0 0
        %3599 = vmatpush1.bf16.msra.mxu0 0
        %3600 = vmatprep.subr.bf16.mxu0 0
        %3601 = vmatpush1.bf16.msra.mxu0 0
        %3602 = vmatprep.subr.bf16.mxu0 0
        %3603 = vmatpush1.bf16.msra.mxu0 0
        %3604 = vmatprep.subr.bf16.mxu0 0
        %3605 = vmatpush1.bf16.msra.mxu0 0
        %3606 = vmatprep.subr.bf16.mxu0 0
        %3607 = vmatpush1.bf16.msra.mxu0 0
        %3608 = vmatprep.subr.bf16.mxu0 0
        %3609 = vmatpush1.bf16.msra.mxu0 0
        %3610 = vmatprep.subr.bf16.mxu0 0
        %3611 = vmatpush1.bf16.msra.mxu0 0
        %3612 = vmatprep.subr.bf16.mxu0 0
        %3613 = vmatpush1.bf16.msra.mxu0 0
        %3614 = vmatprep.subr.bf16.mxu0 0
        %3615 = vmatpush1.bf16.msra.mxu0 0
        %3616 = vmatprep.subr.bf16.mxu0 0
        %3617 = vmatpush1.bf16.msra.mxu0 0
        %3618 = vmatprep.mubr.bf16.mxu0 0
        %3619 = vmatmul.mubr.bf16.gmra.mrb[0].mxu0 %v3575
        %v3620 = vpop.f32.mrb[0].mxu0
        %v3621 = vadd.f32 0.0, %v3620
        %v3622 = vpop.f32.mrb[0].mxu0
        %v3623 = vadd.f32 0.0, %v3622
        %v3624 = vpop.f32.mrb[0].mxu0
        %v3625 = vadd.f32 0.0, %v3624
        %v3626 = vpop.f32.mrb[0].mxu0
        %v3627 = vadd.f32 0.0, %v3626
        %3628 = vmatprep.mubr.bf16.mxu0 0
        %3629 = vmatmul.mubr.bf16.gmra.mrb[0].mxu0 %v3578
        %v3630 = vpop.f32.mrb[0].mxu0
        %v3631 = vadd.f32 0.0, %v3630
        %v3632 = vpop.f32.mrb[0].mxu0
        %v3633 = vadd.f32 0.0, %v3632
        %v3634 = vpop.f32.mrb[0].mxu0
        %v3635 = vadd.f32 0.0, %v3634
        %v3636 = vpop.f32.mrb[0].mxu0
        %v3637 = vadd.f32 0.0, %v3636
        %3638 = vmatprep.mubr.bf16.mxu0 0
        %3639 = vmatmul.mubr.bf16.gmra.mrb[0].mxu0 %v3581
        %v3640 = vpop.f32.mrb[0].mxu0
        %v3641 = vadd.f32 0.0, %v3640
        %v3642 = vpop.f32.mrb[0].mxu0
        %v3643 = vadd.f32 0.0, %v3642
        %v3644 = vpop.f32.mrb[0].mxu0
        %v3645 = vadd.f32 0.0, %v3644
        %v3646 = vpop.f32.mrb[0].mxu0
        %v3647 = vadd.f32 0.0, %v3646
        %3648 = vmatprep.mubr.bf16.mxu0 0
        %3649 = vmatmul.mubr.bf16.gmra.mrb[0].mxu0 %v3584
        %v3650 = vpop.f32.mrb[0].mxu0
        %v3651 = vadd.f32 0.0, %v3650
        %v3652 = vpop.f32.mrb[0].mxu0
        %v3653 = vadd.f32 0.0, %v3652
        %v3654 = vpop.f32.mrb[0].mxu0
        %v3655 = vadd.f32 0.0, %v3654
        %v3656 = vpop.f32.mrb[0].mxu0
        %v3657 = vadd.f32 0.0, %v3656
        %3658 = vdwg.mxu0
        %3659 = vmatprep.subr.bf16.mxu0 0
        %3660 = vmatpush1.bf16.xpose.msra.mxu0 %v3575
        %3661 = vmatprep.subr.bf16.mxu0 0
        %3662 = vmatpush1.bf16.xpose.msra.mxu0 %v3578
        %3663 = vmatprep.subr.bf16.mxu0 0
        %3664 = vmatpush1.bf16.xpose.msra.mxu0 %v3581
        %3665 = vmatprep.subr.bf16.mxu0 0
        %3666 = vmatpush1.bf16.xpose.msra.mxu0 %v3584
        %3667 = vmatprep.subr.bf16.mxu0 0
        %3668 = vmatpush1.bf16.xpose.msra.mxu0 0
        %3669 = vmatprep.subr.bf16.mxu0 0
        %3670 = vmatpush1.bf16.xpose.msra.mxu0 0
        %3671 = vmatprep.subr.bf16.mxu0 0
        %3672 = vmatpush1.bf16.xpose.msra.mxu0 0
        %3673 = vmatprep.subr.bf16.mxu0 0
        %3674 = vmatpush1.bf16.xpose.msra.mxu0 0
        %3675 = vmatprep.subr.bf16.mxu0 0
        %3676 = vmatpush1.bf16.xpose.msra.mxu0 0
        %3677 = vmatprep.subr.bf16.mxu0 0
        %3678 = vmatpush1.bf16.xpose.msra.mxu0 0
        %3679 = vmatprep.subr.bf16.mxu0 0
        %3680 = vmatpush1.bf16.xpose.msra.mxu0 0
        %3681 = vmatprep.subr.bf16.mxu0 0
        %3682 = vmatpush1.bf16.xpose.msra.mxu0 0
        %3683 = vmatprep.subr.bf16.mxu0 0
        %3684 = vmatpush1.bf16.xpose.msra.mxu0 0
        %3685 = vmatprep.subr.bf16.mxu0 0
        %3686 = vmatpush1.bf16.xpose.msra.mxu0 0
        %3687 = vmatprep.subr.bf16.mxu0 0
        %3688 = vmatpush1.bf16.xpose.msra.mxu0 0
        %3689 = vmatprep.subr.bf16.mxu0 0
        %3690 = vmatpush1.bf16.xpose.msra.mxu0 0
        %3691 = vmatprep.mubr.bf16.mxu0 0
        %3692 = vmatmul.mubr.bf16.gmra.mrb[0].mxu0 %v3575
        %v3693 = vpop.f32.mrb[0].mxu0
        %v3694 = vadd.f32 0.0, %v3693
        %v3695 = vpop.f32.mrb[0].mxu0
        %v3696 = vpop.f32.mrb[0].mxu0
        %v3697 = vadd.f32 0.0, %v3696
        %v3698 = vpop.f32.mrb[0].mxu0
        %3699 = vmatprep.mubr.bf16.mxu0 0
        %3700 = vmatmul.mubr.bf16.gmra.mrb[0].mxu0 %v3578
        %v3701 = vpop.f32.mrb[0].mxu0
        %v3702 = vadd.f32 0.0, %v3701
        %v3703 = vpop.f32.mrb[0].mxu0
        %v3704 = vpop.f32.mrb[0].mxu0
        %v3705 = vadd.f32 0.0, %v3704
        %v3706 = vpop.f32.mrb[0].mxu0
        %3707 = vmatprep.mubr.bf16.mxu0 0
        %3708 = vmatmul.mubr.bf16.gmra.mrb[0].mxu0 %v3581
        %v3709 = vpop.f32.mrb[0].mxu0
        %v3710 = vadd.f32 0.0, %v3709
        %v3711 = vpop.f32.mrb[0].mxu0
        %v3712 = vpop.f32.mrb[0].mxu0
        %v3713 = vadd.f32 0.0, %v3712
        %v3714 = vpop.f32.mrb[0].mxu0
        %3715 = vmatprep.mubr.bf16.mxu0 0
        %3716 = vmatmul.mubr.bf16.gmra.mrb[0].mxu0 %v3584
        %v3717 = vpop.f32.mrb[0].mxu0
        %v3718 = vadd.f32 0.0, %v3717
        %v3719 = vpop.f32.mrb[0].mxu0
        %v3720 = vpop.f32.mrb[0].mxu0
        %v3721 = vadd.f32 0.0, %v3720
        %v3722 = vpop.f32.mrb[0].mxu0
        %3723 = vdwg.mxu0
        %v3724 = vpack.c.bf16 %v3697, %v3694
        %v3725 = vpack.c.bf16 %v3705, %v3702
        %v3726 = vpack.c.bf16 %v3713, %v3710
        %v3727 = vpack.c.bf16 %v3721, %v3718
        %v3728 = vmul.f32 %v3311, %v3621
        %v3729 = vmul.f32 %v3312, %v3623
        %v3730 = vmul.f32 %v3313, %v3625
        %v3731 = vmul.f32 %v3314, %v3627
        %v3732 = vmul.f32 %v3315, %v3631
        %v3733 = vmul.f32 %v3316, %v3633
        %v3734 = vmul.f32 %v3317, %v3635
        %v3735 = vmul.f32 %v3318, %v3637
        %v3736 = vmul.f32 %v3319, %v3641
        %v3737 = vmul.f32 %v3320, %v3643
        %v3738 = vmul.f32 %v3321, %v3645
        %v3739 = vmul.f32 %v3322, %v3647
        %v3740 = vmul.f32 %v3323, %v3651
        %v3741 = vmul.f32 %v3324, %v3653
        %v3742 = vmul.f32 %v3325, %v3655
        %v3743 = vmul.f32 %v3326, %v3657
        %v3745 = vsel %vm539, %v3724, 0
        %v3748 = vsel %vm539, %v3725, 0
        %v3751 = vsel %vm539, %v3726, 0
        %v3754 = vsel %vm539, %v3727, 0
        %3756 = vmatprep.subr.bf16.mxu0 %v3328
        %3757 = vmatpush1.bf16.msra.mxu0 %v3327
        %3758 = vmatprep.subr.bf16.mxu0 %v3330
        %3759 = vmatpush1.bf16.msra.mxu0 %v3329
        %3760 = vmatprep.subr.bf16.mxu0 %v3332
        %3761 = vmatpush1.bf16.msra.mxu0 %v3331
        %3762 = vmatprep.subr.bf16.mxu0 %v3334
        %3763 = vmatpush1.bf16.msra.mxu0 %v3333
        %3764 = vmatprep.subr.bf16.mxu0 0
        %3765 = vmatpush1.bf16.msra.mxu0 0
        %3766 = vmatprep.subr.bf16.mxu0 0
        %3767 = vmatpush1.bf16.msra.mxu0 0
        %3768 = vmatprep.subr.bf16.mxu0 0
        %3769 = vmatpush1.bf16.msra.mxu0 0
        %3770 = vmatprep.subr.bf16.mxu0 0
        %3771 = vmatpush1.bf16.msra.mxu0 0
        %3772 = vmatprep.subr.bf16.mxu0 0
        %3773 = vmatpush1.bf16.msra.mxu0 0
        %3774 = vmatprep.subr.bf16.mxu0 0
        %3775 = vmatpush1.bf16.msra.mxu0 0
        %3776 = vmatprep.subr.bf16.mxu0 0
        %3777 = vmatpush1.bf16.msra.mxu0 0
        %3778 = vmatprep.subr.bf16.mxu0 0
        %3779 = vmatpush1.bf16.msra.mxu0 0
        %3780 = vmatprep.subr.bf16.mxu0 0
        %3781 = vmatpush1.bf16.msra.mxu0 0
        %3782 = vmatprep.subr.bf16.mxu0 0
        %3783 = vmatpush1.bf16.msra.mxu0 0
        %3784 = vmatprep.subr.bf16.mxu0 0
        %3785 = vmatpush1.bf16.msra.mxu0 0
        %3786 = vmatprep.subr.bf16.mxu0 0
        %3787 = vmatpush1.bf16.msra.mxu0 0
        %3788 = vmatprep.mubr.bf16.mxu0 0
        %3789 = vmatmul.mubr.bf16.gmra.mrb[0].mxu0 %v3745
        %v3790 = vpop.f32.mrb[0].mxu0
        %v3791 = vadd.f32 1e-06, %v3790
        %v3792 = vpop.f32.mrb[0].mxu0
        %v3793 = vadd.f32 1e-06, %v3792
        %v3794 = vpop.f32.mrb[0].mxu0
        %v3795 = vadd.f32 1e-06, %v3794
        %v3796 = vpop.f32.mrb[0].mxu0
        %v3797 = vadd.f32 1e-06, %v3796
        %3798 = vmatprep.mubr.bf16.mxu0 0
        %3799 = vmatmul.mubr.bf16.gmra.mrb[0].mxu0 %v3748
        %v3800 = vpop.f32.mrb[0].mxu0
        %v3801 = vadd.f32 1e-06, %v3800
        %v3802 = vpop.f32.mrb[0].mxu0
        %v3803 = vadd.f32 1e-06, %v3802
        %v3804 = vpop.f32.mrb[0].mxu0
        %v3805 = vadd.f32 1e-06, %v3804
        %v3806 = vpop.f32.mrb[0].mxu0
        %v3807 = vadd.f32 1e-06, %v3806
        %3808 = vmatprep.mubr.bf16.mxu0 0
        %3809 = vmatmul.mubr.bf16.gmra.mrb[0].mxu0 %v3751
        %v3810 = vpop.f32.mrb[0].mxu0
        %v3811 = vadd.f32 1e-06, %v3810
        %v3812 = vpop.f32.mrb[0].mxu0
        %v3813 = vadd.f32 1e-06, %v3812
        %v3814 = vpop.f32.mrb[0].mxu0
        %v3815 = vadd.f32 1e-06, %v3814
        %v3816 = vpop.f32.mrb[0].mxu0
        %v3817 = vadd.f32 1e-06, %v3816
        %3818 = vmatprep.mubr.bf16.mxu0 0
        %3819 = vmatmul.mubr.bf16.gmra.mrb[0].mxu0 %v3754
        %v3820 = vpop.f32.mrb[0].mxu0
        %v3821 = vadd.f32 1e-06, %v3820
        %v3822 = vpop.f32.mrb[0].mxu0
        %v3823 = vadd.f32 1e-06, %v3822
        %v3824 = vpop.f32.mrb[0].mxu0
        %v3825 = vadd.f32 1e-06, %v3824
        %v3826 = vpop.f32.mrb[0].mxu0
        %v3827 = vadd.f32 1e-06, %v3826
        %3828 = vdwg.mxu0
        %v3829 = vrcp.pop %v3791
        %v3830 = vrcp.pop %v3793
        %v3831 = vrcp.pop %v3795
        %v3832 = vrcp.pop %v3797
        %v3833 = vrcp.pop %v3801
        %v3834 = vrcp.pop %v3803
        %v3835 = vrcp.pop %v3805
        %v3836 = vrcp.pop %v3807
        %v3837 = vrcp.pop %v3811
        %v3838 = vrcp.pop %v3813
        %v3839 = vrcp.pop %v3815
        %v3840 = vrcp.pop %v3817
        %v3841 = vrcp.pop %v3821
        %v3842 = vrcp.pop %v3823
        %v3843 = vrcp.pop %v3825
        %v3844 = vrcp.pop %v3827
        %v3845 = vmul.f32 %v3728, %v3829
        %v3846 = vmul.f32 %v3729, %v3830
        %v3847 = vmul.f32 %v3730, %v3831
        %v3848 = vmul.f32 %v3731, %v3832
        %v3849 = vmul.f32 %v3732, %v3833
        %v3850 = vmul.f32 %v3733, %v3834
        %v3851 = vmul.f32 %v3734, %v3835
        %v3852 = vmul.f32 %v3735, %v3836
        %v3853 = vmul.f32 %v3736, %v3837
        %v3854 = vmul.f32 %v3737, %v3838
        %v3855 = vmul.f32 %v3738, %v3839
        %v3856 = vmul.f32 %v3739, %v3840
        %v3857 = vmul.f32 %v3740, %v3841
        %v3858 = vmul.f32 %v3741, %v3842
        %v3859 = vmul.f32 %v3742, %v3843
        %v3860 = vmul.f32 %v3743, %v3844
        %v3861 = vpack.c.bf16 %v3847, %v3845
        %v3862 = vpack.c.bf16 %v3848, %v3846
        %v3863 = vpack.c.bf16 %v3851, %v3849
        %v3864 = vpack.c.bf16 %v3852, %v3850
        %v3865 = vpack.c.bf16 %v3855, %v3853
        %v3866 = vpack.c.bf16 %v3856, %v3854
        %v3867 = vpack.c.bf16 %v3859, %v3857
        %v3868 = vpack.c.bf16 %v3860, %v3858
        %3869 = vxpose.xlu0.c.b16.start [1/8] %v3570, 128
        %3870 = vxpose.xlu0.c.b16.cont [2/8] %v3571, 128
        %3871 = vxpose.xlu0.c.b16.cont [3/8] %v3572, 128
        %3872 = vxpose.xlu0.c.b16.cont [4/8] %v3573, 128
        %3873 = vxpose.xlu0.c.b16.cont [5/8] 0, 128
        %3874 = vxpose.xlu0.c.b16.cont [6/8] 0, 128
        %3875 = vxpose.xlu0.c.b16.cont [7/8] 0, 128
        %3876 = vxpose.xlu0.c.b16.end [8/8] 0, 128
        %v3877 = vpop.trf.xlu0
        %v3878 = vpop.trf.xlu0
        %v3879 = vpop.trf.xlu0
        %v3880 = vpop.trf.xlu0
        %v3881 = vpop.trf.xlu0
        %v3882 = vpop.trf.xlu0
        %v3883 = vpop.trf.xlu0
        %v3884 = vpop.trf.xlu0
        %v3886 = vsel %vm539, %v3877, 0
        %3888 = vmatprep.subr.bf16.mxu0 %v3862
        %3889 = vmatpush1.bf16.msra.mxu0 %v3861
        %3890 = vmatprep.subr.bf16.mxu0 %v3864
        %3891 = vmatpush1.bf16.msra.mxu0 %v3863
        %3892 = vmatprep.subr.bf16.mxu0 %v3866
        %3893 = vmatpush1.bf16.msra.mxu0 %v3865
        %3894 = vmatprep.subr.bf16.mxu0 %v3868
        %3895 = vmatpush1.bf16.msra.mxu0 %v3867
        %3896 = vmatprep.subr.bf16.mxu0 0
        %3897 = vmatpush1.bf16.msra.mxu0 0
        %3898 = vmatprep.subr.bf16.mxu0 0
        %3899 = vmatpush1.bf16.msra.mxu0 0
        %3900 = vmatprep.subr.bf16.mxu0 0
        %3901 = vmatpush1.bf16.msra.mxu0 0
        %3902 = vmatprep.subr.bf16.mxu0 0
        %3903 = vmatpush1.bf16.msra.mxu0 0
        %3904 = vmatprep.subr.bf16.mxu0 0
        %3905 = vmatpush1.bf16.msra.mxu0 0
        %3906 = vmatprep.subr.bf16.mxu0 0
        %3907 = vmatpush1.bf16.msra.mxu0 0
        %3908 = vmatprep.subr.bf16.mxu0 0
        %3909 = vmatpush1.bf16.msra.mxu0 0
        %3910 = vmatprep.subr.bf16.mxu0 0
        %3911 = vmatpush1.bf16.msra.mxu0 0
        %3912 = vmatprep.subr.bf16.mxu0 0
        %3913 = vmatpush1.bf16.msra.mxu0 0
        %3914 = vmatprep.subr.bf16.mxu0 0
        %3915 = vmatpush1.bf16.msra.mxu0 0
        %3916 = vmatprep.subr.bf16.mxu0 0
        %3917 = vmatpush1.bf16.msra.mxu0 0
        %3918 = vmatprep.subr.bf16.mxu0 0
        %3919 = vmatpush1.bf16.msra.mxu0 0
        %3920 = vmatprep.mubr.bf16.mxu0 0
        %3921 = vmatmul.mubr.bf16.gmra.mrb[0].mxu0 %v3886
        %v3922 = vpop.f32.mrb[0].mxu0
        %v3923 = vadd.f32 0.0, %v3922
        %v3924 = vpop.f32.mrb[0].mxu0
        %v3925 = vadd.f32 0.0, %v3924
        %v3926 = vpop.f32.mrb[0].mxu0
        %v3927 = vpop.f32.mrb[0].mxu0
        %3928 = vdwg.mxu0
        %v3931 = vcombine.low %v3923, %v3925
        %3933 = vst [vmem:[%s199] sm:$0xff] %v3931
        %s3934 = sand.u32 %s82, 1
        %s3935 = scalar_lea.sflag [#allocation4], %s3934
        %s3936 = sand.u32 %s82, 1
        %s3937 = smul.addr %s3936, 8
        %s3938 = scalar_lea.vmem [#allocation7], %s3937
        // Predicated region
        $region37: #{tpu_custom_call.1} parent=27 // pred_check
          %p3939 = pneg %p92
        $region38: #{tpu_custom_call.1} parent=27 // pred_check_branch
          %3941 = sbr.rel (%p3939) target = $region40
        $region39: #{tpu_custom_call.1} parent=27 // pred_region
          %s3943 = ssub.s32 128, 128
          %3944 = vsyncadd %s3935, %s3943
          %s3945 = smul.addr %s22, 2
          %s3946 = smul.addr %s3945, 64
          %s3947 = scalar_lea.hbm %s2, %s3946
          %s3949 = sshll.u32 %s3938, 4
          %s3950 = int_to_ptr.vmem [resolvable:$true] %s3949
          %3952 = dma.vmem_to_hbm [thread:$0]  %s3950, 128, %s3947, %s3935
        $region40: #{tpu_custom_call.1} parent=27 // pred_fallthru
          _
      $region28: #{tpu_custom_call.1} parent=5 // pred_fallthru
        _
      %p3953 = scmp.le.s32.totalorder 2, %s17
      // Predicated region
      $region41: #{tpu_custom_call.1} parent=5 // pred_check
        %p3954 = pneg %p3953
      $region42: #{tpu_custom_call.1} parent=5 // pred_check_branch
        %3956 = sbr.rel (%p3954) target = $region44
      $region43: #{tpu_custom_call.1} parent=5 // pred_region
        %s3957 = ssub.s32 %s17, 2
        // Predicated region
        $region45: #{tpu_custom_call.1} parent=43 // pred_check
          %p3958 = pneg %p98
        $region46: #{tpu_custom_call.1} parent=43 // pred_check_branch
          %3960 = sbr.rel (%p3958) target = $region48
        $region47: #{tpu_custom_call.1} parent=43 // pred_region
          %s3961 = sand.u32 %s83, 1
          %s3962 = scalar_lea.sflag [#allocation4], %s3961
          %s3963 = sand.u32 %s83, 1
          %s3964 = smul.addr %s3963, 8
          %s3965 = scalar_lea.vmem [#allocation7], %s3964
          %3966 = dma.done %s3962, 128
        $region48: #{tpu_custom_call.1} parent=43 // pred_fallthru
          _
      $region44: #{tpu_custom_call.1} parent=5 // pred_fallthru
        _
    $region6: #{tpu_custom_call.1} parent=1 // loop_footer
      %s21 = sadd.s32 1, %s17
    $region7: #{tpu_custom_call.1} parent=1 // loop_footer_branch
      %16 = sbr.rel target = $region3
    $region8: #{tpu_custom_call.1} parent=1 // loop_exit
      _
    %3967 = vsyncpa [#allocation3], 1
    %s3968 = scalar_lea.sflag [#allocation3], 1
    %3969 = vsyncpa %s3968, 1
    %3970 = vsyncpa [#allocation6], 1
    %s3971 = scalar_lea.sflag [#allocation6], 1
    %3972 = vsyncpa %s3971, 1
    %3973 = vsyncpa [#allocation4], 1
    %s3974 = scalar_lea.sflag [#allocation4], 1
    %3975 = vsyncpa %s3974, 1

</llo_original>
